<compile_context>
chip_gen: v7x
topology: tpu7x:2x2x1
jax: 0.10.0
libtpu: 0.0.40
codegen_flags: <defaults>
</compile_context>

<pallas_src>
import functools

import jax
import jax.numpy as jnp
from jax import lax
from jax.experimental import pallas as pl
from jax.experimental.pallas import tpu as pltpu


def _round_up(n, m):
    return ((n + m - 1) // m) * m


def _vmem_capacity_bytes():
    try:
        return int(pltpu.get_tpu_info().vmem_capacity_bytes)
    except Exception:
        return 64 * 1024 * 1024  # conservative fallback (v7x per-TC VMEM)


def _auto_t_chunk(T, BP, HP, EP, L, weight_bytes, vmem_budget, cap=32):
    """Largest divisor of T (<= cap) whose per-chunk VMEM footprint fits the budget."""
    # dominant per-timestep VMEM: gx scratch (f32) + seq scratch (bf16) + 2x embeds block (bf16)
    per_t = BP * (4 * HP * 4 + HP * 2 + 2 * EP * 2)
    fixed = int(weight_bytes) + 6 * L * BP * HP * 4 + (1 << 20)  # states + headroom
    avail = int(vmem_budget) - fixed
    tc_max = max(1, min(cap, avail // per_t if per_t > 0 else cap))
    best = 1
    for d in range(1, T + 1):
        if T % d == 0 and d <= tc_max:
            best = d
    return best


def _make_lstm_kernel(no_layers, t_chunk, b_pad, hidden_pad, unroll):
    L, TC, BP, HP = no_layers, t_chunk, b_pad, hidden_pad

    def kernel(embeds_ref, h0_ref, c0_ref, *rest):
        w_refs = rest[: 3 * L]                          # per layer: wih (in,4HP), whh (HP,4HP), bias (1,4HP)
        wfc_ref, bfc_ref = rest[3 * L], rest[3 * L + 1]
        out_ref, hn_ref, cn_ref = rest[3 * L + 2: 3 * L + 5]
        seq_ref, gx_ref = rest[3 * L + 5:]              # VMEM scratch: layer-output rows / hoisted gate rows

        pid = pl.program_id(0)
        last = pl.num_programs(0) - 1

        # First chunk: load the carried state from the initial hidden state.
        @pl.when(pid == 0)
        def _():
            hn_ref[...] = h0_ref[...]
            cn_ref[...] = c0_ref[...]

        h_top = None
        for l in range(L):
            wih_ref = w_refs[3 * l]                     # (in_dim, 4*HP) bf16
            whh_ref = w_refs[3 * l + 1]                 # (HP, 4*HP)     bf16
            b = w_refs[3 * l + 2][...]                  # (1, 4*HP)      f32 (b_ih + b_hh)

            # ---- Hoisted input projection: ONE MXU matmul for the whole chunk ----
            if l == 0:
                x_chunk = embeds_ref[...]               # (TC*BP, EP) bf16, time-major rows
            else:
                x_chunk = seq_ref[...]                  # (TC*BP, HP) bf16
            gx_ref[...] = jnp.dot(x_chunk, wih_ref[...],
                                  preferred_element_type=jnp.float32) + b

            h_l = hn_ref[l]                             # (BP, HP) f32 carried state
            c_l = cn_ref[l]                             # (BP, HP) f32 carried state
            is_top = (l == L - 1)

            def step(t, carry, whh_ref=whh_ref, is_top=is_top):
                h_prev, c_prev = carry
                row = pl.multiple_of(t * BP, BP)
                # recurrent matmul reads whh from its VMEM ref per step (no hoisted value).
                gates = gx_ref[pl.ds(row, BP), :] + jnp.dot(
                    h_prev.astype(jnp.bfloat16), whh_ref[...],
                    preferred_element_type=jnp.float32)
                # sigmoid via tanh identity (fewer EUP pushes on the serial path);
                # 128-lane-aligned gate slices (HP multiple of 128).
                i_g = 0.5 * jnp.tanh(0.5 * gates[:, 0 * HP:1 * HP]) + 0.5
                f_g = 0.5 * jnp.tanh(0.5 * gates[:, 1 * HP:2 * HP]) + 0.5
                g_g = jnp.tanh(gates[:, 2 * HP:3 * HP])
                o_g = 0.5 * jnp.tanh(0.5 * gates[:, 3 * HP:4 * HP]) + 0.5
                c_new = f_g * c_prev + i_g * g_g        # cell state kept in f32
                h_new = o_g * jnp.tanh(c_new)
                if not is_top:                          # top layer's per-step output is never read
                    seq_ref[pl.ds(row, BP), :] = h_new.astype(jnp.bfloat16)
                return (h_new, c_new)

            h_l, c_l = lax.fori_loop(0, TC, step, (h_l, c_l), unroll=unroll)
            hn_ref[l] = h_l
            cn_ref[l] = c_l
            h_top = h_l

        # Last chunk: dropout(p=0) = identity; FC + sigmoid on the final top-layer state.
        @pl.when(pid == last)
        def _():
            logits = jnp.dot(h_top, wfc_ref[...],
                             preferred_element_type=jnp.float32) + bfc_ref[...]
            out_ref[...] = jax.nn.sigmoid(logits)

    return kernel


def prepare_params(params, *, no_layers, hidden_dim, embedding_dim, output_dim):
    """One-time weight prep: transpose, fuse biases, pad to lane-aligned shapes, cast to bf16."""
    H = hidden_dim
    HP = _round_up(H, 128)
    E = embedding_dim
    EP = _round_up(E, 128) if E >= 128 else E            # pad embed dim only when it's big

    def pad_gate_cols(w_t):                              # (in_dim, 4H) -> (in_dim, 4*HP)
        in_dim = w_t.shape[0]
        w4 = w_t.reshape(in_dim, 4, H)
        w4 = jnp.pad(w4, ((0, 0), (0, 0), (0, HP - H)))
        return w4.reshape(in_dim, 4 * HP)

    weights = []
    for l in range(no_layers):
        in_dim = E if l == 0 else H
        in_pad = EP if l == 0 else HP
        wih = pad_gate_cols(params[f"w_ih_l{l}"].T.astype(jnp.float32))
        wih = jnp.pad(wih, ((0, in_pad - in_dim), (0, 0)))
        whh = pad_gate_cols(params[f"w_hh_l{l}"].T.astype(jnp.float32))
        whh = jnp.pad(whh, ((0, HP - H), (0, 0)))
        b = (params[f"b_ih_l{l}"] + params[f"b_hh_l{l}"]).astype(jnp.float32)
        b = jnp.pad(b.reshape(4, H), ((0, 0), (0, HP - H))).reshape(1, 4 * HP)
        weights += [wih.astype(jnp.bfloat16), whh.astype(jnp.bfloat16), b]

    wfc = jnp.pad(params["fc_w"].T.astype(jnp.float32), ((0, HP - H), (0, 0)))  # (HP, out)
    bfc = params["fc_b"][None, :].astype(jnp.float32)                           # (1, out)

    emb = jnp.pad(params["embedding"].astype(jnp.float32), ((0, 0), (0, EP - E)))

    return {
        "embedding": emb.astype(jnp.bfloat16),           # (vocab, EP) bf16
        "lstm_weights": tuple(weights),
        "fc": (wfc, bfc),
        "hidden_pad": HP,
    }


def sentiment_rnn_forward(prepped, x, hidden, *, no_layers, hidden_dim, output_dim,
                          t_chunk=None):
    """Pallas-backed equivalent of SentimentRNN.forward(x, hidden)."""
    h0, c0 = hidden
    B, T = x.shape
    L, H = no_layers, hidden_dim
    HP = prepped["hidden_pad"]
    EP = prepped["embedding"].shape[1]
    BP = _round_up(max(B, 16), 16)                        # bf16 native (16,128) sublane tile

    weights = prepped["lstm_weights"]
    wfc, bfc = prepped["fc"]
    weight_bytes = sum(int(w.size) * w.dtype.itemsize for w in weights)
    weight_bytes += int(wfc.size) * 4 + int(bfc.size) * 4

    vmem_cap = _vmem_capacity_bytes()
    vmem_limit = int(vmem_cap * 0.8)                      # ~80% of physical per-core VMEM
    if t_chunk is None:
        t_chunk = _auto_t_chunk(T, BP, HP, EP, L, weight_bytes, vmem_limit)
    assert T % t_chunk == 0, "t_chunk must divide the sequence length"

    # Embedding gather (plain JAX glue), time-major, batch-padded, bf16, rows = t*BP + b.
    embeds = prepped["embedding"][x]                      # (B, T, EP) bf16
    embeds = jnp.transpose(embeds, (1, 0, 2))             # (T, B, EP)
    embeds = jnp.pad(embeds, ((0, 0), (0, BP - B), (0, 0)))
    embeds = embeds.reshape(T * BP, EP)                   # 2-D so the kernel never reshapes

    def pad_state(s):
        return jnp.pad(s.astype(jnp.float32), ((0, 0), (0, BP - B), (0, HP - H)))
    h0p, c0p = pad_state(h0), pad_state(c0)

    single = pl.Buffered(1)                               # grid-invariant -> no double buffer
    in_specs = [pl.BlockSpec((t_chunk * BP, EP), lambda t: (t, 0)),          # streamed chunk
                pl.BlockSpec((L, BP, HP), lambda t: (0, 0, 0), pipeline_mode=single),  # h0
                pl.BlockSpec((L, BP, HP), lambda t: (0, 0, 0), pipeline_mode=single)]  # c0
    for w in weights:
        in_specs.append(pl.BlockSpec(w.shape, lambda t: (0, 0), pipeline_mode=single))
    in_specs += [pl.BlockSpec(wfc.shape, lambda t: (0, 0), pipeline_mode=single),
                 pl.BlockSpec(bfc.shape, lambda t: (0, 0), pipeline_mode=single)]

    out_specs = (pl.BlockSpec((BP, output_dim), lambda t: (0, 0)),
                 pl.BlockSpec((L, BP, HP), lambda t: (0, 0, 0)),
                 pl.BlockSpec((L, BP, HP), lambda t: (0, 0, 0)))

    unroll = next(u for u in (8, 4, 2, 1) if t_chunk % u == 0)  # partial unroll
    kernel = _make_lstm_kernel(L, t_chunk, BP, HP, unroll)

    out, hn, cn = pl.pallas_call(
        kernel,
        grid=(T // t_chunk,),
        out_shape=(jax.ShapeDtypeStruct((BP, output_dim), jnp.float32),
                   jax.ShapeDtypeStruct((L, BP, HP), jnp.float32),
                   jax.ShapeDtypeStruct((L, BP, HP), jnp.float32)),
        in_specs=in_specs,
        out_specs=out_specs,
        scratch_shapes=[pltpu.VMEM((t_chunk * BP, HP), jnp.bfloat16),       # layer-output rows
                        pltpu.VMEM((t_chunk * BP, 4 * HP), jnp.float32)],   # hoisted gate rows
        compiler_params=pltpu.CompilerParams(
            dimension_semantics=("arbitrary",),           # serial carry over time chunks
            vmem_limit_bytes=vmem_limit),
    )(embeds, h0p, c0p, *weights, wfc, bfc)

    # PyTorch: fc over all timesteps, view(B, -1)[:, -1] == last output unit of the fc at
    # the last timestep (intended behaviour; for output_dim > 1 it discards earlier units).
    sig_out = out[:B, -1]
    return sig_out, (hn[:, :B, :H], cn[:, :B, :H])


def _forward_ref(params, x, hidden, *, no_layers, hidden_dim, output_dim):
    """Pure-JAX f32 reference for correctness checking."""
    h0, c0 = hidden
    B, T = x.shape
    L, H = no_layers, hidden_dim
    seq = params["embedding"][x].astype(jnp.float32)             # (B, T, E)
    h_n, c_n = [], []
    for l in range(L):
        wih = params[f"w_ih_l{l}"].astype(jnp.float32)
        whh = params[f"w_hh_l{l}"].astype(jnp.float32)
        b = (params[f"b_ih_l{l}"] + params[f"b_hh_l{l}"]).astype(jnp.float32)
        h, c = h0[l], c0[l]
        outs = []
        for t in range(T):
            gates = seq[:, t, :] @ wih.T + h @ whh.T + b
            i_g = jax.nn.sigmoid(gates[:, 0:H])
            f_g = jax.nn.sigmoid(gates[:, H:2 * H])
            g_g = jnp.tanh(gates[:, 2 * H:3 * H])
            o_g = jax.nn.sigmoid(gates[:, 3 * H:4 * H])
            c = f_g * c + i_g * g_g
            h = o_g * jnp.tanh(c)
            outs.append(h)
        seq = jnp.stack(outs, axis=1)
        h_n.append(h)
        c_n.append(c)
    fc = seq.reshape(-1, H) @ params["fc_w"].T.astype(jnp.float32) + params["fc_b"]
    sig = jax.nn.sigmoid(fc).reshape(B, -1)[:, -1]
    return sig, (jnp.stack(h_n), jnp.stack(c_n))


def init_params(key, vocab_size, embedding_dim, hidden_dim, no_layers, output_dim):
    params = {}
    k = 1.0 / jnp.sqrt(hidden_dim)
    keys = jax.random.split(key, 3 + 4 * no_layers + 2)
    params["embedding"] = jax.random.normal(keys[0], (vocab_size, embedding_dim),
                                            jnp.float32) * 0.1
    idx = 1
    for l in range(no_layers):
        in_dim = embedding_dim if l == 0 else hidden_dim
        params[f"w_ih_l{l}"] = jax.random.uniform(keys[idx], (4 * hidden_dim, in_dim),
                                                  jnp.float32, -k, k); idx += 1
        params[f"w_hh_l{l}"] = jax.random.uniform(keys[idx], (4 * hidden_dim, hidden_dim),
                                                  jnp.float32, -k, k); idx += 1
        params[f"b_ih_l{l}"] = jax.random.uniform(keys[idx], (4 * hidden_dim,),
                                                  jnp.float32, -k, k); idx += 1
        params[f"b_hh_l{l}"] = jax.random.uniform(keys[idx], (4 * hidden_dim,),
                                                  jnp.float32, -k, k); idx += 1
    params["fc_w"] = jax.random.uniform(keys[idx], (output_dim, hidden_dim),
                                        jnp.float32, -k, k); idx += 1
    params["fc_b"] = jax.random.uniform(keys[idx], (output_dim,),
                                        jnp.float32, -k, k)
    return params


if __name__ == "__main__":
    no_layers = 2
    vocab_size = 50
    hidden_dim = 32
    embedding_dim = 16
    output_dim = 1
    batch = 2
    seq_len = 8

    key = jax.random.PRNGKey(0)
    pkey, xkey = jax.random.split(key)
    params = init_params(pkey, vocab_size, embedding_dim, hidden_dim,
                         no_layers, output_dim)
    prepped = prepare_params(params, no_layers=no_layers, hidden_dim=hidden_dim,
                             embedding_dim=embedding_dim, output_dim=output_dim)

    x = jax.random.randint(xkey, (batch, seq_len), 0, vocab_size, jnp.int32)
    # SentimentRNN.init_hidden: zeros
    h0 = jnp.zeros((no_layers, batch, hidden_dim), jnp.float32)
    c0 = jnp.zeros((no_layers, batch, hidden_dim), jnp.float32)

    # Pure-JAX f32 reference (kernel matmuls run in bf16).
    ref_sig, (ref_h, ref_c) = _forward_ref(params, x, (h0, c0), no_layers=no_layers,
                                           hidden_dim=hidden_dim, output_dim=output_dim)

    # (1) explicit t_chunk=4 -> grid of 2 time-chunks, exercising the carried-state pipeline.
    fwd = functools.partial(sentiment_rnn_forward, no_layers=no_layers,
                            hidden_dim=hidden_dim, output_dim=output_dim, t_chunk=4)
    sig_out, (h_n, c_n) = fwd(prepped, x, (h0, c0))
    jax.block_until_ready((sig_out, h_n, c_n))

    assert sig_out.shape == (batch,)
    assert h_n.shape == (no_layers, batch, hidden_dim)
    assert c_n.shape == (no_layers, batch, hidden_dim)
    assert jnp.allclose(sig_out, ref_sig, atol=2e-2), "sig_out mismatch"
    assert jnp.allclose(h_n, ref_h, atol=2e-2), "h_n mismatch"
    assert jnp.allclose(c_n, ref_c, atol=2e-2), "c_n mismatch"

    # (2) auto-derived t_chunk / vmem limit path.
    sig_out2, (h_n2, c_n2) = sentiment_rnn_forward(
        prepped, x, (h0, c0), no_layers=no_layers, hidden_dim=hidden_dim,
        output_dim=output_dim)
    jax.block_until_ready((sig_out2, h_n2, c_n2))
    assert jnp.allclose(sig_out2, ref_sig, atol=2e-2), "sig_out (auto chunk) mismatch"
    assert jnp.allclose(h_n2, ref_h, atol=2e-2), "h_n (auto chunk) mismatch"
    assert jnp.allclose(c_n2, ref_c, atol=2e-2), "c_n (auto chunk) mismatch"

    print("KERNEL_OK")
</pallas_src>

<mosaic_0001>
module attributes {stable_mosaic.version = 11 : i64} {
  func.func @kernel(%arg0: i32, %arg1: memref<64x16xbf16, #tpu.memory_space<vmem>>, %arg2: memref<2x16x128xf32, #tpu.memory_space<vmem>>, %arg3: memref<2x16x128xf32, #tpu.memory_space<vmem>>, %arg4: memref<16x512xbf16, #tpu.memory_space<vmem>>, %arg5: memref<128x512xbf16, #tpu.memory_space<vmem>>, %arg6: memref<1x512xf32, #tpu.memory_space<vmem>>, %arg7: memref<128x512xbf16, #tpu.memory_space<vmem>>, %arg8: memref<128x512xbf16, #tpu.memory_space<vmem>>, %arg9: memref<1x512xf32, #tpu.memory_space<vmem>>, %arg10: memref<128x1xf32, #tpu.memory_space<vmem>>, %arg11: memref<1x1xf32, #tpu.memory_space<vmem>>, %arg12: memref<16x1xf32, #tpu.memory_space<vmem>>, %arg13: memref<2x16x128xf32, #tpu.memory_space<vmem>>, %arg14: memref<2x16x128xf32, #tpu.memory_space<vmem>>, %arg15: memref<64x128xbf16, #tpu.memory_space<vmem>>, %arg16: memref<64x512xf32, #tpu.memory_space<vmem>>) attributes {dimension_semantics = [#tpu.dimension_semantics<arbitrary>], iteration_bounds = array<i64: 2>, scalar_prefetch = 0 : i64, scratch_operands = 2 : i64, tpu.core_type = #tpu.core_type<tc>, window_params = [{transform_indices = @transform_0, window_bounds = array<i64: 64, 16>}, {pipeline_mode = #tpu.pipeline_mode<synchronous>, transform_indices = @transform_1, window_bounds = array<i64: 2, 16, 128>}, {pipeline_mode = #tpu.pipeline_mode<synchronous>, transform_indices = @transform_2, window_bounds = array<i64: 2, 16, 128>}, {pipeline_mode = #tpu.pipeline_mode<synchronous>, transform_indices = @transform_3, window_bounds = array<i64: 16, 512>}, {pipeline_mode = #tpu.pipeline_mode<synchronous>, transform_indices = @transform_4, window_bounds = array<i64: 128, 512>}, {pipeline_mode = #tpu.pipeline_mode<synchronous>, transform_indices = @transform_5, window_bounds = array<i64: 1, 512>}, {pipeline_mode = #tpu.pipeline_mode<synchronous>, transform_indices = @transform_6, window_bounds = array<i64: 128, 512>}, {pipeline_mode = #tpu.pipeline_mode<synchronous>, transform_indices = @transform_7, window_bounds = array<i64: 128, 512>}, {pipeline_mode = #tpu.pipeline_mode<synchronous>, transform_indices = @transform_8, window_bounds = array<i64: 1, 512>}, {pipeline_mode = #tpu.pipeline_mode<synchronous>, transform_indices = @transform_9, window_bounds = array<i64: 128, 1>}, {pipeline_mode = #tpu.pipeline_mode<synchronous>, transform_indices = @transform_10, window_bounds = array<i64: 1, 1>}, {pipeline_mode = #tpu.pipeline_mode<synchronous>, transform_indices = @transform_11, window_bounds = array<i64: 16, 1>}, {pipeline_mode = #tpu.pipeline_mode<synchronous>, transform_indices = @transform_12, window_bounds = array<i64: 2, 16, 128>}, {pipeline_mode = #tpu.pipeline_mode<synchronous>, transform_indices = @transform_13, window_bounds = array<i64: 2, 16, 128>}]} {
    %c0_i32 = arith.constant 0 : i32
    %0 = arith.cmpi eq, %arg0, %c0_i32 : i32
    %1 = arith.extui %0 : i1 to i32
    %c0_i32_0 = arith.constant 0 : i32
    %2 = arith.cmpi ne, %1, %c0_i32_0 : i32
    scf.if %2 {
      %c0_163 = arith.constant 0 : index
      %c0_164 = arith.constant 0 : index
      %c0_165 = arith.constant 0 : index
      %364 = vector.load %arg2[%c0_163, %c0_164, %c0_165] : memref<2x16x128xf32, #tpu.memory_space<vmem>>, vector<2x16x128xf32>
      %c0_166 = arith.constant 0 : index
      %c0_167 = arith.constant 0 : index
      %c0_168 = arith.constant 0 : index
      %365 = vector.load %arg13[%c0_166, %c0_167, %c0_168] : memref<2x16x128xf32, #tpu.memory_space<vmem>>, vector<2x16x128xf32>
      tpu.vector_store %arg13[%c0_166, %c0_167, %c0_168], %364 {strides = array<i32>} : memref<2x16x128xf32, #tpu.memory_space<vmem>>, vector<2x16x128xf32>,
      %c0_169 = arith.constant 0 : index
      %c0_170 = arith.constant 0 : index
      %c0_171 = arith.constant 0 : index
      %366 = vector.load %arg3[%c0_169, %c0_170, %c0_171] : memref<2x16x128xf32, #tpu.memory_space<vmem>>, vector<2x16x128xf32>
      %c0_172 = arith.constant 0 : index
      %c0_173 = arith.constant 0 : index
      %c0_174 = arith.constant 0 : index
      %367 = vector.load %arg14[%c0_172, %c0_173, %c0_174] : memref<2x16x128xf32, #tpu.memory_space<vmem>>, vector<2x16x128xf32>
      tpu.vector_store %arg14[%c0_172, %c0_173, %c0_174], %366 {strides = array<i32>} : memref<2x16x128xf32, #tpu.memory_space<vmem>>, vector<2x16x128xf32>,
    } else {
    }
    %c0 = arith.constant 0 : index
    %c0_1 = arith.constant 0 : index
    %3 = vector.load %arg6[%c0, %c0_1] : memref<1x512xf32, #tpu.memory_space<vmem>>, vector<1x512xf32>
    %c0_2 = arith.constant 0 : index
    %c0_3 = arith.constant 0 : index
    %4 = vector.load %arg1[%c0_2, %c0_3] : memref<64x16xbf16, #tpu.memory_space<vmem>>, vector<64x16xbf16>
    %c0_4 = arith.constant 0 : index
    %c0_5 = arith.constant 0 : index
    %5 = vector.load %arg4[%c0_4, %c0_5] : memref<16x512xbf16, #tpu.memory_space<vmem>>, vector<16x512xbf16>
    %cst = arith.constant dense<0.000000e+00> : vector<64x512xf32>
    %6 = tpu.matmul %4, %5, %cst {dimension_numbers = #tpu.dot_dimension_numbers<[1], [0], [0], [1], [0, 0, 1, 1], [], []>} : vector<64x16xbf16>, vector<16x512xbf16>, vector<64x512xf32> -> vector<64x512xf32>
    %7 = vector.broadcast %3 : vector<1x512xf32> to vector<64x512xf32>
    %8 = arith.addf %6, %7 : vector<64x512xf32>
    %c0_6 = arith.constant 0 : index
    %c0_7 = arith.constant 0 : index
    %9 = vector.load %arg16[%c0_6, %c0_7] : memref<64x512xf32, #tpu.memory_space<vmem>>, vector<64x512xf32>
    tpu.vector_store %arg16[%c0_6, %c0_7], %8 {strides = array<i32>} : memref<64x512xf32, #tpu.memory_space<vmem>>, vector<64x512xf32>,
    %c0_8 = arith.constant 0 : index
    %c0_9 = arith.constant 0 : index
    %c0_10 = arith.constant 0 : index
    %10 = vector.load %arg13[%c0_8, %c0_9, %c0_10] : memref<2x16x128xf32, #tpu.memory_space<vmem>>, vector<1x16x128xf32>
    %11 = vector.shape_cast %10 : vector<1x16x128xf32> to vector<16x128xf32>
    %c0_11 = arith.constant 0 : index
    %c0_12 = arith.constant 0 : index
    %c0_13 = arith.constant 0 : index
    %12 = vector.load %arg14[%c0_11, %c0_12, %c0_13] : memref<2x16x128xf32, #tpu.memory_space<vmem>>, vector<1x16x128xf32>
    %13 = vector.shape_cast %12 : vector<1x16x128xf32> to vector<16x128xf32>
    %c0_i32_14 = arith.constant 0 : i32
    %c16_i32 = arith.constant 16 : i32
    %14 = arith.muli %c0_i32_14, %c16_i32 : i32
    %15 = tpu.assume_multiple %14, 16 : i32
    %16 = arith.index_cast %15 : i32 to index
    %c0_15 = arith.constant 0 : index
    %17 = vector.load %arg16[%16, %c0_15] : memref<64x512xf32, #tpu.memory_space<vmem>>, vector<16x512xf32>
    %18 = arith.truncf %11 : vector<16x128xf32> to vector<16x128xbf16>
    %c0_16 = arith.constant 0 : index
    %c0_17 = arith.constant 0 : index
    %19 = vector.load %arg5[%c0_16, %c0_17] : memref<128x512xbf16, #tpu.memory_space<vmem>>, vector<128x512xbf16>
    %cst_18 = arith.constant dense<0.000000e+00> : vector<16x512xf32>
    %20 = tpu.matmul %18, %19, %cst_18 {dimension_numbers = #tpu.dot_dimension_numbers<[1], [0], [0], [1], [0, 0, 1, 1], [], []>} : vector<16x128xbf16>, vector<128x512xbf16>, vector<16x512xf32> -> vector<16x512xf32>
    %21 = arith.addf %17, %20 : vector<16x512xf32>
    %22 = vector.extract_strided_slice %21 {offsets = [0, 0], sizes = [16, 128], strides = [1, 1]} : vector<16x512xf32> to vector<16x128xf32>
    %cst_19 = arith.constant 5.000000e-01 : f32
    %23 = vector.broadcast %cst_19 : f32 to vector<16x128xf32>
    %24 = arith.mulf %23, %22 : vector<16x128xf32>
    %25 = math.tanh %24 : vector<16x128xf32>
    %cst_20 = arith.constant 5.000000e-01 : f32
    %26 = vector.broadcast %cst_20 : f32 to vector<16x128xf32>
    %27 = arith.mulf %26, %25 : vector<16x128xf32>
    %cst_21 = arith.constant 5.000000e-01 : f32
    %28 = vector.broadcast %cst_21 : f32 to vector<16x128xf32>
    %29 = arith.addf %27, %28 : vector<16x128xf32>
    %30 = vector.extract_strided_slice %21 {offsets = [0, 128], sizes = [16, 128], strides = [1, 1]} : vector<16x512xf32> to vector<16x128xf32>
    %cst_22 = arith.constant 5.000000e-01 : f32
    %31 = vector.broadcast %cst_22 : f32 to vector<16x128xf32>
    %32 = arith.mulf %31, %30 : vector<16x128xf32>
    %33 = math.tanh %32 : vector<16x128xf32>
    %cst_23 = arith.constant 5.000000e-01 : f32
    %34 = vector.broadcast %cst_23 : f32 to vector<16x128xf32>
    %35 = arith.mulf %34, %33 : vector<16x128xf32>
    %cst_24 = arith.constant 5.000000e-01 : f32
    %36 = vector.broadcast %cst_24 : f32 to vector<16x128xf32>
    %37 = arith.addf %35, %36 : vector<16x128xf32>
    %38 = vector.extract_strided_slice %21 {offsets = [0, 256], sizes = [16, 128], strides = [1, 1]} : vector<16x512xf32> to vector<16x128xf32>
    %39 = math.tanh %38 : vector<16x128xf32>
    %40 = vector.extract_strided_slice %21 {offsets = [0, 384], sizes = [16, 128], strides = [1, 1]} : vector<16x512xf32> to vector<16x128xf32>
    %cst_25 = arith.constant 5.000000e-01 : f32
    %41 = vector.broadcast %cst_25 : f32 to vector<16x128xf32>
    %42 = arith.mulf %41, %40 : vector<16x128xf32>
    %43 = math.tanh %42 : vector<16x128xf32>
    %cst_26 = arith.constant 5.000000e-01 : f32
    %44 = vector.broadcast %cst_26 : f32 to vector<16x128xf32>
    %45 = arith.mulf %44, %43 : vector<16x128xf32>
    %cst_27 = arith.constant 5.000000e-01 : f32
    %46 = vector.broadcast %cst_27 : f32 to vector<16x128xf32>
    %47 = arith.addf %45, %46 : vector<16x128xf32>
    %48 = arith.mulf %37, %13 : vector<16x128xf32>
    %49 = arith.mulf %29, %39 : vector<16x128xf32>
    %50 = arith.addf %48, %49 : vector<16x128xf32>
    %51 = math.tanh %50 : vector<16x128xf32>
    %52 = arith.mulf %47, %51 : vector<16x128xf32>
    %53 = arith.truncf %52 : vector<16x128xf32> to vector<16x128xbf16>
    %54 = arith.index_cast %15 : i32 to index
    %c0_28 = arith.constant 0 : index
    %55 = vector.load %arg15[%54, %c0_28] : memref<64x128xbf16, #tpu.memory_space<vmem>>, vector<16x128xbf16>
    tpu.vector_store %arg15[%54, %c0_28], %53 {strides = array<i32>} : memref<64x128xbf16, #tpu.memory_space<vmem>>, vector<16x128xbf16>,
    %c1_i32 = arith.constant 1 : i32
    %c16_i32_29 = arith.constant 16 : i32
    %56 = arith.muli %c1_i32, %c16_i32_29 : i32
    %57 = tpu.assume_multiple %56, 16 : i32
    %58 = arith.index_cast %57 : i32 to index
    %c0_30 = arith.constant 0 : index
    %59 = vector.load %arg16[%58, %c0_30] : memref<64x512xf32, #tpu.memory_space<vmem>>, vector<16x512xf32>
    %60 = arith.truncf %52 : vector<16x128xf32> to vector<16x128xbf16>
    %c0_31 = arith.constant 0 : index
    %c0_32 = arith.constant 0 : index
    %61 = vector.load %arg5[%c0_31, %c0_32] : memref<128x512xbf16, #tpu.memory_space<vmem>>, vector<128x512xbf16>
    %cst_33 = arith.constant dense<0.000000e+00> : vector<16x512xf32>
    %62 = tpu.matmul %60, %61, %cst_33 {dimension_numbers = #tpu.dot_dimension_numbers<[1], [0], [0], [1], [0, 0, 1, 1], [], []>} : vector<16x128xbf16>, vector<128x512xbf16>, vector<16x512xf32> -> vector<16x512xf32>
    %63 = arith.addf %59, %62 : vector<16x512xf32>
    %64 = vector.extract_strided_slice %63 {offsets = [0, 0], sizes = [16, 128], strides = [1, 1]} : vector<16x512xf32> to vector<16x128xf32>
    %cst_34 = arith.constant 5.000000e-01 : f32
    %65 = vector.broadcast %cst_34 : f32 to vector<16x128xf32>
    %66 = arith.mulf %65, %64 : vector<16x128xf32>
    %67 = math.tanh %66 : vector<16x128xf32>
    %cst_35 = arith.constant 5.000000e-01 : f32
    %68 = vector.broadcast %cst_35 : f32 to vector<16x128xf32>
    %69 = arith.mulf %68, %67 : vector<16x128xf32>
    %cst_36 = arith.constant 5.000000e-01 : f32
    %70 = vector.broadcast %cst_36 : f32 to vector<16x128xf32>
    %71 = arith.addf %69, %70 : vector<16x128xf32>
    %72 = vector.extract_strided_slice %63 {offsets = [0, 128], sizes = [16, 128], strides = [1, 1]} : vector<16x512xf32> to vector<16x128xf32>
    %cst_37 = arith.constant 5.000000e-01 : f32
    %73 = vector.broadcast %cst_37 : f32 to vector<16x128xf32>
    %74 = arith.mulf %73, %72 : vector<16x128xf32>
    %75 = math.tanh %74 : vector<16x128xf32>
    %cst_38 = arith.constant 5.000000e-01 : f32
    %76 = vector.broadcast %cst_38 : f32 to vector<16x128xf32>
    %77 = arith.mulf %76, %75 : vector<16x128xf32>
    %cst_39 = arith.constant 5.000000e-01 : f32
    %78 = vector.broadcast %cst_39 : f32 to vector<16x128xf32>
    %79 = arith.addf %77, %78 : vector<16x128xf32>
    %80 = vector.extract_strided_slice %63 {offsets = [0, 256], sizes = [16, 128], strides = [1, 1]} : vector<16x512xf32> to vector<16x128xf32>
    %81 = math.tanh %80 : vector<16x128xf32>
    %82 = vector.extract_strided_slice %63 {offsets = [0, 384], sizes = [16, 128], strides = [1, 1]} : vector<16x512xf32> to vector<16x128xf32>
    %cst_40 = arith.constant 5.000000e-01 : f32
    %83 = vector.broadcast %cst_40 : f32 to vector<16x128xf32>
    %84 = arith.mulf %83, %82 : vector<16x128xf32>
    %85 = math.tanh %84 : vector<16x128xf32>
    %cst_41 = arith.constant 5.000000e-01 : f32
    %86 = vector.broadcast %cst_41 : f32 to vector<16x128xf32>
    %87 = arith.mulf %86, %85 : vector<16x128xf32>
    %cst_42 = arith.constant 5.000000e-01 : f32
    %88 = vector.broadcast %cst_42 : f32 to vector<16x128xf32>
    %89 = arith.addf %87, %88 : vector<16x128xf32>
    %90 = arith.mulf %79, %50 : vector<16x128xf32>
    %91 = arith.mulf %71, %81 : vector<16x128xf32>
    %92 = arith.addf %90, %91 : vector<16x128xf32>
    %93 = math.tanh %92 : vector<16x128xf32>
    %94 = arith.mulf %89, %93 : vector<16x128xf32>
    %95 = arith.truncf %94 : vector<16x128xf32> to vector<16x128xbf16>
    %96 = arith.index_cast %57 : i32 to index
    %c0_43 = arith.constant 0 : index
    %97 = vector.load %arg15[%96, %c0_43] : memref<64x128xbf16, #tpu.memory_space<vmem>>, vector<16x128xbf16>
    tpu.vector_store %arg15[%96, %c0_43], %95 {strides = array<i32>} : memref<64x128xbf16, #tpu.memory_space<vmem>>, vector<16x128xbf16>,
    %c2_i32 = arith.constant 2 : i32
    %c16_i32_44 = arith.constant 16 : i32
    %98 = arith.muli %c2_i32, %c16_i32_44 : i32
    %99 = tpu.assume_multiple %98, 16 : i32
    %100 = arith.index_cast %99 : i32 to index
    %c0_45 = arith.constant 0 : index
    %101 = vector.load %arg16[%100, %c0_45] : memref<64x512xf32, #tpu.memory_space<vmem>>, vector<16x512xf32>
    %102 = arith.truncf %94 : vector<16x128xf32> to vector<16x128xbf16>
    %c0_46 = arith.constant 0 : index
    %c0_47 = arith.constant 0 : index
    %103 = vector.load %arg5[%c0_46, %c0_47] : memref<128x512xbf16, #tpu.memory_space<vmem>>, vector<128x512xbf16>
    %cst_48 = arith.constant dense<0.000000e+00> : vector<16x512xf32>
    %104 = tpu.matmul %102, %103, %cst_48 {dimension_numbers = #tpu.dot_dimension_numbers<[1], [0], [0], [1], [0, 0, 1, 1], [], []>} : vector<16x128xbf16>, vector<128x512xbf16>, vector<16x512xf32> -> vector<16x512xf32>
    %105 = arith.addf %101, %104 : vector<16x512xf32>
    %106 = vector.extract_strided_slice %105 {offsets = [0, 0], sizes = [16, 128], strides = [1, 1]} : vector<16x512xf32> to vector<16x128xf32>
    %cst_49 = arith.constant 5.000000e-01 : f32
    %107 = vector.broadcast %cst_49 : f32 to vector<16x128xf32>
    %108 = arith.mulf %107, %106 : vector<16x128xf32>
    %109 = math.tanh %108 : vector<16x128xf32>
    %cst_50 = arith.constant 5.000000e-01 : f32
    %110 = vector.broadcast %cst_50 : f32 to vector<16x128xf32>
    %111 = arith.mulf %110, %109 : vector<16x128xf32>
    %cst_51 = arith.constant 5.000000e-01 : f32
    %112 = vector.broadcast %cst_51 : f32 to vector<16x128xf32>
    %113 = arith.addf %111, %112 : vector<16x128xf32>
    %114 = vector.extract_strided_slice %105 {offsets = [0, 128], sizes = [16, 128], strides = [1, 1]} : vector<16x512xf32> to vector<16x128xf32>
    %cst_52 = arith.constant 5.000000e-01 : f32
    %115 = vector.broadcast %cst_52 : f32 to vector<16x128xf32>
    %116 = arith.mulf %115, %114 : vector<16x128xf32>
    %117 = math.tanh %116 : vector<16x128xf32>
    %cst_53 = arith.constant 5.000000e-01 : f32
    %118 = vector.broadcast %cst_53 : f32 to vector<16x128xf32>
    %119 = arith.mulf %118, %117 : vector<16x128xf32>
    %cst_54 = arith.constant 5.000000e-01 : f32
    %120 = vector.broadcast %cst_54 : f32 to vector<16x128xf32>
    %121 = arith.addf %119, %120 : vector<16x128xf32>
    %122 = vector.extract_strided_slice %105 {offsets = [0, 256], sizes = [16, 128], strides = [1, 1]} : vector<16x512xf32> to vector<16x128xf32>
    %123 = math.tanh %122 : vector<16x128xf32>
    %124 = vector.extract_strided_slice %105 {offsets = [0, 384], sizes = [16, 128], strides = [1, 1]} : vector<16x512xf32> to vector<16x128xf32>
    %cst_55 = arith.constant 5.000000e-01 : f32
    %125 = vector.broadcast %cst_55 : f32 to vector<16x128xf32>
    %126 = arith.mulf %125, %124 : vector<16x128xf32>
    %127 = math.tanh %126 : vector<16x128xf32>
    %cst_56 = arith.constant 5.000000e-01 : f32
    %128 = vector.broadcast %cst_56 : f32 to vector<16x128xf32>
    %129 = arith.mulf %128, %127 : vector<16x128xf32>
    %cst_57 = arith.constant 5.000000e-01 : f32
    %130 = vector.broadcast %cst_57 : f32 to vector<16x128xf32>
    %131 = arith.addf %129, %130 : vector<16x128xf32>
    %132 = arith.mulf %121, %92 : vector<16x128xf32>
    %133 = arith.mulf %113, %123 : vector<16x128xf32>
    %134 = arith.addf %132, %133 : vector<16x128xf32>
    %135 = math.tanh %134 : vector<16x128xf32>
    %136 = arith.mulf %131, %135 : vector<16x128xf32>
    %137 = arith.truncf %136 : vector<16x128xf32> to vector<16x128xbf16>
    %138 = arith.index_cast %99 : i32 to index
    %c0_58 = arith.constant 0 : index
    %139 = vector.load %arg15[%138, %c0_58] : memref<64x128xbf16, #tpu.memory_space<vmem>>, vector<16x128xbf16>
    tpu.vector_store %arg15[%138, %c0_58], %137 {strides = array<i32>} : memref<64x128xbf16, #tpu.memory_space<vmem>>, vector<16x128xbf16>,
    %c3_i32 = arith.constant 3 : i32
    %c16_i32_59 = arith.constant 16 : i32
    %140 = arith.muli %c3_i32, %c16_i32_59 : i32
    %141 = tpu.assume_multiple %140, 16 : i32
    %142 = arith.index_cast %141 : i32 to index
    %c0_60 = arith.constant 0 : index
    %143 = vector.load %arg16[%142, %c0_60] : memref<64x512xf32, #tpu.memory_space<vmem>>, vector<16x512xf32>
    %144 = arith.truncf %136 : vector<16x128xf32> to vector<16x128xbf16>
    %c0_61 = arith.constant 0 : index
    %c0_62 = arith.constant 0 : index
    %145 = vector.load %arg5[%c0_61, %c0_62] : memref<128x512xbf16, #tpu.memory_space<vmem>>, vector<128x512xbf16>
    %cst_63 = arith.constant dense<0.000000e+00> : vector<16x512xf32>
    %146 = tpu.matmul %144, %145, %cst_63 {dimension_numbers = #tpu.dot_dimension_numbers<[1], [0], [0], [1], [0, 0, 1, 1], [], []>} : vector<16x128xbf16>, vector<128x512xbf16>, vector<16x512xf32> -> vector<16x512xf32>
    %147 = arith.addf %143, %146 : vector<16x512xf32>
    %148 = vector.extract_strided_slice %147 {offsets = [0, 0], sizes = [16, 128], strides = [1, 1]} : vector<16x512xf32> to vector<16x128xf32>
    %cst_64 = arith.constant 5.000000e-01 : f32
    %149 = vector.broadcast %cst_64 : f32 to vector<16x128xf32>
    %150 = arith.mulf %149, %148 : vector<16x128xf32>
    %151 = math.tanh %150 : vector<16x128xf32>
    %cst_65 = arith.constant 5.000000e-01 : f32
    %152 = vector.broadcast %cst_65 : f32 to vector<16x128xf32>
    %153 = arith.mulf %152, %151 : vector<16x128xf32>
    %cst_66 = arith.constant 5.000000e-01 : f32
    %154 = vector.broadcast %cst_66 : f32 to vector<16x128xf32>
    %155 = arith.addf %153, %154 : vector<16x128xf32>
    %156 = vector.extract_strided_slice %147 {offsets = [0, 128], sizes = [16, 128], strides = [1, 1]} : vector<16x512xf32> to vector<16x128xf32>
    %cst_67 = arith.constant 5.000000e-01 : f32
    %157 = vector.broadcast %cst_67 : f32 to vector<16x128xf32>
    %158 = arith.mulf %157, %156 : vector<16x128xf32>
    %159 = math.tanh %158 : vector<16x128xf32>
    %cst_68 = arith.constant 5.000000e-01 : f32
    %160 = vector.broadcast %cst_68 : f32 to vector<16x128xf32>
    %161 = arith.mulf %160, %159 : vector<16x128xf32>
    %cst_69 = arith.constant 5.000000e-01 : f32
    %162 = vector.broadcast %cst_69 : f32 to vector<16x128xf32>
    %163 = arith.addf %161, %162 : vector<16x128xf32>
    %164 = vector.extract_strided_slice %147 {offsets = [0, 256], sizes = [16, 128], strides = [1, 1]} : vector<16x512xf32> to vector<16x128xf32>
    %165 = math.tanh %164 : vector<16x128xf32>
    %166 = vector.extract_strided_slice %147 {offsets = [0, 384], sizes = [16, 128], strides = [1, 1]} : vector<16x512xf32> to vector<16x128xf32>
    %cst_70 = arith.constant 5.000000e-01 : f32
    %167 = vector.broadcast %cst_70 : f32 to vector<16x128xf32>
    %168 = arith.mulf %167, %166 : vector<16x128xf32>
    %169 = math.tanh %168 : vector<16x128xf32>
    %cst_71 = arith.constant 5.000000e-01 : f32
    %170 = vector.broadcast %cst_71 : f32 to vector<16x128xf32>
    %171 = arith.mulf %170, %169 : vector<16x128xf32>
    %cst_72 = arith.constant 5.000000e-01 : f32
    %172 = vector.broadcast %cst_72 : f32 to vector<16x128xf32>
    %173 = arith.addf %171, %172 : vector<16x128xf32>
    %174 = arith.mulf %163, %134 : vector<16x128xf32>
    %175 = arith.mulf %155, %165 : vector<16x128xf32>
    %176 = arith.addf %174, %175 : vector<16x128xf32>
    %177 = math.tanh %176 : vector<16x128xf32>
    %178 = arith.mulf %173, %177 : vector<16x128xf32>
    %179 = arith.truncf %178 : vector<16x128xf32> to vector<16x128xbf16>
    %180 = arith.index_cast %141 : i32 to index
    %c0_73 = arith.constant 0 : index
    %181 = vector.load %arg15[%180, %c0_73] : memref<64x128xbf16, #tpu.memory_space<vmem>>, vector<16x128xbf16>
    tpu.vector_store %arg15[%180, %c0_73], %179 {strides = array<i32>} : memref<64x128xbf16, #tpu.memory_space<vmem>>, vector<16x128xbf16>,
    %c4_i32 = arith.constant 4 : i32
    %c0_74 = arith.constant 0 : index
    %c0_75 = arith.constant 0 : index
    %c0_76 = arith.constant 0 : index
    %182 = vector.load %arg13[%c0_74, %c0_75, %c0_76] : memref<2x16x128xf32, #tpu.memory_space<vmem>>, vector<1x16x128xf32>
    %183 = vector.shape_cast %182 : vector<1x16x128xf32> to vector<16x128xf32>
    %184 = vector.shape_cast %178 : vector<16x128xf32> to vector<1x16x128xf32>
    tpu.vector_store %arg13[%c0_74, %c0_75, %c0_76], %184 {strides = array<i32>} : memref<2x16x128xf32, #tpu.memory_space<vmem>>, vector<1x16x128xf32>,
    %c0_77 = arith.constant 0 : index
    %c0_78 = arith.constant 0 : index
    %c0_79 = arith.constant 0 : index
    %185 = vector.load %arg14[%c0_77, %c0_78, %c0_79] : memref<2x16x128xf32, #tpu.memory_space<vmem>>, vector<1x16x128xf32>
    %186 = vector.shape_cast %185 : vector<1x16x128xf32> to vector<16x128xf32>
    %187 = vector.shape_cast %176 : vector<16x128xf32> to vector<1x16x128xf32>
    tpu.vector_store %arg14[%c0_77, %c0_78, %c0_79], %187 {strides = array<i32>} : memref<2x16x128xf32, #tpu.memory_space<vmem>>, vector<1x16x128xf32>,
    %c0_80 = arith.constant 0 : index
    %c0_81 = arith.constant 0 : index
    %188 = vector.load %arg9[%c0_80, %c0_81] : memref<1x512xf32, #tpu.memory_space<vmem>>, vector<1x512xf32>
    %c0_82 = arith.constant 0 : index
    %c0_83 = arith.constant 0 : index
    %189 = vector.load %arg15[%c0_82, %c0_83] : memref<64x128xbf16, #tpu.memory_space<vmem>>, vector<64x128xbf16>
    %c0_84 = arith.constant 0 : index
    %c0_85 = arith.constant 0 : index
    %190 = vector.load %arg7[%c0_84, %c0_85] : memref<128x512xbf16, #tpu.memory_space<vmem>>, vector<128x512xbf16>
    %cst_86 = arith.constant dense<0.000000e+00> : vector<64x512xf32>
    %191 = tpu.matmul %189, %190, %cst_86 {dimension_numbers = #tpu.dot_dimension_numbers<[1], [0], [0], [1], [0, 0, 1, 1], [], []>} : vector<64x128xbf16>, vector<128x512xbf16>, vector<64x512xf32> -> vector<64x512xf32>
    %192 = vector.broadcast %188 : vector<1x512xf32> to vector<64x512xf32>
    %193 = arith.addf %191, %192 : vector<64x512xf32>
    %c0_87 = arith.constant 0 : index
    %c0_88 = arith.constant 0 : index
    %194 = vector.load %arg16[%c0_87, %c0_88] : memref<64x512xf32, #tpu.memory_space<vmem>>, vector<64x512xf32>
    tpu.vector_store %arg16[%c0_87, %c0_88], %193 {strides = array<i32>} : memref<64x512xf32, #tpu.memory_space<vmem>>, vector<64x512xf32>,
    %c1 = arith.constant 1 : index
    %c0_89 = arith.constant 0 : index
    %c0_90 = arith.constant 0 : index
    %195 = vector.load %arg13[%c1, %c0_89, %c0_90] : memref<2x16x128xf32, #tpu.memory_space<vmem>>, vector<1x16x128xf32>
    %196 = vector.shape_cast %195 : vector<1x16x128xf32> to vector<16x128xf32>
    %c1_91 = arith.constant 1 : index
    %c0_92 = arith.constant 0 : index
    %c0_93 = arith.constant 0 : index
    %197 = vector.load %arg14[%c1_91, %c0_92, %c0_93] : memref<2x16x128xf32, #tpu.memory_space<vmem>>, vector<1x16x128xf32>
    %198 = vector.shape_cast %197 : vector<1x16x128xf32> to vector<16x128xf32>
    %c0_i32_94 = arith.constant 0 : i32
    %c16_i32_95 = arith.constant 16 : i32
    %199 = arith.muli %c0_i32_94, %c16_i32_95 : i32
    %200 = tpu.assume_multiple %199, 16 : i32
    %201 = arith.index_cast %200 : i32 to index
    %c0_96 = arith.constant 0 : index
    %202 = vector.load %arg16[%201, %c0_96] : memref<64x512xf32, #tpu.memory_space<vmem>>, vector<16x512xf32>
    %203 = arith.truncf %196 : vector<16x128xf32> to vector<16x128xbf16>
    %c0_97 = arith.constant 0 : index
    %c0_98 = arith.constant 0 : index
    %204 = vector.load %arg8[%c0_97, %c0_98] : memref<128x512xbf16, #tpu.memory_space<vmem>>, vector<128x512xbf16>
    %cst_99 = arith.constant dense<0.000000e+00> : vector<16x512xf32>
    %205 = tpu.matmul %203, %204, %cst_99 {dimension_numbers = #tpu.dot_dimension_numbers<[1], [0], [0], [1], [0, 0, 1, 1], [], []>} : vector<16x128xbf16>, vector<128x512xbf16>, vector<16x512xf32> -> vector<16x512xf32>
    %206 = arith.addf %202, %205 : vector<16x512xf32>
    %207 = vector.extract_strided_slice %206 {offsets = [0, 0], sizes = [16, 128], strides = [1, 1]} : vector<16x512xf32> to vector<16x128xf32>
    %cst_100 = arith.constant 5.000000e-01 : f32
    %208 = vector.broadcast %cst_100 : f32 to vector<16x128xf32>
    %209 = arith.mulf %208, %207 : vector<16x128xf32>
    %210 = math.tanh %209 : vector<16x128xf32>
    %cst_101 = arith.constant 5.000000e-01 : f32
    %211 = vector.broadcast %cst_101 : f32 to vector<16x128xf32>
    %212 = arith.mulf %211, %210 : vector<16x128xf32>
    %cst_102 = arith.constant 5.000000e-01 : f32
    %213 = vector.broadcast %cst_102 : f32 to vector<16x128xf32>
    %214 = arith.addf %212, %213 : vector<16x128xf32>
    %215 = vector.extract_strided_slice %206 {offsets = [0, 128], sizes = [16, 128], strides = [1, 1]} : vector<16x512xf32> to vector<16x128xf32>
    %cst_103 = arith.constant 5.000000e-01 : f32
    %216 = vector.broadcast %cst_103 : f32 to vector<16x128xf32>
    %217 = arith.mulf %216, %215 : vector<16x128xf32>
    %218 = math.tanh %217 : vector<16x128xf32>
    %cst_104 = arith.constant 5.000000e-01 : f32
    %219 = vector.broadcast %cst_104 : f32 to vector<16x128xf32>
    %220 = arith.mulf %219, %218 : vector<16x128xf32>
    %cst_105 = arith.constant 5.000000e-01 : f32
    %221 = vector.broadcast %cst_105 : f32 to vector<16x128xf32>
    %222 = arith.addf %220, %221 : vector<16x128xf32>
    %223 = vector.extract_strided_slice %206 {offsets = [0, 256], sizes = [16, 128], strides = [1, 1]} : vector<16x512xf32> to vector<16x128xf32>
    %224 = math.tanh %223 : vector<16x128xf32>
    %225 = vector.extract_strided_slice %206 {offsets = [0, 384], sizes = [16, 128], strides = [1, 1]} : vector<16x512xf32> to vector<16x128xf32>
    %cst_106 = arith.constant 5.000000e-01 : f32
    %226 = vector.broadcast %cst_106 : f32 to vector<16x128xf32>
    %227 = arith.mulf %226, %225 : vector<16x128xf32>
    %228 = math.tanh %227 : vector<16x128xf32>
    %cst_107 = arith.constant 5.000000e-01 : f32
    %229 = vector.broadcast %cst_107 : f32 to vector<16x128xf32>
    %230 = arith.mulf %229, %228 : vector<16x128xf32>
    %cst_108 = arith.constant 5.000000e-01 : f32
    %231 = vector.broadcast %cst_108 : f32 to vector<16x128xf32>
    %232 = arith.addf %230, %231 : vector<16x128xf32>
    %233 = arith.mulf %222, %198 : vector<16x128xf32>
    %234 = arith.mulf %214, %224 : vector<16x128xf32>
    %235 = arith.addf %233, %234 : vector<16x128xf32>
    %236 = math.tanh %235 : vector<16x128xf32>
    %237 = arith.mulf %232, %236 : vector<16x128xf32>
    %c1_i32_109 = arith.constant 1 : i32
    %c16_i32_110 = arith.constant 16 : i32
    %238 = arith.muli %c1_i32_109, %c16_i32_110 : i32
    %239 = tpu.assume_multiple %238, 16 : i32
    %240 = arith.index_cast %239 : i32 to index
    %c0_111 = arith.constant 0 : index
    %241 = vector.load %arg16[%240, %c0_111] : memref<64x512xf32, #tpu.memory_space<vmem>>, vector<16x512xf32>
    %242 = arith.truncf %237 : vector<16x128xf32> to vector<16x128xbf16>
    %c0_112 = arith.constant 0 : index
    %c0_113 = arith.constant 0 : index
    %243 = vector.load %arg8[%c0_112, %c0_113] : memref<128x512xbf16, #tpu.memory_space<vmem>>, vector<128x512xbf16>
    %cst_114 = arith.constant dense<0.000000e+00> : vector<16x512xf32>
    %244 = tpu.matmul %242, %243, %cst_114 {dimension_numbers = #tpu.dot_dimension_numbers<[1], [0], [0], [1], [0, 0, 1, 1], [], []>} : vector<16x128xbf16>, vector<128x512xbf16>, vector<16x512xf32> -> vector<16x512xf32>
    %245 = arith.addf %241, %244 : vector<16x512xf32>
    %246 = vector.extract_strided_slice %245 {offsets = [0, 0], sizes = [16, 128], strides = [1, 1]} : vector<16x512xf32> to vector<16x128xf32>
    %cst_115 = arith.constant 5.000000e-01 : f32
    %247 = vector.broadcast %cst_115 : f32 to vector<16x128xf32>
    %248 = arith.mulf %247, %246 : vector<16x128xf32>
    %249 = math.tanh %248 : vector<16x128xf32>
    %cst_116 = arith.constant 5.000000e-01 : f32
    %250 = vector.broadcast %cst_116 : f32 to vector<16x128xf32>
    %251 = arith.mulf %250, %249 : vector<16x128xf32>
    %cst_117 = arith.constant 5.000000e-01 : f32
    %252 = vector.broadcast %cst_117 : f32 to vector<16x128xf32>
    %253 = arith.addf %251, %252 : vector<16x128xf32>
    %254 = vector.extract_strided_slice %245 {offsets = [0, 128], sizes = [16, 128], strides = [1, 1]} : vector<16x512xf32> to vector<16x128xf32>
    %cst_118 = arith.constant 5.000000e-01 : f32
    %255 = vector.broadcast %cst_118 : f32 to vector<16x128xf32>
    %256 = arith.mulf %255, %254 : vector<16x128xf32>
    %257 = math.tanh %256 : vector<16x128xf32>
    %cst_119 = arith.constant 5.000000e-01 : f32
    %258 = vector.broadcast %cst_119 : f32 to vector<16x128xf32>
    %259 = arith.mulf %258, %257 : vector<16x128xf32>
    %cst_120 = arith.constant 5.000000e-01 : f32
    %260 = vector.broadcast %cst_120 : f32 to vector<16x128xf32>
    %261 = arith.addf %259, %260 : vector<16x128xf32>
    %262 = vector.extract_strided_slice %245 {offsets = [0, 256], sizes = [16, 128], strides = [1, 1]} : vector<16x512xf32> to vector<16x128xf32>
    %263 = math.tanh %262 : vector<16x128xf32>
    %264 = vector.extract_strided_slice %245 {offsets = [0, 384], sizes = [16, 128], strides = [1, 1]} : vector<16x512xf32> to vector<16x128xf32>
    %cst_121 = arith.constant 5.000000e-01 : f32
    %265 = vector.broadcast %cst_121 : f32 to vector<16x128xf32>
    %266 = arith.mulf %265, %264 : vector<16x128xf32>
    %267 = math.tanh %266 : vector<16x128xf32>
    %cst_122 = arith.constant 5.000000e-01 : f32
    %268 = vector.broadcast %cst_122 : f32 to vector<16x128xf32>
    %269 = arith.mulf %268, %267 : vector<16x128xf32>
    %cst_123 = arith.constant 5.000000e-01 : f32
    %270 = vector.broadcast %cst_123 : f32 to vector<16x128xf32>
    %271 = arith.addf %269, %270 : vector<16x128xf32>
    %272 = arith.mulf %261, %235 : vector<16x128xf32>
    %273 = arith.mulf %253, %263 : vector<16x128xf32>
    %274 = arith.addf %272, %273 : vector<16x128xf32>
    %275 = math.tanh %274 : vector<16x128xf32>
    %276 = arith.mulf %271, %275 : vector<16x128xf32>
    %c2_i32_124 = arith.constant 2 : i32
    %c16_i32_125 = arith.constant 16 : i32
    %277 = arith.muli %c2_i32_124, %c16_i32_125 : i32
    %278 = tpu.assume_multiple %277, 16 : i32
    %279 = arith.index_cast %278 : i32 to index
    %c0_126 = arith.constant 0 : index
    %280 = vector.load %arg16[%279, %c0_126] : memref<64x512xf32, #tpu.memory_space<vmem>>, vector<16x512xf32>
    %281 = arith.truncf %276 : vector<16x128xf32> to vector<16x128xbf16>
    %c0_127 = arith.constant 0 : index
    %c0_128 = arith.constant 0 : index
    %282 = vector.load %arg8[%c0_127, %c0_128] : memref<128x512xbf16, #tpu.memory_space<vmem>>, vector<128x512xbf16>
    %cst_129 = arith.constant dense<0.000000e+00> : vector<16x512xf32>
    %283 = tpu.matmul %281, %282, %cst_129 {dimension_numbers = #tpu.dot_dimension_numbers<[1], [0], [0], [1], [0, 0, 1, 1], [], []>} : vector<16x128xbf16>, vector<128x512xbf16>, vector<16x512xf32> -> vector<16x512xf32>
    %284 = arith.addf %280, %283 : vector<16x512xf32>
    %285 = vector.extract_strided_slice %284 {offsets = [0, 0], sizes = [16, 128], strides = [1, 1]} : vector<16x512xf32> to vector<16x128xf32>
    %cst_130 = arith.constant 5.000000e-01 : f32
    %286 = vector.broadcast %cst_130 : f32 to vector<16x128xf32>
    %287 = arith.mulf %286, %285 : vector<16x128xf32>
    %288 = math.tanh %287 : vector<16x128xf32>
    %cst_131 = arith.constant 5.000000e-01 : f32
    %289 = vector.broadcast %cst_131 : f32 to vector<16x128xf32>
    %290 = arith.mulf %289, %288 : vector<16x128xf32>
    %cst_132 = arith.constant 5.000000e-01 : f32
    %291 = vector.broadcast %cst_132 : f32 to vector<16x128xf32>
    %292 = arith.addf %290, %291 : vector<16x128xf32>
    %293 = vector.extract_strided_slice %284 {offsets = [0, 128], sizes = [16, 128], strides = [1, 1]} : vector<16x512xf32> to vector<16x128xf32>
    %cst_133 = arith.constant 5.000000e-01 : f32
    %294 = vector.broadcast %cst_133 : f32 to vector<16x128xf32>
    %295 = arith.mulf %294, %293 : vector<16x128xf32>
    %296 = math.tanh %295 : vector<16x128xf32>
    %cst_134 = arith.constant 5.000000e-01 : f32
    %297 = vector.broadcast %cst_134 : f32 to vector<16x128xf32>
    %298 = arith.mulf %297, %296 : vector<16x128xf32>
    %cst_135 = arith.constant 5.000000e-01 : f32
    %299 = vector.broadcast %cst_135 : f32 to vector<16x128xf32>
    %300 = arith.addf %298, %299 : vector<16x128xf32>
    %301 = vector.extract_strided_slice %284 {offsets = [0, 256], sizes = [16, 128], strides = [1, 1]} : vector<16x512xf32> to vector<16x128xf32>
    %302 = math.tanh %301 : vector<16x128xf32>
    %303 = vector.extract_strided_slice %284 {offsets = [0, 384], sizes = [16, 128], strides = [1, 1]} : vector<16x512xf32> to vector<16x128xf32>
    %cst_136 = arith.constant 5.000000e-01 : f32
    %304 = vector.broadcast %cst_136 : f32 to vector<16x128xf32>
    %305 = arith.mulf %304, %303 : vector<16x128xf32>
    %306 = math.tanh %305 : vector<16x128xf32>
    %cst_137 = arith.constant 5.000000e-01 : f32
    %307 = vector.broadcast %cst_137 : f32 to vector<16x128xf32>
    %308 = arith.mulf %307, %306 : vector<16x128xf32>
    %cst_138 = arith.constant 5.000000e-01 : f32
    %309 = vector.broadcast %cst_138 : f32 to vector<16x128xf32>
    %310 = arith.addf %308, %309 : vector<16x128xf32>
    %311 = arith.mulf %300, %274 : vector<16x128xf32>
    %312 = arith.mulf %292, %302 : vector<16x128xf32>
    %313 = arith.addf %311, %312 : vector<16x128xf32>
    %314 = math.tanh %313 : vector<16x128xf32>
    %315 = arith.mulf %310, %314 : vector<16x128xf32>
    %c3_i32_139 = arith.constant 3 : i32
    %c16_i32_140 = arith.constant 16 : i32
    %316 = arith.muli %c3_i32_139, %c16_i32_140 : i32
    %317 = tpu.assume_multiple %316, 16 : i32
    %318 = arith.index_cast %317 : i32 to index
    %c0_141 = arith.constant 0 : index
    %319 = vector.load %arg16[%318, %c0_141] : memref<64x512xf32, #tpu.memory_space<vmem>>, vector<16x512xf32>
    %320 = arith.truncf %315 : vector<16x128xf32> to vector<16x128xbf16>
    %c0_142 = arith.constant 0 : index
    %c0_143 = arith.constant 0 : index
    %321 = vector.load %arg8[%c0_142, %c0_143] : memref<128x512xbf16, #tpu.memory_space<vmem>>, vector<128x512xbf16>
    %cst_144 = arith.constant dense<0.000000e+00> : vector<16x512xf32>
    %322 = tpu.matmul %320, %321, %cst_144 {dimension_numbers = #tpu.dot_dimension_numbers<[1], [0], [0], [1], [0, 0, 1, 1], [], []>} : vector<16x128xbf16>, vector<128x512xbf16>, vector<16x512xf32> -> vector<16x512xf32>
    %323 = arith.addf %319, %322 : vector<16x512xf32>
    %324 = vector.extract_strided_slice %323 {offsets = [0, 0], sizes = [16, 128], strides = [1, 1]} : vector<16x512xf32> to vector<16x128xf32>
    %cst_145 = arith.constant 5.000000e-01 : f32
    %325 = vector.broadcast %cst_145 : f32 to vector<16x128xf32>
    %326 = arith.mulf %325, %324 : vector<16x128xf32>
    %327 = math.tanh %326 : vector<16x128xf32>
    %cst_146 = arith.constant 5.000000e-01 : f32
    %328 = vector.broadcast %cst_146 : f32 to vector<16x128xf32>
    %329 = arith.mulf %328, %327 : vector<16x128xf32>
    %cst_147 = arith.constant 5.000000e-01 : f32
    %330 = vector.broadcast %cst_147 : f32 to vector<16x128xf32>
    %331 = arith.addf %329, %330 : vector<16x128xf32>
    %332 = vector.extract_strided_slice %323 {offsets = [0, 128], sizes = [16, 128], strides = [1, 1]} : vector<16x512xf32> to vector<16x128xf32>
    %cst_148 = arith.constant 5.000000e-01 : f32
    %333 = vector.broadcast %cst_148 : f32 to vector<16x128xf32>
    %334 = arith.mulf %333, %332 : vector<16x128xf32>
    %335 = math.tanh %334 : vector<16x128xf32>
    %cst_149 = arith.constant 5.000000e-01 : f32
    %336 = vector.broadcast %cst_149 : f32 to vector<16x128xf32>
    %337 = arith.mulf %336, %335 : vector<16x128xf32>
    %cst_150 = arith.constant 5.000000e-01 : f32
    %338 = vector.broadcast %cst_150 : f32 to vector<16x128xf32>
    %339 = arith.addf %337, %338 : vector<16x128xf32>
    %340 = vector.extract_strided_slice %323 {offsets = [0, 256], sizes = [16, 128], strides = [1, 1]} : vector<16x512xf32> to vector<16x128xf32>
    %341 = math.tanh %340 : vector<16x128xf32>
    %342 = vector.extract_strided_slice %323 {offsets = [0, 384], sizes = [16, 128], strides = [1, 1]} : vector<16x512xf32> to vector<16x128xf32>
    %cst_151 = arith.constant 5.000000e-01 : f32
    %343 = vector.broadcast %cst_151 : f32 to vector<16x128xf32>
    %344 = arith.mulf %343, %342 : vector<16x128xf32>
    %345 = math.tanh %344 : vector<16x128xf32>
    %cst_152 = arith.constant 5.000000e-01 : f32
    %346 = vector.broadcast %cst_152 : f32 to vector<16x128xf32>
    %347 = arith.mulf %346, %345 : vector<16x128xf32>
    %cst_153 = arith.constant 5.000000e-01 : f32
    %348 = vector.broadcast %cst_153 : f32 to vector<16x128xf32>
    %349 = arith.addf %347, %348 : vector<16x128xf32>
    %350 = arith.mulf %339, %313 : vector<16x128xf32>
    %351 = arith.mulf %331, %341 : vector<16x128xf32>
    %352 = arith.addf %350, %351 : vector<16x128xf32>
    %353 = math.tanh %352 : vector<16x128xf32>
    %354 = arith.mulf %349, %353 : vector<16x128xf32>
    %c4_i32_154 = arith.constant 4 : i32
    %c1_155 = arith.constant 1 : index
    %c0_156 = arith.constant 0 : index
    %c0_157 = arith.constant 0 : index
    %355 = vector.load %arg13[%c1_155, %c0_156, %c0_157] : memref<2x16x128xf32, #tpu.memory_space<vmem>>, vector<1x16x128xf32>
    %356 = vector.shape_cast %355 : vector<1x16x128xf32> to vector<16x128xf32>
    %357 = vector.shape_cast %354 : vector<16x128xf32> to vector<1x16x128xf32>
    tpu.vector_store %arg13[%c1_155, %c0_156, %c0_157], %357 {strides = array<i32>} : memref<2x16x128xf32, #tpu.memory_space<vmem>>, vector<1x16x128xf32>,
    %c1_158 = arith.constant 1 : index
    %c0_159 = arith.constant 0 : index
    %c0_160 = arith.constant 0 : index
    %358 = vector.load %arg14[%c1_158, %c0_159, %c0_160] : memref<2x16x128xf32, #tpu.memory_space<vmem>>, vector<1x16x128xf32>
    %359 = vector.shape_cast %358 : vector<1x16x128xf32> to vector<16x128xf32>
    %360 = vector.shape_cast %352 : vector<16x128xf32> to vector<1x16x128xf32>
    tpu.vector_store %arg14[%c1_158, %c0_159, %c0_160], %360 {strides = array<i32>} : memref<2x16x128xf32, #tpu.memory_space<vmem>>, vector<1x16x128xf32>,
    %c1_i32_161 = arith.constant 1 : i32
    %361 = arith.cmpi eq, %arg0, %c1_i32_161 : i32
    %362 = arith.extui %361 : i1 to i32
    %c0_i32_162 = arith.constant 0 : i32
    %363 = arith.cmpi ne, %362, %c0_i32_162 : i32
    scf.if %363 {
      %c0_163 = arith.constant 0 : index
      %c0_164 = arith.constant 0 : index
      %364 = vector.load %arg10[%c0_163, %c0_164] : memref<128x1xf32, #tpu.memory_space<vmem>>, vector<128x1xf32>
      %cst_165 = arith.constant dense<0.000000e+00> : vector<16x1xf32>
      %365 = tpu.matmul %354, %364, %cst_165 {dimension_numbers = #tpu.dot_dimension_numbers<[1], [0], [0], [1], [0, 0, 1, 1], [], []>} : vector<16x128xf32>, vector<128x1xf32>, vector<16x1xf32> -> vector<16x1xf32>
      %c0_166 = arith.constant 0 : index
      %c0_167 = arith.constant 0 : index
      %366 = vector.load %arg11[%c0_166, %c0_167] : memref<1x1xf32, #tpu.memory_space<vmem>>, vector<1x1xf32>
      %367 = vector.broadcast %366 : vector<1x1xf32> to vector<16x1xf32>
      %368 = arith.addf %365, %367 : vector<16x1xf32>
      %369 = arith.negf %368 : vector<16x1xf32>
      %370 = math.exp %369 : vector<16x1xf32>
      %cst_168 = arith.constant 1.000000e+00 : f32
      %371 = vector.broadcast %cst_168 : f32 to vector<16x1xf32>
      %372 = arith.addf %371, %370 : vector<16x1xf32>
      %373 = arith.divf %371, %372 : vector<16x1xf32>
      %c0_169 = arith.constant 0 : index
      %c0_170 = arith.constant 0 : index
      %374 = vector.load %arg12[%c0_169, %c0_170] : memref<16x1xf32, #tpu.memory_space<vmem>>, vector<16x1xf32>
      tpu.vector_store %arg12[%c0_169, %c0_170], %373 {strides = array<i32>} : memref<16x1xf32, #tpu.memory_space<vmem>>, vector<16x1xf32>,
    } else {
    }
    return
  }
  func.func @transform_0(%arg0: i32) -> (i32, i32) {
    %c0_i32 = arith.constant 0 : i32
    %c0_i32_0 = arith.constant 0 : i32
    return %arg0, %c0_i32 : i32, i32
  }
  func.func @transform_1(%arg0: i32) -> (i32, i32, i32) {
    %c0_i32 = arith.constant 0 : i32
    %c0_i32_0 = arith.constant 0 : i32
    %c0_i32_1 = arith.constant 0 : i32
    %c0_i32_2 = arith.constant 0 : i32
    return %c0_i32, %c0_i32_0, %c0_i32_1 : i32, i32, i32
  }
  func.func @transform_2(%arg0: i32) -> (i32, i32, i32) {
    %c0_i32 = arith.constant 0 : i32
    %c0_i32_0 = arith.constant 0 : i32
    %c0_i32_1 = arith.constant 0 : i32
    %c0_i32_2 = arith.constant 0 : i32
    return %c0_i32, %c0_i32_0, %c0_i32_1 : i32, i32, i32
  }
  func.func @transform_3(%arg0: i32) -> (i32, i32) {
    %c0_i32 = arith.constant 0 : i32
    %c0_i32_0 = arith.constant 0 : i32
    %c0_i32_1 = arith.constant 0 : i32
    return %c0_i32, %c0_i32_0 : i32, i32
  }
  func.func @transform_4(%arg0: i32) -> (i32, i32) {
    %c0_i32 = arith.constant 0 : i32
    %c0_i32_0 = arith.constant 0 : i32
    %c0_i32_1 = arith.constant 0 : i32
    return %c0_i32, %c0_i32_0 : i32, i32
  }
  func.func @transform_5(%arg0: i32) -> (i32, i32) {
    %c0_i32 = arith.constant 0 : i32
    %c0_i32_0 = arith.constant 0 : i32
    %c0_i32_1 = arith.constant 0 : i32
    return %c0_i32, %c0_i32_0 : i32, i32
  }
  func.func @transform_6(%arg0: i32) -> (i32, i32) {
    %c0_i32 = arith.constant 0 : i32
    %c0_i32_0 = arith.constant 0 : i32
    %c0_i32_1 = arith.constant 0 : i32
    return %c0_i32, %c0_i32_0 : i32, i32
  }
  func.func @transform_7(%arg0: i32) -> (i32, i32) {
    %c0_i32 = arith.constant 0 : i32
    %c0_i32_0 = arith.constant 0 : i32
    %c0_i32_1 = arith.constant 0 : i32
    return %c0_i32, %c0_i32_0 : i32, i32
  }
  func.func @transform_8(%arg0: i32) -> (i32, i32) {
    %c0_i32 = arith.constant 0 : i32
    %c0_i32_0 = arith.constant 0 : i32
    %c0_i32_1 = arith.constant 0 : i32
    return %c0_i32, %c0_i32_0 : i32, i32
  }
  func.func @transform_9(%arg0: i32) -> (i32, i32) {
    %c0_i32 = arith.constant 0 : i32
    %c0_i32_0 = arith.constant 0 : i32
    %c0_i32_1 = arith.constant 0 : i32
    return %c0_i32, %c0_i32_0 : i32, i32
  }
  func.func @transform_10(%arg0: i32) -> (i32, i32) {
    %c0_i32 = arith.constant 0 : i32
    %c0_i32_0 = arith.constant 0 : i32
    %c0_i32_1 = arith.constant 0 : i32
    return %c0_i32, %c0_i32_0 : i32, i32
  }
  func.func @transform_11(%arg0: i32) -> (i32, i32) {
    %c0_i32 = arith.constant 0 : i32
    %c0_i32_0 = arith.constant 0 : i32
    %c0_i32_1 = arith.constant 0 : i32
    return %c0_i32, %c0_i32_0 : i32, i32
  }
  func.func @transform_12(%arg0: i32) -> (i32, i32, i32) {
    %c0_i32 = arith.constant 0 : i32
    %c0_i32_0 = arith.constant 0 : i32
    %c0_i32_1 = arith.constant 0 : i32
    %c0_i32_2 = arith.constant 0 : i32
    return %c0_i32, %c0_i32_0, %c0_i32_1 : i32, i32, i32
  }
  func.func @transform_13(%arg0: i32) -> (i32, i32, i32) {
    %c0_i32 = arith.constant 0 : i32
    %c0_i32_0 = arith.constant 0 : i32
    %c0_i32_1 = arith.constant 0 : i32
    %c0_i32_2 = arith.constant 0 : i32
    return %c0_i32, %c0_i32_0, %c0_i32_1 : i32, i32, i32
  }
}

</mosaic_0001>

<llo_original>
// kernel: tpu_custom_call.1
$region0: #{tpu_custom_call.1}
  #allocation0 [shape = 'u32[]', space=smem, size = 0x4, offset = 0x4, fixed_abs, tag = 'smem constant byte address 0x4 - core index']
  #allocation1 [shape = 'u32[144,128]{1,0:T(1,128)}', space=vmem, size = 0x12000, scoped, tag = 'internal scratch']
  #allocation2 [shape = 'bf16[64,128]{1,0:T(16,128)(2,1)}', space=vmem, size = 0x4000, scoped, tag = 'scratch operand']
  #allocation3 [shape = 'f32[64,512]{1,0:T(8,128)}', space=vmem, size = 0x20000, scoped, tag = 'scratch operand']
  #allocation4 [shape = 'f32[1,1]{1,0:T(1,128)S(1)}', space=vmem, size = 0x200, scoped, tag = 'scoped memory for tpu_custom_call.1']
  %s0 = inlined_call_operand.vmem [shape: bf16[128,16], index: 0, kind: input, shape index: {}]
  %s1 = inlined_call_operand.vmem [shape: f32[2,16,128], index: 1, kind: input, shape index: {}]
  %s2 = inlined_call_operand.vmem [shape: f32[2,16,128], index: 2, kind: input, shape index: {}]
  %s3 = inlined_call_operand.vmem [shape: bf16[16,512], index: 3, kind: input, shape index: {}]
  %s4 = inlined_call_operand.hbm [shape: bf16[128,512], index: 4, kind: input, shape index: {}]
  %s5 = inlined_call_operand.vmem [shape: f32[1,512], index: 5, kind: input, shape index: {}]
  %s6 = inlined_call_operand.hbm [shape: bf16[128,512], index: 6, kind: input, shape index: {}]
  %s7 = inlined_call_operand.hbm [shape: bf16[128,512], index: 7, kind: input, shape index: {}]
  %s8 = inlined_call_operand.vmem [shape: f32[1,512], index: 8, kind: input, shape index: {}]
  %s9 = inlined_call_operand.vmem [shape: f32[128,1], index: 9, kind: input, shape index: {}]
  %s10 = inlined_call_operand.<no memory space> [shape: f32[1,1], index: 10, kind: input, shape index: {}]
  %s11 = inlined_call_operand.vmem [shape: f32[16,1], index: 11, kind: output, shape index: {0}]
  %s12 = inlined_call_operand.hbm [shape: f32[2,16,128], index: 12, kind: output, shape index: {1}]
  %s13 = inlined_call_operand.hbm [shape: f32[2,16,128], index: 13, kind: output, shape index: {2}]
  %14 = xla_tuple %s11, %s12, %s13
  %s15 = sld [smem:[#allocation0]]
  $region113: #{tpu_custom_call.1} parent=0
    _
  %s17 = ssub.s32 1, %s15
  %s18 = scalar_select 0, %s17, %s15
  %v19 = vstv %s10
  %20 = vst [vmem:[#allocation4] sm:$0x1] %v19
  $region1: #{tpu_custom_call.1} parent=0
    #allocation5 [shape = 'u8[131072]{0}', space=vmem, size = 0x20000, scoped, tag = 'input window, operand 4, single buffered']
    #allocation6 [shape = 's32[2]{0}', space=sflag, size = 0x8, scoped, tag = 'scoped memory for tpu_custom_call.1']
    #allocation7 [shape = 's32[2]{0}', space=sflag, size = 0x8, scoped, tag = 'scoped memory for tpu_custom_call.1']
    #allocation8 [shape = 'u8[131072]{0}', space=vmem, size = 0x20000, scoped, tag = 'input window, operand 6, single buffered']
    #allocation9 [shape = 's32[1]{0}', space=sflag, size = 0x4, scoped, tag = 'scoped memory for tpu_custom_call.1']
    #allocation10 [shape = 'u8[131072]{0}', space=vmem, size = 0x20000, scoped, tag = 'input window, operand 7, single buffered']
    #allocation11 [shape = 'u8[16384]{0}', space=vmem, size = 0x4000, scoped, tag = 'output window, operand 1, single buffered']
    #allocation12 [shape = 'u8[16384]{0}', space=vmem, size = 0x4000, scoped, tag = 'output window, operand 2, single buffered']
    #allocation13 [shape = 's32[1]{0}', space=sflag, size = 0x4, scoped, tag = 'scoped memory for tpu_custom_call.1']
    %21 = vsyncpa [#allocation6], 0
    %22 = vsyncpa [#allocation9], 0
    %23 = vsyncpa [#allocation7], 0
    %24 = vsyncpa [#allocation13], 0
    loop: start=0, step=1, limit=4
    $region2: #{tpu_custom_call.1} parent=1 // loop_pre_header
      _
    $region3: #{tpu_custom_call.1} parent=1 // loop_header
      %s26 = sphi 0, %s30
      %p27 = scmp.ge.s32.totalorder %s26, 4
      %s36 = sphi 0, %s38
      %s39 = sphi 0, %s36
      %s40 = sphi 0, %s39
      %s56 = sphi 0, %s40
      %s60 = sphi 0, %s60
      %s62 = sphi 0, %s60
      %s63 = sphi 0, %s62
      %s77 = sphi 0, %s63
      %s81 = sphi 0, %s81
      %s83 = sphi 0, %s81
      %s84 = sphi 0, %s83
      %s98 = sphi 0, %s84
      %s102 = sphi 0, %s102
      %s104 = sphi 0, %s102
      %s105 = sphi 0, %s104
      %s119 = sphi 0, %s105
      %s123 = sphi 0, %s123
      %s125 = sphi 0, %s123
      %s126 = sphi 0, %s125
      %s140 = sphi 0, %s126
      %s144 = sphi 0, %s144
      %s146 = sphi 0, %s144
      %s147 = sphi 0, %s146
      %s161 = sphi 0, %s147
      %s165 = sphi 0, %s165
      %s167 = sphi 0, %s165
      %s168 = sphi 0, %s167
      %s182 = sphi 0, %s168
      %s186 = sphi 0, %s186
      %s188 = sphi 0, %s186
      %s189 = sphi 0, %s188
      %s203 = sphi 0, %s189
      %s207 = sphi 0, %s207
      %s209 = sphi 0, %s207
      %s210 = sphi 0, %s209
      %s224 = sphi 0, %s210
      %s228 = sphi 0, %s228
      %s230 = sphi 0, %s228
      %s231 = sphi 0, %s230
      %s245 = sphi 0, %s231
      %s249 = sphi 0, %s249
      %s251 = sphi 0, %s249
      %s252 = sphi 0, %s251
      %s266 = sphi 0, %s252
      %s270 = sphi 0, %s270
      %s272 = sphi 0, %s270
      %s273 = sphi 0, %s272
      %s287 = sphi 0, %s273
      %s291 = sphi 0, %s291
      %s293 = sphi 0, %s291
      %s294 = sphi 0, %s293
      %s308 = sphi 0, %s294
      %s312 = sphi 0, %s312
      %s314 = sphi 0, %s312
      %s315 = sphi 0, %s314
      %s329 = sphi 0, %s315
    $region4: #{tpu_custom_call.1} parent=1 // loop_header_branch
      %29 = sbr.rel (%p27) target = $region8
    $region5: #{tpu_custom_call.1} parent=1 // loop_body
      %s31 = ssub.s32 %s26, 1
      %s32 = ssub.s32 %s26, 2
      %s33 = sadd.s32 %s26, 1
      %s34 = ssub.s32 %s26, %s33
      %p35 = scmp.eq.s32.totalorder %s34, 0
      %s37 = sadd.s32 %s36, 1
      %s38 = scalar_select %p35, %s36, %s37
      %p41 = pneg %p35
      %p42 = scmp.eq.s32.totalorder %s26, 1
      %p43 = por %p41, %p42
      %p44 = scmp.ne.s32.totalorder %s36, %s39
      %p45 = scmp.eq.s32.totalorder %s26, 0
      %p46 = por %p44, %p45
      %p47 = scmp.ne.s32.totalorder %s36, %s39
      %p48 = scmp.eq.s32.totalorder %s31, 1
      %p49 = por %p47, %p48
      %p50 = scmp.ne.s32.totalorder %s39, %s40
      %p51 = scmp.eq.s32.totalorder %s31, 0
      %p52 = por %p50, %p51
      %p53 = scmp.ne.s32.totalorder %s39, %s40
      %p54 = scmp.eq.s32.totalorder %s32, 1
      %p55 = por %p53, %p54
      %p57 = scmp.ne.s32.totalorder %s40, %s56
      %p58 = scmp.eq.s32.totalorder %s32, 0
      %p59 = por %p57, %p58
      %s61 = sadd.s32 %s60, 1
      %p64 = scmp.eq.s32.totalorder %s26, 1
      %p65 = scmp.ne.s32.totalorder %s60, %s62
      %p66 = scmp.eq.s32.totalorder %s26, 0
      %p67 = por %p65, %p66
      %p68 = scmp.ne.s32.totalorder %s60, %s62
      %p69 = scmp.eq.s32.totalorder %s31, 1
      %p70 = por %p68, %p69
      %p71 = scmp.ne.s32.totalorder %s62, %s63
      %p72 = scmp.eq.s32.totalorder %s31, 0
      %p73 = por %p71, %p72
      %p74 = scmp.ne.s32.totalorder %s62, %s63
      %p75 = scmp.eq.s32.totalorder %s32, 1
      %p76 = por %p74, %p75
      %p78 = scmp.ne.s32.totalorder %s63, %s77
      %p79 = scmp.eq.s32.totalorder %s32, 0
      %p80 = por %p78, %p79
      %s82 = sadd.s32 %s81, 1
      %p85 = scmp.eq.s32.totalorder %s26, 1
      %p86 = scmp.ne.s32.totalorder %s81, %s83
      %p87 = scmp.eq.s32.totalorder %s26, 0
      %p88 = por %p86, %p87
      %p89 = scmp.ne.s32.totalorder %s81, %s83
      %p90 = scmp.eq.s32.totalorder %s31, 1
      %p91 = por %p89, %p90
      %p92 = scmp.ne.s32.totalorder %s83, %s84
      %p93 = scmp.eq.s32.totalorder %s31, 0
      %p94 = por %p92, %p93
      %p95 = scmp.ne.s32.totalorder %s83, %s84
      %p96 = scmp.eq.s32.totalorder %s32, 1
      %p97 = por %p95, %p96
      %p99 = scmp.ne.s32.totalorder %s84, %s98
      %p100 = scmp.eq.s32.totalorder %s32, 0
      %p101 = por %p99, %p100
      %s103 = sadd.s32 %s102, 1
      %p106 = scmp.eq.s32.totalorder %s26, 1
      %p107 = scmp.ne.s32.totalorder %s102, %s104
      %p108 = scmp.eq.s32.totalorder %s26, 0
      %p109 = por %p107, %p108
      %p110 = scmp.ne.s32.totalorder %s102, %s104
      %p111 = scmp.eq.s32.totalorder %s31, 1
      %p112 = por %p110, %p111
      %p113 = scmp.ne.s32.totalorder %s104, %s105
      %p114 = scmp.eq.s32.totalorder %s31, 0
      %p115 = por %p113, %p114
      %p116 = scmp.ne.s32.totalorder %s104, %s105
      %p117 = scmp.eq.s32.totalorder %s32, 1
      %p118 = por %p116, %p117
      %p120 = scmp.ne.s32.totalorder %s105, %s119
      %p121 = scmp.eq.s32.totalorder %s32, 0
      %p122 = por %p120, %p121
      %s124 = sadd.s32 %s123, 1
      %p127 = scmp.eq.s32.totalorder %s26, 1
      %p128 = scmp.ne.s32.totalorder %s123, %s125
      %p129 = scmp.eq.s32.totalorder %s26, 0
      %p130 = por %p128, %p129
      %p131 = scmp.ne.s32.totalorder %s123, %s125
      %p132 = scmp.eq.s32.totalorder %s31, 1
      %p133 = por %p131, %p132
      %p134 = scmp.ne.s32.totalorder %s125, %s126
      %p135 = scmp.eq.s32.totalorder %s31, 0
      %p136 = por %p134, %p135
      %p137 = scmp.ne.s32.totalorder %s125, %s126
      %p138 = scmp.eq.s32.totalorder %s32, 1
      %p139 = por %p137, %p138
      %p141 = scmp.ne.s32.totalorder %s126, %s140
      %p142 = scmp.eq.s32.totalorder %s32, 0
      %p143 = por %p141, %p142
      %s145 = sadd.s32 %s144, 1
      %p148 = scmp.eq.s32.totalorder %s26, 1
      %p149 = scmp.ne.s32.totalorder %s144, %s146
      %p150 = scmp.eq.s32.totalorder %s26, 0
      %p151 = por %p149, %p150
      %p152 = scmp.ne.s32.totalorder %s144, %s146
      %p153 = scmp.eq.s32.totalorder %s31, 1
      %p154 = por %p152, %p153
      %p155 = scmp.ne.s32.totalorder %s146, %s147
      %p156 = scmp.eq.s32.totalorder %s31, 0
      %p157 = por %p155, %p156
      %p158 = scmp.ne.s32.totalorder %s146, %s147
      %p159 = scmp.eq.s32.totalorder %s32, 1
      %p160 = por %p158, %p159
      %p162 = scmp.ne.s32.totalorder %s147, %s161
      %p163 = scmp.eq.s32.totalorder %s32, 0
      %p164 = por %p162, %p163
      %s166 = sadd.s32 %s165, 1
      %p169 = scmp.eq.s32.totalorder %s26, 1
      %p170 = scmp.ne.s32.totalorder %s165, %s167
      %p171 = scmp.eq.s32.totalorder %s26, 0
      %p172 = por %p170, %p171
      %p173 = scmp.ne.s32.totalorder %s165, %s167
      %p174 = scmp.eq.s32.totalorder %s31, 1
      %p175 = por %p173, %p174
      %p176 = scmp.ne.s32.totalorder %s167, %s168
      %p177 = scmp.eq.s32.totalorder %s31, 0
      %p178 = por %p176, %p177
      %p179 = scmp.ne.s32.totalorder %s167, %s168
      %p180 = scmp.eq.s32.totalorder %s32, 1
      %p181 = por %p179, %p180
      %p183 = scmp.ne.s32.totalorder %s168, %s182
      %p184 = scmp.eq.s32.totalorder %s32, 0
      %p185 = por %p183, %p184
      %s187 = sadd.s32 %s186, 1
      %p190 = scmp.eq.s32.totalorder %s26, 1
      %p191 = scmp.ne.s32.totalorder %s186, %s188
      %p192 = scmp.eq.s32.totalorder %s26, 0
      %p193 = por %p191, %p192
      %p194 = scmp.ne.s32.totalorder %s186, %s188
      %p195 = scmp.eq.s32.totalorder %s31, 1
      %p196 = por %p194, %p195
      %p197 = scmp.ne.s32.totalorder %s188, %s189
      %p198 = scmp.eq.s32.totalorder %s31, 0
      %p199 = por %p197, %p198
      %p200 = scmp.ne.s32.totalorder %s188, %s189
      %p201 = scmp.eq.s32.totalorder %s32, 1
      %p202 = por %p200, %p201
      %p204 = scmp.ne.s32.totalorder %s189, %s203
      %p205 = scmp.eq.s32.totalorder %s32, 0
      %p206 = por %p204, %p205
      %s208 = sadd.s32 %s207, 1
      %p211 = scmp.eq.s32.totalorder %s26, 1
      %p212 = scmp.ne.s32.totalorder %s207, %s209
      %p213 = scmp.eq.s32.totalorder %s26, 0
      %p214 = por %p212, %p213
      %p215 = scmp.ne.s32.totalorder %s207, %s209
      %p216 = scmp.eq.s32.totalorder %s31, 1
      %p217 = por %p215, %p216
      %p218 = scmp.ne.s32.totalorder %s209, %s210
      %p219 = scmp.eq.s32.totalorder %s31, 0
      %p220 = por %p218, %p219
      %p221 = scmp.ne.s32.totalorder %s209, %s210
      %p222 = scmp.eq.s32.totalorder %s32, 1
      %p223 = por %p221, %p222
      %p225 = scmp.ne.s32.totalorder %s210, %s224
      %p226 = scmp.eq.s32.totalorder %s32, 0
      %p227 = por %p225, %p226
      %s229 = sadd.s32 %s228, 1
      %p232 = scmp.eq.s32.totalorder %s26, 1
      %p233 = scmp.ne.s32.totalorder %s228, %s230
      %p234 = scmp.eq.s32.totalorder %s26, 0
      %p235 = por %p233, %p234
      %p236 = scmp.ne.s32.totalorder %s228, %s230
      %p237 = scmp.eq.s32.totalorder %s31, 1
      %p238 = por %p236, %p237
      %p239 = scmp.ne.s32.totalorder %s230, %s231
      %p240 = scmp.eq.s32.totalorder %s31, 0
      %p241 = por %p239, %p240
      %p242 = scmp.ne.s32.totalorder %s230, %s231
      %p243 = scmp.eq.s32.totalorder %s32, 1
      %p244 = por %p242, %p243
      %p246 = scmp.ne.s32.totalorder %s231, %s245
      %p247 = scmp.eq.s32.totalorder %s32, 0
      %p248 = por %p246, %p247
      %s250 = sadd.s32 %s249, 1
      %p253 = scmp.eq.s32.totalorder %s26, 1
      %p254 = scmp.ne.s32.totalorder %s249, %s251
      %p255 = scmp.eq.s32.totalorder %s26, 0
      %p256 = por %p254, %p255
      %p257 = scmp.ne.s32.totalorder %s249, %s251
      %p258 = scmp.eq.s32.totalorder %s31, 1
      %p259 = por %p257, %p258
      %p260 = scmp.ne.s32.totalorder %s251, %s252
      %p261 = scmp.eq.s32.totalorder %s31, 0
      %p262 = por %p260, %p261
      %p263 = scmp.ne.s32.totalorder %s251, %s252
      %p264 = scmp.eq.s32.totalorder %s32, 1
      %p265 = por %p263, %p264
      %p267 = scmp.ne.s32.totalorder %s252, %s266
      %p268 = scmp.eq.s32.totalorder %s32, 0
      %p269 = por %p267, %p268
      %s271 = sadd.s32 %s270, 1
      %p274 = scmp.eq.s32.totalorder %s26, 1
      %p275 = scmp.ne.s32.totalorder %s270, %s272
      %p276 = scmp.eq.s32.totalorder %s26, 0
      %p277 = por %p275, %p276
      %p278 = scmp.ne.s32.totalorder %s270, %s272
      %p279 = scmp.eq.s32.totalorder %s31, 1
      %p280 = por %p278, %p279
      %p281 = scmp.ne.s32.totalorder %s272, %s273
      %p282 = scmp.eq.s32.totalorder %s31, 0
      %p283 = por %p281, %p282
      %p284 = scmp.ne.s32.totalorder %s272, %s273
      %p285 = scmp.eq.s32.totalorder %s32, 1
      %p286 = por %p284, %p285
      %p288 = scmp.ne.s32.totalorder %s273, %s287
      %p289 = scmp.eq.s32.totalorder %s32, 0
      %p290 = por %p288, %p289
      %s292 = sadd.s32 %s291, 1
      %p295 = scmp.eq.s32.totalorder %s26, 1
      %p296 = scmp.ne.s32.totalorder %s291, %s293
      %p297 = scmp.eq.s32.totalorder %s26, 0
      %p298 = por %p296, %p297
      %p299 = scmp.ne.s32.totalorder %s291, %s293
      %p300 = scmp.eq.s32.totalorder %s31, 1
      %p301 = por %p299, %p300
      %p302 = scmp.ne.s32.totalorder %s293, %s294
      %p303 = scmp.eq.s32.totalorder %s31, 0
      %p304 = por %p302, %p303
      %p305 = scmp.ne.s32.totalorder %s293, %s294
      %p306 = scmp.eq.s32.totalorder %s32, 1
      %p307 = por %p305, %p306
      %p309 = scmp.ne.s32.totalorder %s294, %s308
      %p310 = scmp.eq.s32.totalorder %s32, 0
      %p311 = por %p309, %p310
      %s313 = sadd.s32 %s312, 1
      %p316 = scmp.eq.s32.totalorder %s26, 1
      %p317 = scmp.ne.s32.totalorder %s312, %s314
      %p318 = scmp.eq.s32.totalorder %s26, 0
      %p319 = por %p317, %p318
      %p320 = scmp.ne.s32.totalorder %s312, %s314
      %p321 = scmp.eq.s32.totalorder %s31, 1
      %p322 = por %p320, %p321
      %p323 = scmp.ne.s32.totalorder %s314, %s315
      %p324 = scmp.eq.s32.totalorder %s31, 0
      %p325 = por %p323, %p324
      %p326 = scmp.ne.s32.totalorder %s314, %s315
      %p327 = scmp.eq.s32.totalorder %s32, 1
      %p328 = por %p326, %p327
      %p330 = scmp.ne.s32.totalorder %s315, %s329
      %p331 = scmp.eq.s32.totalorder %s32, 0
      %p332 = por %p330, %p331
      %p333 = scmp.le.s32.totalorder 1, %s26
      %p334 = scmp.lt.s32.totalorder %s26, 3
      %p335 = pnand %p333, %p334
      %p336 = pneg %p335
      // Predicated region
      $region9: #{tpu_custom_call.1} parent=5 // pred_check
        _
      $region10: #{tpu_custom_call.1} parent=5 // pred_check_branch
        %338 = sbr.rel (%p335) target = $region12
      $region11: #{tpu_custom_call.1} parent=5 // pred_region
        %s339 = ssub.s32 %s26, 1
        // Predicated region
        $region13: #{tpu_custom_call.1} parent=11 // pred_check
          %p340 = pneg %p73
        $region14: #{tpu_custom_call.1} parent=11 // pred_check_branch
          %342 = sbr.rel (%p340) target = $region16
        $region15: #{tpu_custom_call.1} parent=11 // pred_region
          _
        $region16: #{tpu_custom_call.1} parent=11 // pred_fallthru
          _
        // Predicated region
        $region17: #{tpu_custom_call.1} parent=11 // pred_check
          %p343 = pneg %p94
        $region18: #{tpu_custom_call.1} parent=11 // pred_check_branch
          %345 = sbr.rel (%p343) target = $region20
        $region19: #{tpu_custom_call.1} parent=11 // pred_region
          _
        $region20: #{tpu_custom_call.1} parent=11 // pred_fallthru
          _
        // Predicated region
        $region21: #{tpu_custom_call.1} parent=11 // pred_check
          %p346 = pneg %p115
        $region22: #{tpu_custom_call.1} parent=11 // pred_check_branch
          %348 = sbr.rel (%p346) target = $region24
        $region23: #{tpu_custom_call.1} parent=11 // pred_region
          _
        $region24: #{tpu_custom_call.1} parent=11 // pred_fallthru
          _
        // Predicated region
        $region25: #{tpu_custom_call.1} parent=11 // pred_check
          %p349 = pneg %p136
        $region26: #{tpu_custom_call.1} parent=11 // pred_check_branch
          %351 = sbr.rel (%p349) target = $region28
        $region27: #{tpu_custom_call.1} parent=11 // pred_region
          %s353 = ssub.s32 4096, 4096
          %354 = vsyncadd [#allocation6], %s353
          %s355 = sshll.u32 [#allocation5], 4
          %s356 = int_to_ptr.vmem [resolvable:$true] %s355
          %361 = dma.hbm_to_vmem [thread:$0]  %s4, 4096, %s356, [#allocation6], 256, 256, 16
        $region28: #{tpu_custom_call.1} parent=11 // pred_fallthru
          _
        // Predicated region
        $region29: #{tpu_custom_call.1} parent=11 // pred_check
          %p362 = pneg %p157
        $region30: #{tpu_custom_call.1} parent=11 // pred_check_branch
          %364 = sbr.rel (%p362) target = $region32
        $region31: #{tpu_custom_call.1} parent=11 // pred_region
          _
        $region32: #{tpu_custom_call.1} parent=11 // pred_fallthru
          _
        // Predicated region
        $region33: #{tpu_custom_call.1} parent=11 // pred_check
          %p365 = pneg %p178
        $region34: #{tpu_custom_call.1} parent=11 // pred_check_branch
          %367 = sbr.rel (%p365) target = $region36
        $region35: #{tpu_custom_call.1} parent=11 // pred_region
          %s369 = ssub.s32 4096, 4096
          %370 = vsyncadd [#allocation9], %s369
          %s371 = sshll.u32 [#allocation8], 4
          %s372 = int_to_ptr.vmem [resolvable:$true] %s371
          %377 = dma.hbm_to_vmem [thread:$0]  %s6, 4096, %s372, [#allocation9], 256, 256, 16
        $region36: #{tpu_custom_call.1} parent=11 // pred_fallthru
          _
        // Predicated region
        $region37: #{tpu_custom_call.1} parent=11 // pred_check
          %p378 = pneg %p199
        $region38: #{tpu_custom_call.1} parent=11 // pred_check_branch
          %380 = sbr.rel (%p378) target = $region40
        $region39: #{tpu_custom_call.1} parent=11 // pred_region
          %s382 = ssub.s32 4096, 4096
          %383 = vsyncadd [#allocation9], %s382
          %s384 = sshll.u32 [#allocation10], 4
          %s385 = int_to_ptr.vmem [resolvable:$true] %s384
          %390 = dma.hbm_to_vmem [thread:$0]  %s7, 4096, %s385, [#allocation9], 256, 256, 16
        $region40: #{tpu_custom_call.1} parent=11 // pred_fallthru
          _
        // Predicated region
        $region41: #{tpu_custom_call.1} parent=11 // pred_check
          %p391 = pneg %p220
        $region42: #{tpu_custom_call.1} parent=11 // pred_check_branch
          %393 = sbr.rel (%p391) target = $region44
        $region43: #{tpu_custom_call.1} parent=11 // pred_region
          _
        $region44: #{tpu_custom_call.1} parent=11 // pred_fallthru
          _
        // Predicated region
        $region45: #{tpu_custom_call.1} parent=11 // pred_check
          %p394 = pneg %p241
        $region46: #{tpu_custom_call.1} parent=11 // pred_check_branch
          %396 = sbr.rel (%p394) target = $region48
        $region47: #{tpu_custom_call.1} parent=11 // pred_region
          _
        $region48: #{tpu_custom_call.1} parent=11 // pred_fallthru
          _
        // Predicated region
        $region49: #{tpu_custom_call.1} parent=11 // pred_check
          %p397 = pneg %p262
        $region50: #{tpu_custom_call.1} parent=11 // pred_check_branch
          %399 = sbr.rel (%p397) target = $region52
        $region51: #{tpu_custom_call.1} parent=11 // pred_region
          _
        $region52: #{tpu_custom_call.1} parent=11 // pred_fallthru
          _
      $region12: #{tpu_custom_call.1} parent=5 // pred_fallthru
        _
      %p400 = scmp.lt.s32.totalorder %s26, 2
      // Predicated region
      $region53: #{tpu_custom_call.1} parent=5 // pred_check
        %p401 = pneg %p400
      $region54: #{tpu_custom_call.1} parent=5 // pred_check_branch
        %403 = sbr.rel (%p401) target = $region56
      $region55: #{tpu_custom_call.1} parent=5 // pred_region
        // Predicated region
        $region57: #{tpu_custom_call.1} parent=55 // pred_check
          %p404 = pneg %p46
        $region58: #{tpu_custom_call.1} parent=55 // pred_check_branch
          %406 = sbr.rel (%p404) target = $region60
        $region59: #{tpu_custom_call.1} parent=55 // pred_region
          %s407 = smul.u32 8, %s26
          %p408 = scmp.lt.s32.totalorder %s407, 15
          %s409 = scalar_select %p408, %s407, 15
          %s410 = smul.addr %s409, 4
          %s411 = scalar_lea.vmem %s0, %s410
          %s412 = smul.u32 8, %s26
        $region60: #{tpu_custom_call.1} parent=55 // pred_fallthru
          _
      $region56: #{tpu_custom_call.1} parent=5 // pred_fallthru
        _
      %p413 = scmp.le.s32.totalorder 1, %s26
      %p414 = scmp.lt.s32.totalorder %s26, 3
      %p415 = pnand %p413, %p414
      %p416 = pneg %p415
      // Predicated region
      $region61: #{tpu_custom_call.1} parent=5 // pred_check
        _
      $region62: #{tpu_custom_call.1} parent=5 // pred_check_branch
        %418 = sbr.rel (%p415) target = $region64
      $region63: #{tpu_custom_call.1} parent=5 // pred_region
        %s419 = ssub.s32 %s26, 1
        // Predicated region
        $region65: #{tpu_custom_call.1} parent=63 // pred_check
          %p420 = pneg %p136
        $region66: #{tpu_custom_call.1} parent=63 // pred_check_branch
          %422 = sbr.rel (%p420) target = $region68
        $region67: #{tpu_custom_call.1} parent=63 // pred_region
          %423 = dma.done [#allocation6], 4096
        $region68: #{tpu_custom_call.1} parent=63 // pred_fallthru
          _
        // Predicated region
        $region69: #{tpu_custom_call.1} parent=63 // pred_check
          %p424 = pneg %p178
        $region70: #{tpu_custom_call.1} parent=63 // pred_check_branch
          %426 = sbr.rel (%p424) target = $region72
        $region71: #{tpu_custom_call.1} parent=63 // pred_region
          %427 = dma.done [#allocation9], 4096
        $region72: #{tpu_custom_call.1} parent=63 // pred_fallthru
          _
        // Predicated region
        $region73: #{tpu_custom_call.1} parent=63 // pred_check
          %p428 = pneg %p199
        $region74: #{tpu_custom_call.1} parent=63 // pred_check_branch
          %430 = sbr.rel (%p428) target = $region76
        $region75: #{tpu_custom_call.1} parent=63 // pred_region
          %431 = dma.done [#allocation9], 4096
        $region76: #{tpu_custom_call.1} parent=63 // pred_fallthru
          _
        %s432 = smul.u32 8, %s31
        %p433 = scmp.lt.s32.totalorder %s432, 15
        %s434 = scalar_select %p433, %s432, 15
        %s435 = smul.addr %s434, 4
        %s436 = scalar_lea.vmem %s0, %s435
        %p437 = pneg %p52
        %p438 = pneg %p49
        %p439 = pneg %p73
        %p440 = pneg %p70
        %p441 = pneg %p94
        %p442 = pneg %p91
        %p443 = pneg %p115
        %p444 = pneg %p112
        %p445 = pneg %p136
        %p446 = pneg %p133
        %p447 = pneg %p157
        %p448 = pneg %p154
        %p449 = pneg %p178
        %p450 = pneg %p175
        %p451 = pneg %p199
        %p452 = pneg %p196
        %p453 = pneg %p220
        %p454 = pneg %p217
        %p455 = pneg %p241
        %p456 = pneg %p238
        %p457 = pneg %p262
        %p458 = pneg %p259
        %p459 = pneg %p283
        %p460 = pneg %p280
        %p461 = pneg %p304
        %p462 = pneg %p301
        %p463 = pneg %p325
        %p464 = pneg %p322
        %s465 = smul.u32 8, %s31
        %p466 = scmp.lt.s32.totalorder %s465, 15
        %s467 = scalar_select %p466, %s465, 15
        %s468 = smul.addr %s467, 4
        %s469 = scalar_lea.vmem %s0, %s468
        %s470 = smul.u32 8, %s31
        %p472 = scmp.eq.s32.totalorder %s31, 0
        // Predicated region
        $region77: #{tpu_custom_call.1} parent=63 // pred_check
          %p473 = pneg %p472
        $region78: #{tpu_custom_call.1} parent=63 // pred_check_branch
          %475 = sbr.rel (%p473) target = $region80
        $region79: #{tpu_custom_call.1} parent=63 // pred_region
          %v476 = vld [vmem:[%s1] sm:$0xff]
          %v477 = vld [vmem:[%s1 + $0x8] sm:$0xff]
          %v478 = vld [vmem:[%s1 + $0x10] sm:$0xff]
          %v479 = vld [vmem:[%s1 + $0x18] sm:$0xff]
          %480 = vst [vmem:[#allocation11] sm:$0xff] %v476
          %481 = vst [vmem:[#allocation11 + $0x8] sm:$0xff] %v477
          %482 = vst [vmem:[#allocation11 + $0x10] sm:$0xff] %v478
          %483 = vst [vmem:[#allocation11 + $0x18] sm:$0xff] %v479
          %v484 = vld [vmem:[%s2] sm:$0xff]
          %v485 = vld [vmem:[%s2 + $0x8] sm:$0xff]
          %v486 = vld [vmem:[%s2 + $0x10] sm:$0xff]
          %v487 = vld [vmem:[%s2 + $0x18] sm:$0xff]
          %488 = vst [vmem:[#allocation12] sm:$0xff] %v484
          %489 = vst [vmem:[#allocation12 + $0x8] sm:$0xff] %v485
          %490 = vst [vmem:[#allocation12 + $0x10] sm:$0xff] %v486
          %491 = vst [vmem:[#allocation12 + $0x18] sm:$0xff] %v487
        $region80: #{tpu_custom_call.1} parent=63 // pred_fallthru
          _
        %v492 = vld [vmem:[%s5] sm:$0xf]
        %v493 = vld [vmem:[%s469] sm:$0xf]
        %v494 = vld [vmem:[%s469 + $0x4] sm:$0xf]
        %v495 = vld [vmem:[%s469 + $0x8] sm:$0xf]
        %v496 = vld [vmem:[%s469 + $0xc] sm:$0xf]
        %v497 = vld [vmem:[%s469 + $0x10] sm:$0xf]
        %v498 = vld [vmem:[%s469 + $0x14] sm:$0xf]
        %v499 = vld [vmem:[%s469 + $0x18] sm:$0xf]
        %v500 = vld [vmem:[%s469 + $0x1c] sm:$0xf]
        %v501 = vld [vmem:[%s3] sm:$0xff]
        %v502 = vld [vmem:[%s3 + $0x8] sm:$0xff]
        %v503 = vld [vmem:[%s3 + $0x10] sm:$0xff]
        %v504 = vld [vmem:[%s3 + $0x18] sm:$0xff]
        %v506 = vlaneseq
        %v507 = vshrl.u32 %v506, 7
        %v508 = vsub.s32 0, %v507
        %v509 = vrot.slane %v492, %v508
        %v510 = vlaneseq
        %v511 = vshrl.u32 %v510, 7
        %v512 = vsub.s32 1, %v511
        %v513 = vrot.slane %v492, %v512
        %v514 = vlaneseq
        %v515 = vshrl.u32 %v514, 7
        %v516 = vsub.s32 2, %v515
        %v517 = vrot.slane %v492, %v516
        %v518 = vlaneseq
        %v519 = vshrl.u32 %v518, 7
        %v520 = vsub.s32 3, %v519
        %v521 = vrot.slane %v492, %v520
        %v534 = vunpack.c.l.b16 %v493
        %v535 = vunpack.c.l.b16 %v494
        %v536 = vunpack.c.l.b16 %v495
        %v537 = vunpack.c.l.b16 %v496
        %v538 = vunpack.c.l.b16 %v497
        %v539 = vunpack.c.l.b16 %v498
        %v540 = vunpack.c.l.b16 %v499
        %v541 = vunpack.c.l.b16 %v500
        %v542 = vpack.c.b16 %v535, %v534
        %v543 = vpack.c.b16 %v537, %v536
        %v544 = vpack.c.b16 %v539, %v538
        %v545 = vpack.c.b16 %v541, %v540
        %v550 = vunpack.c.l.b16 %v501
        %v551 = vunpack.c.h.b16 %v501
        %v552 = vunpack.c.l.b16 %v502
        %v553 = vunpack.c.h.b16 %v502
        %v554 = vunpack.c.l.b16 %v503
        %v555 = vunpack.c.h.b16 %v503
        %v556 = vunpack.c.l.b16 %v504
        %v557 = vunpack.c.h.b16 %v504
        %v558 = vpack.c.b16 %v554, %v550
        %v559 = vpack.c.b16 %v555, %v551
        %v560 = vpack.c.b16 %v556, %v552
        %v561 = vpack.c.b16 %v557, %v553
        %vm566 = vcmask 130048
        %v568 = vsel %vm566, %v542, 0
        %v571 = vsel %vm566, %v543, 0
        %v574 = vsel %vm566, %v544, 0
        %v577 = vsel %vm566, %v545, 0
        %579 = vmatprep.subr.bf16.mxu0 %v559
        %580 = vmatpush1.bf16.msra.mxu0 %v558
        %581 = vmatprep.subr.bf16.mxu0 0
        %582 = vmatpush1.bf16.msra.mxu0 0
        %583 = vmatprep.subr.bf16.mxu0 0
        %584 = vmatpush1.bf16.msra.mxu0 0
        %585 = vmatprep.subr.bf16.mxu0 0
        %586 = vmatpush1.bf16.msra.mxu0 0
        %587 = vmatprep.subr.bf16.mxu0 0
        %588 = vmatpush1.bf16.msra.mxu0 0
        %589 = vmatprep.subr.bf16.mxu0 0
        %590 = vmatpush1.bf16.msra.mxu0 0
        %591 = vmatprep.subr.bf16.mxu0 0
        %592 = vmatpush1.bf16.msra.mxu0 0
        %593 = vmatprep.subr.bf16.mxu0 0
        %594 = vmatpush1.bf16.msra.mxu0 0
        %595 = vmatprep.subr.bf16.mxu0 0
        %596 = vmatpush1.bf16.msra.mxu0 0
        %597 = vmatprep.subr.bf16.mxu0 0
        %598 = vmatpush1.bf16.msra.mxu0 0
        %599 = vmatprep.subr.bf16.mxu0 0
        %600 = vmatpush1.bf16.msra.mxu0 0
        %601 = vmatprep.subr.bf16.mxu0 0
        %602 = vmatpush1.bf16.msra.mxu0 0
        %603 = vmatprep.subr.bf16.mxu0 0
        %604 = vmatpush1.bf16.msra.mxu0 0
        %605 = vmatprep.subr.bf16.mxu0 0
        %606 = vmatpush1.bf16.msra.mxu0 0
        %607 = vmatprep.subr.bf16.mxu0 0
        %608 = vmatpush1.bf16.msra.mxu0 0
        %609 = vmatprep.subr.bf16.mxu0 0
        %610 = vmatpush1.bf16.msra.mxu0 0
        %611 = vmatprep.mubr.bf16.mxu0 0
        %612 = vmatmul.mubr.bf16.gmra.mrb[0].mxu0 %v568
        %v613 = vpop.f32.mrb[0].mxu0
        %v614 = vadd.f32 %v509, %v613
        %v615 = vpop.f32.mrb[0].mxu0
        %v616 = vadd.f32 %v513, %v615
        %v617 = vpop.f32.mrb[0].mxu0
        %v618 = vadd.f32 %v509, %v617
        %v619 = vpop.f32.mrb[0].mxu0
        %v620 = vadd.f32 %v513, %v619
        %621 = vmatprep.mubr.bf16.mxu0 0
        %622 = vmatmul.mubr.bf16.gmra.mrb[0].mxu0 %v571
        %v623 = vpop.f32.mrb[0].mxu0
        %v624 = vadd.f32 %v509, %v623
        %v625 = vpop.f32.mrb[0].mxu0
        %v626 = vadd.f32 %v513, %v625
        %v627 = vpop.f32.mrb[0].mxu0
        %v628 = vadd.f32 %v509, %v627
        %v629 = vpop.f32.mrb[0].mxu0
        %v630 = vadd.f32 %v513, %v629
        %631 = vmatprep.mubr.bf16.mxu0 0
        %632 = vmatmul.mubr.bf16.gmra.mrb[0].mxu0 %v574
        %v633 = vpop.f32.mrb[0].mxu0
        %v634 = vadd.f32 %v509, %v633
        %v635 = vpop.f32.mrb[0].mxu0
        %v636 = vadd.f32 %v513, %v635
        %v637 = vpop.f32.mrb[0].mxu0
        %v638 = vadd.f32 %v509, %v637
        %v639 = vpop.f32.mrb[0].mxu0
        %v640 = vadd.f32 %v513, %v639
        %641 = vmatprep.mubr.bf16.mxu0 0
        %642 = vmatmul.mubr.bf16.gmra.mrb[0].mxu0 %v577
        %v643 = vpop.f32.mrb[0].mxu0
        %v644 = vadd.f32 %v509, %v643
        %v645 = vpop.f32.mrb[0].mxu0
        %v646 = vadd.f32 %v513, %v645
        %v647 = vpop.f32.mrb[0].mxu0
        %v648 = vadd.f32 %v509, %v647
        %v649 = vpop.f32.mrb[0].mxu0
        %v650 = vadd.f32 %v513, %v649
        %651 = vdwg.mxu0
        %652 = vmatprep.subr.bf16.mxu0 %v561
        %653 = vmatpush1.bf16.msra.mxu0 %v560
        %654 = vmatprep.subr.bf16.mxu0 0
        %655 = vmatpush1.bf16.msra.mxu0 0
        %656 = vmatprep.subr.bf16.mxu0 0
        %657 = vmatpush1.bf16.msra.mxu0 0
        %658 = vmatprep.subr.bf16.mxu0 0
        %659 = vmatpush1.bf16.msra.mxu0 0
        %660 = vmatprep.subr.bf16.mxu0 0
        %661 = vmatpush1.bf16.msra.mxu0 0
        %662 = vmatprep.subr.bf16.mxu0 0
        %663 = vmatpush1.bf16.msra.mxu0 0
        %664 = vmatprep.subr.bf16.mxu0 0
        %665 = vmatpush1.bf16.msra.mxu0 0
        %666 = vmatprep.subr.bf16.mxu0 0
        %667 = vmatpush1.bf16.msra.mxu0 0
        %668 = vmatprep.subr.bf16.mxu0 0
        %669 = vmatpush1.bf16.msra.mxu0 0
        %670 = vmatprep.subr.bf16.mxu0 0
        %671 = vmatpush1.bf16.msra.mxu0 0
        %672 = vmatprep.subr.bf16.mxu0 0
        %673 = vmatpush1.bf16.msra.mxu0 0
        %674 = vmatprep.subr.bf16.mxu0 0
        %675 = vmatpush1.bf16.msra.mxu0 0
        %676 = vmatprep.subr.bf16.mxu0 0
        %677 = vmatpush1.bf16.msra.mxu0 0
        %678 = vmatprep.subr.bf16.mxu0 0
        %679 = vmatpush1.bf16.msra.mxu0 0
        %680 = vmatprep.subr.bf16.mxu0 0
        %681 = vmatpush1.bf16.msra.mxu0 0
        %682 = vmatprep.subr.bf16.mxu0 0
        %683 = vmatpush1.bf16.msra.mxu0 0
        %684 = vmatprep.mubr.bf16.mxu0 0
        %685 = vmatmul.mubr.bf16.gmra.mrb[0].mxu0 %v568
        %v686 = vpop.f32.mrb[0].mxu0
        %v687 = vadd.f32 %v517, %v686
        %v688 = vpop.f32.mrb[0].mxu0
        %v689 = vadd.f32 %v521, %v688
        %v690 = vpop.f32.mrb[0].mxu0
        %v691 = vadd.f32 %v517, %v690
        %v692 = vpop.f32.mrb[0].mxu0
        %v693 = vadd.f32 %v521, %v692
        %694 = vmatprep.mubr.bf16.mxu0 0
        %695 = vmatmul.mubr.bf16.gmra.mrb[0].mxu0 %v571
        %v696 = vpop.f32.mrb[0].mxu0
        %v697 = vadd.f32 %v517, %v696
        %v698 = vpop.f32.mrb[0].mxu0
        %v699 = vadd.f32 %v521, %v698
        %v700 = vpop.f32.mrb[0].mxu0
        %v701 = vadd.f32 %v517, %v700
        %v702 = vpop.f32.mrb[0].mxu0
        %v703 = vadd.f32 %v521, %v702
        %704 = vmatprep.mubr.bf16.mxu0 0
        %705 = vmatmul.mubr.bf16.gmra.mrb[0].mxu0 %v574
        %v706 = vpop.f32.mrb[0].mxu0
        %v707 = vadd.f32 %v517, %v706
        %v708 = vpop.f32.mrb[0].mxu0
        %v709 = vadd.f32 %v521, %v708
        %v710 = vpop.f32.mrb[0].mxu0
        %v711 = vadd.f32 %v517, %v710
        %v712 = vpop.f32.mrb[0].mxu0
        %v713 = vadd.f32 %v521, %v712
        %714 = vmatprep.mubr.bf16.mxu0 0
        %715 = vmatmul.mubr.bf16.gmra.mrb[0].mxu0 %v577
        %v716 = vpop.f32.mrb[0].mxu0
        %v717 = vadd.f32 %v517, %v716
        %v718 = vpop.f32.mrb[0].mxu0
        %v719 = vadd.f32 %v521, %v718
        %v720 = vpop.f32.mrb[0].mxu0
        %v721 = vadd.f32 %v517, %v720
        %v722 = vpop.f32.mrb[0].mxu0
        %v723 = vadd.f32 %v521, %v722
        %724 = vdwg.mxu0
        %725 = vst [vmem:[#allocation3] sm:$0xff] %v614
        %726 = vst [vmem:[#allocation3 + $0x8] sm:$0xff] %v616
        %727 = vst [vmem:[#allocation3 + $0x10] sm:$0xff] %v687
        %728 = vst [vmem:[#allocation3 + $0x18] sm:$0xff] %v689
        %729 = vst [vmem:[#allocation3 + $0x20] sm:$0xff] %v618
        %730 = vst [vmem:[#allocation3 + $0x28] sm:$0xff] %v620
        %731 = vst [vmem:[#allocation3 + $0x30] sm:$0xff] %v691
        %732 = vst [vmem:[#allocation3 + $0x38] sm:$0xff] %v693
        %733 = vst [vmem:[#allocation3 + $0x40] sm:$0xff] %v624
        %734 = vst [vmem:[#allocation3 + $0x48] sm:$0xff] %v626
        %735 = vst [vmem:[#allocation3 + $0x50] sm:$0xff] %v697
        %736 = vst [vmem:[#allocation3 + $0x58] sm:$0xff] %v699
        %737 = vst [vmem:[#allocation3 + $0x60] sm:$0xff] %v628
        %738 = vst [vmem:[#allocation3 + $0x68] sm:$0xff] %v630
        %739 = vst [vmem:[#allocation3 + $0x70] sm:$0xff] %v701
        %740 = vst [vmem:[#allocation3 + $0x78] sm:$0xff] %v703
        %741 = vst [vmem:[#allocation3 + $0x80] sm:$0xff] %v634
        %742 = vst [vmem:[#allocation3 + $0x88] sm:$0xff] %v636
        %743 = vst [vmem:[#allocation3 + $0x90] sm:$0xff] %v707
        %744 = vst [vmem:[#allocation3 + $0x98] sm:$0xff] %v709
        %745 = vst [vmem:[#allocation3 + $0xa0] sm:$0xff] %v638
        %746 = vst [vmem:[#allocation3 + $0xa8] sm:$0xff] %v640
        %747 = vst [vmem:[#allocation3 + $0xb0] sm:$0xff] %v711
        %748 = vst [vmem:[#allocation3 + $0xb8] sm:$0xff] %v713
        %749 = vst [vmem:[#allocation3 + $0xc0] sm:$0xff] %v644
        %750 = vst [vmem:[#allocation3 + $0xc8] sm:$0xff] %v646
        %751 = vst [vmem:[#allocation3 + $0xd0] sm:$0xff] %v717
        %752 = vst [vmem:[#allocation3 + $0xd8] sm:$0xff] %v719
        %753 = vst [vmem:[#allocation3 + $0xe0] sm:$0xff] %v648
        %754 = vst [vmem:[#allocation3 + $0xe8] sm:$0xff] %v650
        %755 = vst [vmem:[#allocation3 + $0xf0] sm:$0xff] %v721
        %756 = vst [vmem:[#allocation3 + $0xf8] sm:$0xff] %v723
        %v757 = vld [vmem:[#allocation11] sm:$0xff]
        %v758 = vld [vmem:[#allocation11 + $0x8] sm:$0xff]
        %v759 = vld [vmem:[#allocation12] sm:$0xff]
        %v760 = vld [vmem:[#allocation12 + $0x8] sm:$0xff]
        %s761 = smul.u32 0, 4
        %s762 = smul.addr %s761, 8
        %s763 = scalar_lea.vmem [#allocation3], %s762
        %v764 = vld [vmem:[%s763] sm:$0xff]
        %v765 = vld [vmem:[%s763 + $0x8] sm:$0xff]
        %v766 = vld [vmem:[%s763 + $0x10] sm:$0xff]
        %v767 = vld [vmem:[%s763 + $0x18] sm:$0xff]
        %v768 = vld [vmem:[%s763 + $0x20] sm:$0xff]
        %v769 = vld [vmem:[%s763 + $0x28] sm:$0xff]
        %v770 = vld [vmem:[%s763 + $0x30] sm:$0xff]
        %v771 = vld [vmem:[%s763 + $0x38] sm:$0xff]
        %v772 = vpack.c.bf16 %v758, %v757
        %v773 = vld [vmem:[#allocation5] sm:$0xff]
        %v774 = vld [vmem:[#allocation5 + $0x8] sm:$0xff]
        %v775 = vld [vmem:[#allocation5 + $0x10] sm:$0xff]
        %v776 = vld [vmem:[#allocation5 + $0x18] sm:$0xff]
        %v777 = vld [vmem:[#allocation5 + $0x20] sm:$0xff]
        %v778 = vld [vmem:[#allocation5 + $0x28] sm:$0xff]
        %v779 = vld [vmem:[#allocation5 + $0x30] sm:$0xff]
        %v780 = vld [vmem:[#allocation5 + $0x38] sm:$0xff]
        %v781 = vld [vmem:[#allocation5 + $0x40] sm:$0xff]
        %v782 = vld [vmem:[#allocation5 + $0x48] sm:$0xff]
        %v783 = vld [vmem:[#allocation5 + $0x50] sm:$0xff]
        %v784 = vld [vmem:[#allocation5 + $0x58] sm:$0xff]
        %v785 = vld [vmem:[#allocation5 + $0x60] sm:$0xff]
        %v786 = vld [vmem:[#allocation5 + $0x68] sm:$0xff]
        %v787 = vld [vmem:[#allocation5 + $0x70] sm:$0xff]
        %v788 = vld [vmem:[#allocation5 + $0x78] sm:$0xff]
        %v789 = vld [vmem:[#allocation5 + $0x80] sm:$0xff]
        %v790 = vld [vmem:[#allocation5 + $0x88] sm:$0xff]
        %v791 = vld [vmem:[#allocation5 + $0x90] sm:$0xff]
        %v792 = vld [vmem:[#allocation5 + $0x98] sm:$0xff]
        %v793 = vld [vmem:[#allocation5 + $0xa0] sm:$0xff]
        %v794 = vld [vmem:[#allocation5 + $0xa8] sm:$0xff]
        %v795 = vld [vmem:[#allocation5 + $0xb0] sm:$0xff]
        %v796 = vld [vmem:[#allocation5 + $0xb8] sm:$0xff]
        %v797 = vld [vmem:[#allocation5 + $0xc0] sm:$0xff]
        %v798 = vld [vmem:[#allocation5 + $0xc8] sm:$0xff]
        %v799 = vld [vmem:[#allocation5 + $0xd0] sm:$0xff]
        %v800 = vld [vmem:[#allocation5 + $0xd8] sm:$0xff]
        %v801 = vld [vmem:[#allocation5 + $0xe0] sm:$0xff]
        %v802 = vld [vmem:[#allocation5 + $0xe8] sm:$0xff]
        %v803 = vld [vmem:[#allocation5 + $0xf0] sm:$0xff]
        %v804 = vld [vmem:[#allocation5 + $0xf8] sm:$0xff]
        %v837 = vunpack.c.l.b16 %v773
        %v838 = vunpack.c.h.b16 %v773
        %v839 = vunpack.c.l.b16 %v774
        %v840 = vunpack.c.h.b16 %v774
        %v841 = vunpack.c.l.b16 %v775
        %v842 = vunpack.c.h.b16 %v775
        %v843 = vunpack.c.l.b16 %v776
        %v844 = vunpack.c.h.b16 %v776
        %v845 = vunpack.c.l.b16 %v777
        %v846 = vunpack.c.h.b16 %v777
        %v847 = vunpack.c.l.b16 %v778
        %v848 = vunpack.c.h.b16 %v778
        %v849 = vunpack.c.l.b16 %v779
        %v850 = vunpack.c.h.b16 %v779
        %v851 = vunpack.c.l.b16 %v780
        %v852 = vunpack.c.h.b16 %v780
        %v853 = vunpack.c.l.b16 %v781
        %v854 = vunpack.c.h.b16 %v781
        %v855 = vunpack.c.l.b16 %v782
        %v856 = vunpack.c.h.b16 %v782
        %v857 = vunpack.c.l.b16 %v783
        %v858 = vunpack.c.h.b16 %v783
        %v859 = vunpack.c.l.b16 %v784
        %v860 = vunpack.c.h.b16 %v784
        %v861 = vunpack.c.l.b16 %v785
        %v862 = vunpack.c.h.b16 %v785
        %v863 = vunpack.c.l.b16 %v786
        %v864 = vunpack.c.h.b16 %v786
        %v865 = vunpack.c.l.b16 %v787
        %v866 = vunpack.c.h.b16 %v787
        %v867 = vunpack.c.l.b16 %v788
        %v868 = vunpack.c.h.b16 %v788
        %v869 = vunpack.c.l.b16 %v789
        %v870 = vunpack.c.h.b16 %v789
        %v871 = vunpack.c.l.b16 %v790
        %v872 = vunpack.c.h.b16 %v790
        %v873 = vunpack.c.l.b16 %v791
        %v874 = vunpack.c.h.b16 %v791
        %v875 = vunpack.c.l.b16 %v792
        %v876 = vunpack.c.h.b16 %v792
        %v877 = vunpack.c.l.b16 %v793
        %v878 = vunpack.c.h.b16 %v793
        %v879 = vunpack.c.l.b16 %v794
        %v880 = vunpack.c.h.b16 %v794
        %v881 = vunpack.c.l.b16 %v795
        %v882 = vunpack.c.h.b16 %v795
        %v883 = vunpack.c.l.b16 %v796
        %v884 = vunpack.c.h.b16 %v796
        %v885 = vunpack.c.l.b16 %v797
        %v886 = vunpack.c.h.b16 %v797
        %v887 = vunpack.c.l.b16 %v798
        %v888 = vunpack.c.h.b16 %v798
        %v889 = vunpack.c.l.b16 %v799
        %v890 = vunpack.c.h.b16 %v799
        %v891 = vunpack.c.l.b16 %v800
        %v892 = vunpack.c.h.b16 %v800
        %v893 = vunpack.c.l.b16 %v801
        %v894 = vunpack.c.h.b16 %v801
        %v895 = vunpack.c.l.b16 %v802
        %v896 = vunpack.c.h.b16 %v802
        %v897 = vunpack.c.l.b16 %v803
        %v898 = vunpack.c.h.b16 %v803
        %v899 = vunpack.c.l.b16 %v804
        %v900 = vunpack.c.h.b16 %v804
        %v901 = vpack.c.b16 %v841, %v837
        %v902 = vpack.c.b16 %v842, %v838
        %v903 = vpack.c.b16 %v843, %v839
        %v904 = vpack.c.b16 %v844, %v840
        %v905 = vpack.c.b16 %v849, %v845
        %v906 = vpack.c.b16 %v850, %v846
        %v907 = vpack.c.b16 %v851, %v847
        %v908 = vpack.c.b16 %v852, %v848
        %v909 = vpack.c.b16 %v857, %v853
        %v910 = vpack.c.b16 %v858, %v854
        %v911 = vpack.c.b16 %v859, %v855
        %v912 = vpack.c.b16 %v860, %v856
        %v913 = vpack.c.b16 %v865, %v861
        %v914 = vpack.c.b16 %v866, %v862
        %v915 = vpack.c.b16 %v867, %v863
        %v916 = vpack.c.b16 %v868, %v864
        %v917 = vpack.c.b16 %v873, %v869
        %v918 = vpack.c.b16 %v874, %v870
        %v919 = vpack.c.b16 %v875, %v871
        %v920 = vpack.c.b16 %v876, %v872
        %v921 = vpack.c.b16 %v881, %v877
        %v922 = vpack.c.b16 %v882, %v878
        %v923 = vpack.c.b16 %v883, %v879
        %v924 = vpack.c.b16 %v884, %v880
        %v925 = vpack.c.b16 %v889, %v885
        %v926 = vpack.c.b16 %v890, %v886
        %v927 = vpack.c.b16 %v891, %v887
        %v928 = vpack.c.b16 %v892, %v888
        %v929 = vpack.c.b16 %v897, %v893
        %v930 = vpack.c.b16 %v898, %v894
        %v931 = vpack.c.b16 %v899, %v895
        %v932 = vpack.c.b16 %v900, %v896
        %965 = vmatprep.subr.bf16.mxu0 %v902
        %966 = vmatpush1.bf16.msra.mxu0 %v901
        %967 = vmatprep.subr.bf16.mxu0 %v906
        %968 = vmatpush1.bf16.msra.mxu0 %v905
        %969 = vmatprep.subr.bf16.mxu0 %v910
        %970 = vmatpush1.bf16.msra.mxu0 %v909
        %971 = vmatprep.subr.bf16.mxu0 %v914
        %972 = vmatpush1.bf16.msra.mxu0 %v913
        %973 = vmatprep.subr.bf16.mxu0 %v918
        %974 = vmatpush1.bf16.msra.mxu0 %v917
        %975 = vmatprep.subr.bf16.mxu0 %v922
        %976 = vmatpush1.bf16.msra.mxu0 %v921
        %977 = vmatprep.subr.bf16.mxu0 %v926
        %978 = vmatpush1.bf16.msra.mxu0 %v925
        %979 = vmatprep.subr.bf16.mxu0 %v930
        %980 = vmatpush1.bf16.msra.mxu0 %v929
        %981 = vmatprep.subr.bf16.mxu0 0
        %982 = vmatpush1.bf16.msra.mxu0 0
        %983 = vmatprep.subr.bf16.mxu0 0
        %984 = vmatpush1.bf16.msra.mxu0 0
        %985 = vmatprep.subr.bf16.mxu0 0
        %986 = vmatpush1.bf16.msra.mxu0 0
        %987 = vmatprep.subr.bf16.mxu0 0
        %988 = vmatpush1.bf16.msra.mxu0 0
        %989 = vmatprep.subr.bf16.mxu0 0
        %990 = vmatpush1.bf16.msra.mxu0 0
        %991 = vmatprep.subr.bf16.mxu0 0
        %992 = vmatpush1.bf16.msra.mxu0 0
        %993 = vmatprep.subr.bf16.mxu0 0
        %994 = vmatpush1.bf16.msra.mxu0 0
        %995 = vmatprep.subr.bf16.mxu0 0
        %996 = vmatpush1.bf16.msra.mxu0 0
        %997 = vmatprep.mubr.bf16.mxu0 0
        %998 = vmatmul.mubr.bf16.gmra.mrb[0].mxu0 %v772
        %v999 = vpop.f32.mrb[0].mxu0
        %v1000 = vadd.f32 0.0, %v999
        %v1001 = vpop.f32.mrb[0].mxu0
        %v1002 = vadd.f32 0.0, %v1001
        %v1003 = vpop.f32.mrb[0].mxu0
        %v1004 = vadd.f32 0.0, %v1003
        %v1005 = vpop.f32.mrb[0].mxu0
        %v1006 = vadd.f32 0.0, %v1005
        %1007 = vdwg.mxu0
        %1008 = vmatprep.subr.bf16.mxu0 %v904
        %1009 = vmatpush1.bf16.msra.mxu0 %v903
        %1010 = vmatprep.subr.bf16.mxu0 %v908
        %1011 = vmatpush1.bf16.msra.mxu0 %v907
        %1012 = vmatprep.subr.bf16.mxu0 %v912
        %1013 = vmatpush1.bf16.msra.mxu0 %v911
        %1014 = vmatprep.subr.bf16.mxu0 %v916
        %1015 = vmatpush1.bf16.msra.mxu0 %v915
        %1016 = vmatprep.subr.bf16.mxu0 %v920
        %1017 = vmatpush1.bf16.msra.mxu0 %v919
        %1018 = vmatprep.subr.bf16.mxu0 %v924
        %1019 = vmatpush1.bf16.msra.mxu0 %v923
        %1020 = vmatprep.subr.bf16.mxu0 %v928
        %1021 = vmatpush1.bf16.msra.mxu0 %v927
        %1022 = vmatprep.subr.bf16.mxu0 %v932
        %1023 = vmatpush1.bf16.msra.mxu0 %v931
        %1024 = vmatprep.subr.bf16.mxu0 0
        %1025 = vmatpush1.bf16.msra.mxu0 0
        %1026 = vmatprep.subr.bf16.mxu0 0
        %1027 = vmatpush1.bf16.msra.mxu0 0
        %1028 = vmatprep.subr.bf16.mxu0 0
        %1029 = vmatpush1.bf16.msra.mxu0 0
        %1030 = vmatprep.subr.bf16.mxu0 0
        %1031 = vmatpush1.bf16.msra.mxu0 0
        %1032 = vmatprep.subr.bf16.mxu0 0
        %1033 = vmatpush1.bf16.msra.mxu0 0
        %1034 = vmatprep.subr.bf16.mxu0 0
        %1035 = vmatpush1.bf16.msra.mxu0 0
        %1036 = vmatprep.subr.bf16.mxu0 0
        %1037 = vmatpush1.bf16.msra.mxu0 0
        %1038 = vmatprep.subr.bf16.mxu0 0
        %1039 = vmatpush1.bf16.msra.mxu0 0
        %1040 = vmatprep.mubr.bf16.mxu0 0
        %1041 = vmatmul.mubr.bf16.gmra.mrb[0].mxu0 %v772
        %v1042 = vpop.f32.mrb[0].mxu0
        %v1043 = vadd.f32 0.0, %v1042
        %v1044 = vpop.f32.mrb[0].mxu0
        %v1045 = vadd.f32 0.0, %v1044
        %v1046 = vpop.f32.mrb[0].mxu0
        %v1047 = vadd.f32 0.0, %v1046
        %v1048 = vpop.f32.mrb[0].mxu0
        %v1049 = vadd.f32 0.0, %v1048
        %1050 = vdwg.mxu0
        %v1051 = vadd.f32 %v764, %v1000
        %v1052 = vadd.f32 %v765, %v1002
        %v1053 = vadd.f32 %v766, %v1043
        %v1054 = vadd.f32 %v767, %v1045
        %v1055 = vadd.f32 %v768, %v1004
        %v1056 = vadd.f32 %v769, %v1006
        %v1057 = vadd.f32 %v770, %v1047
        %v1058 = vadd.f32 %v771, %v1049
        %v1059 = vmul.f32 %v1051, 0.5
        %v1060 = vmul.f32 %v1055, 0.5
        %v1061 = vtanh.pop %v1059
        %v1062 = vtanh.pop %v1060
        %v1063 = vmul.f32 %v1061, 0.5
        %v1064 = vmul.f32 %v1062, 0.5
        %v1065 = vadd.f32 %v1063, 0.5
        %v1066 = vadd.f32 %v1064, 0.5
        %v1067 = vmul.f32 %v1052, 0.5
        %v1068 = vmul.f32 %v1056, 0.5
        %v1069 = vtanh.pop %v1067
        %v1070 = vtanh.pop %v1068
        %v1071 = vmul.f32 %v1069, 0.5
        %v1072 = vmul.f32 %v1070, 0.5
        %v1073 = vadd.f32 %v1071, 0.5
        %v1074 = vadd.f32 %v1072, 0.5
        %v1075 = vtanh.pop %v1053
        %v1076 = vtanh.pop %v1057
        %v1077 = vmul.f32 %v1054, 0.5
        %v1078 = vmul.f32 %v1058, 0.5
        %v1079 = vtanh.pop %v1077
        %v1080 = vtanh.pop %v1078
        %v1081 = vmul.f32 %v1079, 0.5
        %v1082 = vmul.f32 %v1080, 0.5
        %v1083 = vadd.f32 %v1081, 0.5
        %v1084 = vadd.f32 %v1082, 0.5
        %v1085 = vmul.f32 %v1073, %v759
        %v1086 = vmul.f32 %v1074, %v760
        %v1087 = vmul.f32 %v1065, %v1075
        %v1088 = vmul.f32 %v1066, %v1076
        %v1089 = vadd.f32 %v1085, %v1087
        %v1090 = vadd.f32 %v1086, %v1088
        %v1091 = vtanh.pop %v1089
        %v1092 = vtanh.pop %v1090
        %v1093 = vmul.f32 %v1083, %v1091
        %v1094 = vmul.f32 %v1084, %v1092
        %v1095 = vpack.c.bf16 %v1094, %v1093
        %1096 = vst [vmem:[#allocation2] sm:$0xff] %v1095
        %s1097 = smul.u32 2, 4
        %s1098 = smul.addr %s1097, 8
        %s1099 = scalar_lea.vmem [#allocation3], %s1098
        %v1100 = vld [vmem:[%s1099] sm:$0xff]
        %v1101 = vld [vmem:[%s1099 + $0x8] sm:$0xff]
        %v1102 = vld [vmem:[%s1099 + $0x10] sm:$0xff]
        %v1103 = vld [vmem:[%s1099 + $0x18] sm:$0xff]
        %v1104 = vld [vmem:[%s1099 + $0x20] sm:$0xff]
        %v1105 = vld [vmem:[%s1099 + $0x28] sm:$0xff]
        %v1106 = vld [vmem:[%s1099 + $0x30] sm:$0xff]
        %v1107 = vld [vmem:[%s1099 + $0x38] sm:$0xff]
        %v1108 = vld [vmem:[#allocation5] sm:$0xff]
        %v1109 = vld [vmem:[#allocation5 + $0x8] sm:$0xff]
        %v1110 = vld [vmem:[#allocation5 + $0x10] sm:$0xff]
        %v1111 = vld [vmem:[#allocation5 + $0x18] sm:$0xff]
        %v1112 = vld [vmem:[#allocation5 + $0x20] sm:$0xff]
        %v1113 = vld [vmem:[#allocation5 + $0x28] sm:$0xff]
        %v1114 = vld [vmem:[#allocation5 + $0x30] sm:$0xff]
        %v1115 = vld [vmem:[#allocation5 + $0x38] sm:$0xff]
        %v1116 = vld [vmem:[#allocation5 + $0x40] sm:$0xff]
        %v1117 = vld [vmem:[#allocation5 + $0x48] sm:$0xff]
        %v1118 = vld [vmem:[#allocation5 + $0x50] sm:$0xff]
        %v1119 = vld [vmem:[#allocation5 + $0x58] sm:$0xff]
        %v1120 = vld [vmem:[#allocation5 + $0x60] sm:$0xff]
        %v1121 = vld [vmem:[#allocation5 + $0x68] sm:$0xff]
        %v1122 = vld [vmem:[#allocation5 + $0x70] sm:$0xff]
        %v1123 = vld [vmem:[#allocation5 + $0x78] sm:$0xff]
        %v1124 = vld [vmem:[#allocation5 + $0x80] sm:$0xff]
        %v1125 = vld [vmem:[#allocation5 + $0x88] sm:$0xff]
        %v1126 = vld [vmem:[#allocation5 + $0x90] sm:$0xff]
        %v1127 = vld [vmem:[#allocation5 + $0x98] sm:$0xff]
        %v1128 = vld [vmem:[#allocation5 + $0xa0] sm:$0xff]
        %v1129 = vld [vmem:[#allocation5 + $0xa8] sm:$0xff]
        %v1130 = vld [vmem:[#allocation5 + $0xb0] sm:$0xff]
        %v1131 = vld [vmem:[#allocation5 + $0xb8] sm:$0xff]
        %v1132 = vld [vmem:[#allocation5 + $0xc0] sm:$0xff]
        %v1133 = vld [vmem:[#allocation5 + $0xc8] sm:$0xff]
        %v1134 = vld [vmem:[#allocation5 + $0xd0] sm:$0xff]
        %v1135 = vld [vmem:[#allocation5 + $0xd8] sm:$0xff]
        %v1136 = vld [vmem:[#allocation5 + $0xe0] sm:$0xff]
        %v1137 = vld [vmem:[#allocation5 + $0xe8] sm:$0xff]
        %v1138 = vld [vmem:[#allocation5 + $0xf0] sm:$0xff]
        %v1139 = vld [vmem:[#allocation5 + $0xf8] sm:$0xff]
        %v1172 = vunpack.c.l.b16 %v1108
        %v1173 = vunpack.c.h.b16 %v1108
        %v1174 = vunpack.c.l.b16 %v1109
        %v1175 = vunpack.c.h.b16 %v1109
        %v1176 = vunpack.c.l.b16 %v1110
        %v1177 = vunpack.c.h.b16 %v1110
        %v1178 = vunpack.c.l.b16 %v1111
        %v1179 = vunpack.c.h.b16 %v1111
        %v1180 = vunpack.c.l.b16 %v1112
        %v1181 = vunpack.c.h.b16 %v1112
        %v1182 = vunpack.c.l.b16 %v1113
        %v1183 = vunpack.c.h.b16 %v1113
        %v1184 = vunpack.c.l.b16 %v1114
        %v1185 = vunpack.c.h.b16 %v1114
        %v1186 = vunpack.c.l.b16 %v1115
        %v1187 = vunpack.c.h.b16 %v1115
        %v1188 = vunpack.c.l.b16 %v1116
        %v1189 = vunpack.c.h.b16 %v1116
        %v1190 = vunpack.c.l.b16 %v1117
        %v1191 = vunpack.c.h.b16 %v1117
        %v1192 = vunpack.c.l.b16 %v1118
        %v1193 = vunpack.c.h.b16 %v1118
        %v1194 = vunpack.c.l.b16 %v1119
        %v1195 = vunpack.c.h.b16 %v1119
        %v1196 = vunpack.c.l.b16 %v1120
        %v1197 = vunpack.c.h.b16 %v1120
        %v1198 = vunpack.c.l.b16 %v1121
        %v1199 = vunpack.c.h.b16 %v1121
        %v1200 = vunpack.c.l.b16 %v1122
        %v1201 = vunpack.c.h.b16 %v1122
        %v1202 = vunpack.c.l.b16 %v1123
        %v1203 = vunpack.c.h.b16 %v1123
        %v1204 = vunpack.c.l.b16 %v1124
        %v1205 = vunpack.c.h.b16 %v1124
        %v1206 = vunpack.c.l.b16 %v1125
        %v1207 = vunpack.c.h.b16 %v1125
        %v1208 = vunpack.c.l.b16 %v1126
        %v1209 = vunpack.c.h.b16 %v1126
        %v1210 = vunpack.c.l.b16 %v1127
        %v1211 = vunpack.c.h.b16 %v1127
        %v1212 = vunpack.c.l.b16 %v1128
        %v1213 = vunpack.c.h.b16 %v1128
        %v1214 = vunpack.c.l.b16 %v1129
        %v1215 = vunpack.c.h.b16 %v1129
        %v1216 = vunpack.c.l.b16 %v1130
        %v1217 = vunpack.c.h.b16 %v1130
        %v1218 = vunpack.c.l.b16 %v1131
        %v1219 = vunpack.c.h.b16 %v1131
        %v1220 = vunpack.c.l.b16 %v1132
        %v1221 = vunpack.c.h.b16 %v1132
        %v1222 = vunpack.c.l.b16 %v1133
        %v1223 = vunpack.c.h.b16 %v1133
        %v1224 = vunpack.c.l.b16 %v1134
        %v1225 = vunpack.c.h.b16 %v1134
        %v1226 = vunpack.c.l.b16 %v1135
        %v1227 = vunpack.c.h.b16 %v1135
        %v1228 = vunpack.c.l.b16 %v1136
        %v1229 = vunpack.c.h.b16 %v1136
        %v1230 = vunpack.c.l.b16 %v1137
        %v1231 = vunpack.c.h.b16 %v1137
        %v1232 = vunpack.c.l.b16 %v1138
        %v1233 = vunpack.c.h.b16 %v1138
        %v1234 = vunpack.c.l.b16 %v1139
        %v1235 = vunpack.c.h.b16 %v1139
        %v1236 = vpack.c.b16 %v1176, %v1172
        %v1237 = vpack.c.b16 %v1177, %v1173
        %v1238 = vpack.c.b16 %v1178, %v1174
        %v1239 = vpack.c.b16 %v1179, %v1175
        %v1240 = vpack.c.b16 %v1184, %v1180
        %v1241 = vpack.c.b16 %v1185, %v1181
        %v1242 = vpack.c.b16 %v1186, %v1182
        %v1243 = vpack.c.b16 %v1187, %v1183
        %v1244 = vpack.c.b16 %v1192, %v1188
        %v1245 = vpack.c.b16 %v1193, %v1189
        %v1246 = vpack.c.b16 %v1194, %v1190
        %v1247 = vpack.c.b16 %v1195, %v1191
        %v1248 = vpack.c.b16 %v1200, %v1196
        %v1249 = vpack.c.b16 %v1201, %v1197
        %v1250 = vpack.c.b16 %v1202, %v1198
        %v1251 = vpack.c.b16 %v1203, %v1199
        %v1252 = vpack.c.b16 %v1208, %v1204
        %v1253 = vpack.c.b16 %v1209, %v1205
        %v1254 = vpack.c.b16 %v1210, %v1206
        %v1255 = vpack.c.b16 %v1211, %v1207
        %v1256 = vpack.c.b16 %v1216, %v1212
        %v1257 = vpack.c.b16 %v1217, %v1213
        %v1258 = vpack.c.b16 %v1218, %v1214
        %v1259 = vpack.c.b16 %v1219, %v1215
        %v1260 = vpack.c.b16 %v1224, %v1220
        %v1261 = vpack.c.b16 %v1225, %v1221
        %v1262 = vpack.c.b16 %v1226, %v1222
        %v1263 = vpack.c.b16 %v1227, %v1223
        %v1264 = vpack.c.b16 %v1232, %v1228
        %v1265 = vpack.c.b16 %v1233, %v1229
        %v1266 = vpack.c.b16 %v1234, %v1230
        %v1267 = vpack.c.b16 %v1235, %v1231
        %1300 = vmatprep.subr.bf16.mxu0 %v1237
        %1301 = vmatpush1.bf16.msra.mxu0 %v1236
        %1302 = vmatprep.subr.bf16.mxu0 %v1241
        %1303 = vmatpush1.bf16.msra.mxu0 %v1240
        %1304 = vmatprep.subr.bf16.mxu0 %v1245
        %1305 = vmatpush1.bf16.msra.mxu0 %v1244
        %1306 = vmatprep.subr.bf16.mxu0 %v1249
        %1307 = vmatpush1.bf16.msra.mxu0 %v1248
        %1308 = vmatprep.subr.bf16.mxu0 %v1253
        %1309 = vmatpush1.bf16.msra.mxu0 %v1252
        %1310 = vmatprep.subr.bf16.mxu0 %v1257
        %1311 = vmatpush1.bf16.msra.mxu0 %v1256
        %1312 = vmatprep.subr.bf16.mxu0 %v1261
        %1313 = vmatpush1.bf16.msra.mxu0 %v1260
        %1314 = vmatprep.subr.bf16.mxu0 %v1265
        %1315 = vmatpush1.bf16.msra.mxu0 %v1264
        %1316 = vmatprep.subr.bf16.mxu0 0
        %1317 = vmatpush1.bf16.msra.mxu0 0
        %1318 = vmatprep.subr.bf16.mxu0 0
        %1319 = vmatpush1.bf16.msra.mxu0 0
        %1320 = vmatprep.subr.bf16.mxu0 0
        %1321 = vmatpush1.bf16.msra.mxu0 0
        %1322 = vmatprep.subr.bf16.mxu0 0
        %1323 = vmatpush1.bf16.msra.mxu0 0
        %1324 = vmatprep.subr.bf16.mxu0 0
        %1325 = vmatpush1.bf16.msra.mxu0 0
        %1326 = vmatprep.subr.bf16.mxu0 0
        %1327 = vmatpush1.bf16.msra.mxu0 0
        %1328 = vmatprep.subr.bf16.mxu0 0
        %1329 = vmatpush1.bf16.msra.mxu0 0
        %1330 = vmatprep.subr.bf16.mxu0 0
        %1331 = vmatpush1.bf16.msra.mxu0 0
        %1332 = vmatprep.mubr.bf16.mxu0 0
        %1333 = vmatmul.mubr.bf16.gmra.mrb[0].mxu0 %v1095
        %v1334 = vpop.f32.mrb[0].mxu0
        %v1335 = vadd.f32 0.0, %v1334
        %v1336 = vpop.f32.mrb[0].mxu0
        %v1337 = vadd.f32 0.0, %v1336
        %v1338 = vpop.f32.mrb[0].mxu0
        %v1339 = vadd.f32 0.0, %v1338
        %v1340 = vpop.f32.mrb[0].mxu0
        %v1341 = vadd.f32 0.0, %v1340
        %1342 = vdwg.mxu0
        %1343 = vmatprep.subr.bf16.mxu0 %v1239
        %1344 = vmatpush1.bf16.msra.mxu0 %v1238
        %1345 = vmatprep.subr.bf16.mxu0 %v1243
        %1346 = vmatpush1.bf16.msra.mxu0 %v1242
        %1347 = vmatprep.subr.bf16.mxu0 %v1247
        %1348 = vmatpush1.bf16.msra.mxu0 %v1246
        %1349 = vmatprep.subr.bf16.mxu0 %v1251
        %1350 = vmatpush1.bf16.msra.mxu0 %v1250
        %1351 = vmatprep.subr.bf16.mxu0 %v1255
        %1352 = vmatpush1.bf16.msra.mxu0 %v1254
        %1353 = vmatprep.subr.bf16.mxu0 %v1259
        %1354 = vmatpush1.bf16.msra.mxu0 %v1258
        %1355 = vmatprep.subr.bf16.mxu0 %v1263
        %1356 = vmatpush1.bf16.msra.mxu0 %v1262
        %1357 = vmatprep.subr.bf16.mxu0 %v1267
        %1358 = vmatpush1.bf16.msra.mxu0 %v1266
        %1359 = vmatprep.subr.bf16.mxu0 0
        %1360 = vmatpush1.bf16.msra.mxu0 0
        %1361 = vmatprep.subr.bf16.mxu0 0
        %1362 = vmatpush1.bf16.msra.mxu0 0
        %1363 = vmatprep.subr.bf16.mxu0 0
        %1364 = vmatpush1.bf16.msra.mxu0 0
        %1365 = vmatprep.subr.bf16.mxu0 0
        %1366 = vmatpush1.bf16.msra.mxu0 0
        %1367 = vmatprep.subr.bf16.mxu0 0
        %1368 = vmatpush1.bf16.msra.mxu0 0
        %1369 = vmatprep.subr.bf16.mxu0 0
        %1370 = vmatpush1.bf16.msra.mxu0 0
        %1371 = vmatprep.subr.bf16.mxu0 0
        %1372 = vmatpush1.bf16.msra.mxu0 0
        %1373 = vmatprep.subr.bf16.mxu0 0
        %1374 = vmatpush1.bf16.msra.mxu0 0
        %1375 = vmatprep.mubr.bf16.mxu0 0
        %1376 = vmatmul.mubr.bf16.gmra.mrb[0].mxu0 %v1095
        %v1377 = vpop.f32.mrb[0].mxu0
        %v1378 = vadd.f32 0.0, %v1377
        %v1379 = vpop.f32.mrb[0].mxu0
        %v1380 = vadd.f32 0.0, %v1379
        %v1381 = vpop.f32.mrb[0].mxu0
        %v1382 = vadd.f32 0.0, %v1381
        %v1383 = vpop.f32.mrb[0].mxu0
        %v1384 = vadd.f32 0.0, %v1383
        %1385 = vdwg.mxu0
        %v1386 = vadd.f32 %v1100, %v1335
        %v1387 = vadd.f32 %v1101, %v1337
        %v1388 = vadd.f32 %v1102, %v1378
        %v1389 = vadd.f32 %v1103, %v1380
        %v1390 = vadd.f32 %v1104, %v1339
        %v1391 = vadd.f32 %v1105, %v1341
        %v1392 = vadd.f32 %v1106, %v1382
        %v1393 = vadd.f32 %v1107, %v1384
        %v1394 = vmul.f32 %v1386, 0.5
        %v1395 = vmul.f32 %v1390, 0.5
        %v1396 = vtanh.pop %v1394
        %v1397 = vtanh.pop %v1395
        %v1398 = vmul.f32 %v1396, 0.5
        %v1399 = vmul.f32 %v1397, 0.5
        %v1400 = vadd.f32 %v1398, 0.5
        %v1401 = vadd.f32 %v1399, 0.5
        %v1402 = vmul.f32 %v1387, 0.5
        %v1403 = vmul.f32 %v1391, 0.5
        %v1404 = vtanh.pop %v1402
        %v1405 = vtanh.pop %v1403
        %v1406 = vmul.f32 %v1404, 0.5
        %v1407 = vmul.f32 %v1405, 0.5
        %v1408 = vadd.f32 %v1406, 0.5
        %v1409 = vadd.f32 %v1407, 0.5
        %v1410 = vtanh.pop %v1388
        %v1411 = vtanh.pop %v1392
        %v1412 = vmul.f32 %v1389, 0.5
        %v1413 = vmul.f32 %v1393, 0.5
        %v1414 = vtanh.pop %v1412
        %v1415 = vtanh.pop %v1413
        %v1416 = vmul.f32 %v1414, 0.5
        %v1417 = vmul.f32 %v1415, 0.5
        %v1418 = vadd.f32 %v1416, 0.5
        %v1419 = vadd.f32 %v1417, 0.5
        %v1420 = vmul.f32 %v1408, %v1089
        %v1421 = vmul.f32 %v1409, %v1090
        %v1422 = vmul.f32 %v1400, %v1410
        %v1423 = vmul.f32 %v1401, %v1411
        %v1424 = vadd.f32 %v1420, %v1422
        %v1425 = vadd.f32 %v1421, %v1423
        %v1426 = vtanh.pop %v1424
        %v1427 = vtanh.pop %v1425
        %v1428 = vmul.f32 %v1418, %v1426
        %v1429 = vmul.f32 %v1419, %v1427
        %v1430 = vpack.c.bf16 %v1429, %v1428
        %s1431 = scalar_lea.vmem [#allocation2], 8
        %1432 = vst [vmem:[%s1431] sm:$0xff] %v1430
        %s1433 = smul.u32 4, 4
        %s1434 = smul.addr %s1433, 8
        %s1435 = scalar_lea.vmem [#allocation3], %s1434
        %v1436 = vld [vmem:[%s1435] sm:$0xff]
        %v1437 = vld [vmem:[%s1435 + $0x8] sm:$0xff]
        %v1438 = vld [vmem:[%s1435 + $0x10] sm:$0xff]
        %v1439 = vld [vmem:[%s1435 + $0x18] sm:$0xff]
        %v1440 = vld [vmem:[%s1435 + $0x20] sm:$0xff]
        %v1441 = vld [vmem:[%s1435 + $0x28] sm:$0xff]
        %v1442 = vld [vmem:[%s1435 + $0x30] sm:$0xff]
        %v1443 = vld [vmem:[%s1435 + $0x38] sm:$0xff]
        %v1444 = vld [vmem:[#allocation5] sm:$0xff]
        %v1445 = vld [vmem:[#allocation5 + $0x8] sm:$0xff]
        %v1446 = vld [vmem:[#allocation5 + $0x10] sm:$0xff]
        %v1447 = vld [vmem:[#allocation5 + $0x18] sm:$0xff]
        %v1448 = vld [vmem:[#allocation5 + $0x20] sm:$0xff]
        %v1449 = vld [vmem:[#allocation5 + $0x28] sm:$0xff]
        %v1450 = vld [vmem:[#allocation5 + $0x30] sm:$0xff]
        %v1451 = vld [vmem:[#allocation5 + $0x38] sm:$0xff]
        %v1452 = vld [vmem:[#allocation5 + $0x40] sm:$0xff]
        %v1453 = vld [vmem:[#allocation5 + $0x48] sm:$0xff]
        %v1454 = vld [vmem:[#allocation5 + $0x50] sm:$0xff]
        %v1455 = vld [vmem:[#allocation5 + $0x58] sm:$0xff]
        %v1456 = vld [vmem:[#allocation5 + $0x60] sm:$0xff]
        %v1457 = vld [vmem:[#allocation5 + $0x68] sm:$0xff]
        %v1458 = vld [vmem:[#allocation5 + $0x70] sm:$0xff]
        %v1459 = vld [vmem:[#allocation5 + $0x78] sm:$0xff]
        %v1460 = vld [vmem:[#allocation5 + $0x80] sm:$0xff]
        %v1461 = vld [vmem:[#allocation5 + $0x88] sm:$0xff]
        %v1462 = vld [vmem:[#allocation5 + $0x90] sm:$0xff]
        %v1463 = vld [vmem:[#allocation5 + $0x98] sm:$0xff]
        %v1464 = vld [vmem:[#allocation5 + $0xa0] sm:$0xff]
        %v1465 = vld [vmem:[#allocation5 + $0xa8] sm:$0xff]
        %v1466 = vld [vmem:[#allocation5 + $0xb0] sm:$0xff]
        %v1467 = vld [vmem:[#allocation5 + $0xb8] sm:$0xff]
        %v1468 = vld [vmem:[#allocation5 + $0xc0] sm:$0xff]
        %v1469 = vld [vmem:[#allocation5 + $0xc8] sm:$0xff]
        %v1470 = vld [vmem:[#allocation5 + $0xd0] sm:$0xff]
        %v1471 = vld [vmem:[#allocation5 + $0xd8] sm:$0xff]
        %v1472 = vld [vmem:[#allocation5 + $0xe0] sm:$0xff]
        %v1473 = vld [vmem:[#allocation5 + $0xe8] sm:$0xff]
        %v1474 = vld [vmem:[#allocation5 + $0xf0] sm:$0xff]
        %v1475 = vld [vmem:[#allocation5 + $0xf8] sm:$0xff]
        %v1508 = vunpack.c.l.b16 %v1444
        %v1509 = vunpack.c.h.b16 %v1444
        %v1510 = vunpack.c.l.b16 %v1445
        %v1511 = vunpack.c.h.b16 %v1445
        %v1512 = vunpack.c.l.b16 %v1446
        %v1513 = vunpack.c.h.b16 %v1446
        %v1514 = vunpack.c.l.b16 %v1447
        %v1515 = vunpack.c.h.b16 %v1447
        %v1516 = vunpack.c.l.b16 %v1448
        %v1517 = vunpack.c.h.b16 %v1448
        %v1518 = vunpack.c.l.b16 %v1449
        %v1519 = vunpack.c.h.b16 %v1449
        %v1520 = vunpack.c.l.b16 %v1450
        %v1521 = vunpack.c.h.b16 %v1450
        %v1522 = vunpack.c.l.b16 %v1451
        %v1523 = vunpack.c.h.b16 %v1451
        %v1524 = vunpack.c.l.b16 %v1452
        %v1525 = vunpack.c.h.b16 %v1452
        %v1526 = vunpack.c.l.b16 %v1453
        %v1527 = vunpack.c.h.b16 %v1453
        %v1528 = vunpack.c.l.b16 %v1454
        %v1529 = vunpack.c.h.b16 %v1454
        %v1530 = vunpack.c.l.b16 %v1455
        %v1531 = vunpack.c.h.b16 %v1455
        %v1532 = vunpack.c.l.b16 %v1456
        %v1533 = vunpack.c.h.b16 %v1456
        %v1534 = vunpack.c.l.b16 %v1457
        %v1535 = vunpack.c.h.b16 %v1457
        %v1536 = vunpack.c.l.b16 %v1458
        %v1537 = vunpack.c.h.b16 %v1458
        %v1538 = vunpack.c.l.b16 %v1459
        %v1539 = vunpack.c.h.b16 %v1459
        %v1540 = vunpack.c.l.b16 %v1460
        %v1541 = vunpack.c.h.b16 %v1460
        %v1542 = vunpack.c.l.b16 %v1461
        %v1543 = vunpack.c.h.b16 %v1461
        %v1544 = vunpack.c.l.b16 %v1462
        %v1545 = vunpack.c.h.b16 %v1462
        %v1546 = vunpack.c.l.b16 %v1463
        %v1547 = vunpack.c.h.b16 %v1463
        %v1548 = vunpack.c.l.b16 %v1464
        %v1549 = vunpack.c.h.b16 %v1464
        %v1550 = vunpack.c.l.b16 %v1465
        %v1551 = vunpack.c.h.b16 %v1465
        %v1552 = vunpack.c.l.b16 %v1466
        %v1553 = vunpack.c.h.b16 %v1466
        %v1554 = vunpack.c.l.b16 %v1467
        %v1555 = vunpack.c.h.b16 %v1467
        %v1556 = vunpack.c.l.b16 %v1468
        %v1557 = vunpack.c.h.b16 %v1468
        %v1558 = vunpack.c.l.b16 %v1469
        %v1559 = vunpack.c.h.b16 %v1469
        %v1560 = vunpack.c.l.b16 %v1470
        %v1561 = vunpack.c.h.b16 %v1470
        %v1562 = vunpack.c.l.b16 %v1471
        %v1563 = vunpack.c.h.b16 %v1471
        %v1564 = vunpack.c.l.b16 %v1472
        %v1565 = vunpack.c.h.b16 %v1472
        %v1566 = vunpack.c.l.b16 %v1473
        %v1567 = vunpack.c.h.b16 %v1473
        %v1568 = vunpack.c.l.b16 %v1474
        %v1569 = vunpack.c.h.b16 %v1474
        %v1570 = vunpack.c.l.b16 %v1475
        %v1571 = vunpack.c.h.b16 %v1475
        %v1572 = vpack.c.b16 %v1512, %v1508
        %v1573 = vpack.c.b16 %v1513, %v1509
        %v1574 = vpack.c.b16 %v1514, %v1510
        %v1575 = vpack.c.b16 %v1515, %v1511
        %v1576 = vpack.c.b16 %v1520, %v1516
        %v1577 = vpack.c.b16 %v1521, %v1517
        %v1578 = vpack.c.b16 %v1522, %v1518
        %v1579 = vpack.c.b16 %v1523, %v1519
        %v1580 = vpack.c.b16 %v1528, %v1524
        %v1581 = vpack.c.b16 %v1529, %v1525
        %v1582 = vpack.c.b16 %v1530, %v1526
        %v1583 = vpack.c.b16 %v1531, %v1527
        %v1584 = vpack.c.b16 %v1536, %v1532
        %v1585 = vpack.c.b16 %v1537, %v1533
        %v1586 = vpack.c.b16 %v1538, %v1534
        %v1587 = vpack.c.b16 %v1539, %v1535
        %v1588 = vpack.c.b16 %v1544, %v1540
        %v1589 = vpack.c.b16 %v1545, %v1541
        %v1590 = vpack.c.b16 %v1546, %v1542
        %v1591 = vpack.c.b16 %v1547, %v1543
        %v1592 = vpack.c.b16 %v1552, %v1548
        %v1593 = vpack.c.b16 %v1553, %v1549
        %v1594 = vpack.c.b16 %v1554, %v1550
        %v1595 = vpack.c.b16 %v1555, %v1551
        %v1596 = vpack.c.b16 %v1560, %v1556
        %v1597 = vpack.c.b16 %v1561, %v1557
        %v1598 = vpack.c.b16 %v1562, %v1558
        %v1599 = vpack.c.b16 %v1563, %v1559
        %v1600 = vpack.c.b16 %v1568, %v1564
        %v1601 = vpack.c.b16 %v1569, %v1565
        %v1602 = vpack.c.b16 %v1570, %v1566
        %v1603 = vpack.c.b16 %v1571, %v1567
        %1636 = vmatprep.subr.bf16.mxu0 %v1573
        %1637 = vmatpush1.bf16.msra.mxu0 %v1572
        %1638 = vmatprep.subr.bf16.mxu0 %v1577
        %1639 = vmatpush1.bf16.msra.mxu0 %v1576
        %1640 = vmatprep.subr.bf16.mxu0 %v1581
        %1641 = vmatpush1.bf16.msra.mxu0 %v1580
        %1642 = vmatprep.subr.bf16.mxu0 %v1585
        %1643 = vmatpush1.bf16.msra.mxu0 %v1584
        %1644 = vmatprep.subr.bf16.mxu0 %v1589
        %1645 = vmatpush1.bf16.msra.mxu0 %v1588
        %1646 = vmatprep.subr.bf16.mxu0 %v1593
        %1647 = vmatpush1.bf16.msra.mxu0 %v1592
        %1648 = vmatprep.subr.bf16.mxu0 %v1597
        %1649 = vmatpush1.bf16.msra.mxu0 %v1596
        %1650 = vmatprep.subr.bf16.mxu0 %v1601
        %1651 = vmatpush1.bf16.msra.mxu0 %v1600
        %1652 = vmatprep.subr.bf16.mxu0 0
        %1653 = vmatpush1.bf16.msra.mxu0 0
        %1654 = vmatprep.subr.bf16.mxu0 0
        %1655 = vmatpush1.bf16.msra.mxu0 0
        %1656 = vmatprep.subr.bf16.mxu0 0
        %1657 = vmatpush1.bf16.msra.mxu0 0
        %1658 = vmatprep.subr.bf16.mxu0 0
        %1659 = vmatpush1.bf16.msra.mxu0 0
        %1660 = vmatprep.subr.bf16.mxu0 0
        %1661 = vmatpush1.bf16.msra.mxu0 0
        %1662 = vmatprep.subr.bf16.mxu0 0
        %1663 = vmatpush1.bf16.msra.mxu0 0
        %1664 = vmatprep.subr.bf16.mxu0 0
        %1665 = vmatpush1.bf16.msra.mxu0 0
        %1666 = vmatprep.subr.bf16.mxu0 0
        %1667 = vmatpush1.bf16.msra.mxu0 0
        %1668 = vmatprep.mubr.bf16.mxu0 0
        %1669 = vmatmul.mubr.bf16.gmra.mrb[0].mxu0 %v1430
        %v1670 = vpop.f32.mrb[0].mxu0
        %v1671 = vadd.f32 0.0, %v1670
        %v1672 = vpop.f32.mrb[0].mxu0
        %v1673 = vadd.f32 0.0, %v1672
        %v1674 = vpop.f32.mrb[0].mxu0
        %v1675 = vadd.f32 0.0, %v1674
        %v1676 = vpop.f32.mrb[0].mxu0
        %v1677 = vadd.f32 0.0, %v1676
        %1678 = vdwg.mxu0
        %1679 = vmatprep.subr.bf16.mxu0 %v1575
        %1680 = vmatpush1.bf16.msra.mxu0 %v1574
        %1681 = vmatprep.subr.bf16.mxu0 %v1579
        %1682 = vmatpush1.bf16.msra.mxu0 %v1578
        %1683 = vmatprep.subr.bf16.mxu0 %v1583
        %1684 = vmatpush1.bf16.msra.mxu0 %v1582
        %1685 = vmatprep.subr.bf16.mxu0 %v1587
        %1686 = vmatpush1.bf16.msra.mxu0 %v1586
        %1687 = vmatprep.subr.bf16.mxu0 %v1591
        %1688 = vmatpush1.bf16.msra.mxu0 %v1590
        %1689 = vmatprep.subr.bf16.mxu0 %v1595
        %1690 = vmatpush1.bf16.msra.mxu0 %v1594
        %1691 = vmatprep.subr.bf16.mxu0 %v1599
        %1692 = vmatpush1.bf16.msra.mxu0 %v1598
        %1693 = vmatprep.subr.bf16.mxu0 %v1603
        %1694 = vmatpush1.bf16.msra.mxu0 %v1602
        %1695 = vmatprep.subr.bf16.mxu0 0
        %1696 = vmatpush1.bf16.msra.mxu0 0
        %1697 = vmatprep.subr.bf16.mxu0 0
        %1698 = vmatpush1.bf16.msra.mxu0 0
        %1699 = vmatprep.subr.bf16.mxu0 0
        %1700 = vmatpush1.bf16.msra.mxu0 0
        %1701 = vmatprep.subr.bf16.mxu0 0
        %1702 = vmatpush1.bf16.msra.mxu0 0
        %1703 = vmatprep.subr.bf16.mxu0 0
        %1704 = vmatpush1.bf16.msra.mxu0 0
        %1705 = vmatprep.subr.bf16.mxu0 0
        %1706 = vmatpush1.bf16.msra.mxu0 0
        %1707 = vmatprep.subr.bf16.mxu0 0
        %1708 = vmatpush1.bf16.msra.mxu0 0
        %1709 = vmatprep.subr.bf16.mxu0 0
        %1710 = vmatpush1.bf16.msra.mxu0 0
        %1711 = vmatprep.mubr.bf16.mxu0 0
        %1712 = vmatmul.mubr.bf16.gmra.mrb[0].mxu0 %v1430
        %v1713 = vpop.f32.mrb[0].mxu0
        %v1714 = vadd.f32 0.0, %v1713
        %v1715 = vpop.f32.mrb[0].mxu0
        %v1716 = vadd.f32 0.0, %v1715
        %v1717 = vpop.f32.mrb[0].mxu0
        %v1718 = vadd.f32 0.0, %v1717
        %v1719 = vpop.f32.mrb[0].mxu0
        %v1720 = vadd.f32 0.0, %v1719
        %1721 = vdwg.mxu0
        %v1722 = vadd.f32 %v1436, %v1671
        %v1723 = vadd.f32 %v1437, %v1673
        %v1724 = vadd.f32 %v1438, %v1714
        %v1725 = vadd.f32 %v1439, %v1716
        %v1726 = vadd.f32 %v1440, %v1675
        %v1727 = vadd.f32 %v1441, %v1677
        %v1728 = vadd.f32 %v1442, %v1718
        %v1729 = vadd.f32 %v1443, %v1720
        %v1730 = vmul.f32 %v1722, 0.5
        %v1731 = vmul.f32 %v1726, 0.5
        %v1732 = vtanh.pop %v1730
        %v1733 = vtanh.pop %v1731
        %v1734 = vmul.f32 %v1732, 0.5
        %v1735 = vmul.f32 %v1733, 0.5
        %v1736 = vadd.f32 %v1734, 0.5
        %v1737 = vadd.f32 %v1735, 0.5
        %v1738 = vmul.f32 %v1723, 0.5
        %v1739 = vmul.f32 %v1727, 0.5
        %v1740 = vtanh.pop %v1738
        %v1741 = vtanh.pop %v1739
        %v1742 = vmul.f32 %v1740, 0.5
        %v1743 = vmul.f32 %v1741, 0.5
        %v1744 = vadd.f32 %v1742, 0.5
        %v1745 = vadd.f32 %v1743, 0.5
        %v1746 = vtanh.pop %v1724
        %v1747 = vtanh.pop %v1728
        %v1748 = vmul.f32 %v1725, 0.5
        %v1749 = vmul.f32 %v1729, 0.5
        %v1750 = vtanh.pop %v1748
        %v1751 = vtanh.pop %v1749
        %v1752 = vmul.f32 %v1750, 0.5
        %v1753 = vmul.f32 %v1751, 0.5
        %v1754 = vadd.f32 %v1752, 0.5
        %v1755 = vadd.f32 %v1753, 0.5
        %v1756 = vmul.f32 %v1744, %v1424
        %v1757 = vmul.f32 %v1745, %v1425
        %v1758 = vmul.f32 %v1736, %v1746
        %v1759 = vmul.f32 %v1737, %v1747
        %v1760 = vadd.f32 %v1756, %v1758
        %v1761 = vadd.f32 %v1757, %v1759
        %v1762 = vtanh.pop %v1760
        %v1763 = vtanh.pop %v1761
        %v1764 = vmul.f32 %v1754, %v1762
        %v1765 = vmul.f32 %v1755, %v1763
        %v1766 = vpack.c.bf16 %v1765, %v1764
        %s1767 = scalar_lea.vmem [#allocation2], 16
        %1768 = vst [vmem:[%s1767] sm:$0xff] %v1766
        %s1769 = smul.u32 6, 4
        %s1770 = smul.addr %s1769, 8
        %s1771 = scalar_lea.vmem [#allocation3], %s1770
        %v1772 = vld [vmem:[%s1771] sm:$0xff]
        %v1773 = vld [vmem:[%s1771 + $0x8] sm:$0xff]
        %v1774 = vld [vmem:[%s1771 + $0x10] sm:$0xff]
        %v1775 = vld [vmem:[%s1771 + $0x18] sm:$0xff]
        %v1776 = vld [vmem:[%s1771 + $0x20] sm:$0xff]
        %v1777 = vld [vmem:[%s1771 + $0x28] sm:$0xff]
        %v1778 = vld [vmem:[%s1771 + $0x30] sm:$0xff]
        %v1779 = vld [vmem:[%s1771 + $0x38] sm:$0xff]
        %v1780 = vld [vmem:[#allocation5] sm:$0xff]
        %v1781 = vld [vmem:[#allocation5 + $0x8] sm:$0xff]
        %v1782 = vld [vmem:[#allocation5 + $0x10] sm:$0xff]
        %v1783 = vld [vmem:[#allocation5 + $0x18] sm:$0xff]
        %v1784 = vld [vmem:[#allocation5 + $0x20] sm:$0xff]
        %v1785 = vld [vmem:[#allocation5 + $0x28] sm:$0xff]
        %v1786 = vld [vmem:[#allocation5 + $0x30] sm:$0xff]
        %v1787 = vld [vmem:[#allocation5 + $0x38] sm:$0xff]
        %v1788 = vld [vmem:[#allocation5 + $0x40] sm:$0xff]
        %v1789 = vld [vmem:[#allocation5 + $0x48] sm:$0xff]
        %v1790 = vld [vmem:[#allocation5 + $0x50] sm:$0xff]
        %v1791 = vld [vmem:[#allocation5 + $0x58] sm:$0xff]
        %v1792 = vld [vmem:[#allocation5 + $0x60] sm:$0xff]
        %v1793 = vld [vmem:[#allocation5 + $0x68] sm:$0xff]
        %v1794 = vld [vmem:[#allocation5 + $0x70] sm:$0xff]
        %v1795 = vld [vmem:[#allocation5 + $0x78] sm:$0xff]
        %v1796 = vld [vmem:[#allocation5 + $0x80] sm:$0xff]
        %v1797 = vld [vmem:[#allocation5 + $0x88] sm:$0xff]
        %v1798 = vld [vmem:[#allocation5 + $0x90] sm:$0xff]
        %v1799 = vld [vmem:[#allocation5 + $0x98] sm:$0xff]
        %v1800 = vld [vmem:[#allocation5 + $0xa0] sm:$0xff]
        %v1801 = vld [vmem:[#allocation5 + $0xa8] sm:$0xff]
        %v1802 = vld [vmem:[#allocation5 + $0xb0] sm:$0xff]
        %v1803 = vld [vmem:[#allocation5 + $0xb8] sm:$0xff]
        %v1804 = vld [vmem:[#allocation5 + $0xc0] sm:$0xff]
        %v1805 = vld [vmem:[#allocation5 + $0xc8] sm:$0xff]
        %v1806 = vld [vmem:[#allocation5 + $0xd0] sm:$0xff]
        %v1807 = vld [vmem:[#allocation5 + $0xd8] sm:$0xff]
        %v1808 = vld [vmem:[#allocation5 + $0xe0] sm:$0xff]
        %v1809 = vld [vmem:[#allocation5 + $0xe8] sm:$0xff]
        %v1810 = vld [vmem:[#allocation5 + $0xf0] sm:$0xff]
        %v1811 = vld [vmem:[#allocation5 + $0xf8] sm:$0xff]
        %v1844 = vunpack.c.l.b16 %v1780
        %v1845 = vunpack.c.h.b16 %v1780
        %v1846 = vunpack.c.l.b16 %v1781
        %v1847 = vunpack.c.h.b16 %v1781
        %v1848 = vunpack.c.l.b16 %v1782
        %v1849 = vunpack.c.h.b16 %v1782
        %v1850 = vunpack.c.l.b16 %v1783
        %v1851 = vunpack.c.h.b16 %v1783
        %v1852 = vunpack.c.l.b16 %v1784
        %v1853 = vunpack.c.h.b16 %v1784
        %v1854 = vunpack.c.l.b16 %v1785
        %v1855 = vunpack.c.h.b16 %v1785
        %v1856 = vunpack.c.l.b16 %v1786
        %v1857 = vunpack.c.h.b16 %v1786
        %v1858 = vunpack.c.l.b16 %v1787
        %v1859 = vunpack.c.h.b16 %v1787
        %v1860 = vunpack.c.l.b16 %v1788
        %v1861 = vunpack.c.h.b16 %v1788
        %v1862 = vunpack.c.l.b16 %v1789
        %v1863 = vunpack.c.h.b16 %v1789
        %v1864 = vunpack.c.l.b16 %v1790
        %v1865 = vunpack.c.h.b16 %v1790
        %v1866 = vunpack.c.l.b16 %v1791
        %v1867 = vunpack.c.h.b16 %v1791
        %v1868 = vunpack.c.l.b16 %v1792
        %v1869 = vunpack.c.h.b16 %v1792
        %v1870 = vunpack.c.l.b16 %v1793
        %v1871 = vunpack.c.h.b16 %v1793
        %v1872 = vunpack.c.l.b16 %v1794
        %v1873 = vunpack.c.h.b16 %v1794
        %v1874 = vunpack.c.l.b16 %v1795
        %v1875 = vunpack.c.h.b16 %v1795
        %v1876 = vunpack.c.l.b16 %v1796
        %v1877 = vunpack.c.h.b16 %v1796
        %v1878 = vunpack.c.l.b16 %v1797
        %v1879 = vunpack.c.h.b16 %v1797
        %v1880 = vunpack.c.l.b16 %v1798
        %v1881 = vunpack.c.h.b16 %v1798
        %v1882 = vunpack.c.l.b16 %v1799
        %v1883 = vunpack.c.h.b16 %v1799
        %v1884 = vunpack.c.l.b16 %v1800
        %v1885 = vunpack.c.h.b16 %v1800
        %v1886 = vunpack.c.l.b16 %v1801
        %v1887 = vunpack.c.h.b16 %v1801
        %v1888 = vunpack.c.l.b16 %v1802
        %v1889 = vunpack.c.h.b16 %v1802
        %v1890 = vunpack.c.l.b16 %v1803
        %v1891 = vunpack.c.h.b16 %v1803
        %v1892 = vunpack.c.l.b16 %v1804
        %v1893 = vunpack.c.h.b16 %v1804
        %v1894 = vunpack.c.l.b16 %v1805
        %v1895 = vunpack.c.h.b16 %v1805
        %v1896 = vunpack.c.l.b16 %v1806
        %v1897 = vunpack.c.h.b16 %v1806
        %v1898 = vunpack.c.l.b16 %v1807
        %v1899 = vunpack.c.h.b16 %v1807
        %v1900 = vunpack.c.l.b16 %v1808
        %v1901 = vunpack.c.h.b16 %v1808
        %v1902 = vunpack.c.l.b16 %v1809
        %v1903 = vunpack.c.h.b16 %v1809
        %v1904 = vunpack.c.l.b16 %v1810
        %v1905 = vunpack.c.h.b16 %v1810
        %v1906 = vunpack.c.l.b16 %v1811
        %v1907 = vunpack.c.h.b16 %v1811
        %v1908 = vpack.c.b16 %v1848, %v1844
        %v1909 = vpack.c.b16 %v1849, %v1845
        %v1910 = vpack.c.b16 %v1850, %v1846
        %v1911 = vpack.c.b16 %v1851, %v1847
        %v1912 = vpack.c.b16 %v1856, %v1852
        %v1913 = vpack.c.b16 %v1857, %v1853
        %v1914 = vpack.c.b16 %v1858, %v1854
        %v1915 = vpack.c.b16 %v1859, %v1855
        %v1916 = vpack.c.b16 %v1864, %v1860
        %v1917 = vpack.c.b16 %v1865, %v1861
        %v1918 = vpack.c.b16 %v1866, %v1862
        %v1919 = vpack.c.b16 %v1867, %v1863
        %v1920 = vpack.c.b16 %v1872, %v1868
        %v1921 = vpack.c.b16 %v1873, %v1869
        %v1922 = vpack.c.b16 %v1874, %v1870
        %v1923 = vpack.c.b16 %v1875, %v1871
        %v1924 = vpack.c.b16 %v1880, %v1876
        %v1925 = vpack.c.b16 %v1881, %v1877
        %v1926 = vpack.c.b16 %v1882, %v1878
        %v1927 = vpack.c.b16 %v1883, %v1879
        %v1928 = vpack.c.b16 %v1888, %v1884
        %v1929 = vpack.c.b16 %v1889, %v1885
        %v1930 = vpack.c.b16 %v1890, %v1886
        %v1931 = vpack.c.b16 %v1891, %v1887
        %v1932 = vpack.c.b16 %v1896, %v1892
        %v1933 = vpack.c.b16 %v1897, %v1893
        %v1934 = vpack.c.b16 %v1898, %v1894
        %v1935 = vpack.c.b16 %v1899, %v1895
        %v1936 = vpack.c.b16 %v1904, %v1900
        %v1937 = vpack.c.b16 %v1905, %v1901
        %v1938 = vpack.c.b16 %v1906, %v1902
        %v1939 = vpack.c.b16 %v1907, %v1903
        %1972 = vmatprep.subr.bf16.mxu0 %v1909
        %1973 = vmatpush1.bf16.msra.mxu0 %v1908
        %1974 = vmatprep.subr.bf16.mxu0 %v1913
        %1975 = vmatpush1.bf16.msra.mxu0 %v1912
        %1976 = vmatprep.subr.bf16.mxu0 %v1917
        %1977 = vmatpush1.bf16.msra.mxu0 %v1916
        %1978 = vmatprep.subr.bf16.mxu0 %v1921
        %1979 = vmatpush1.bf16.msra.mxu0 %v1920
        %1980 = vmatprep.subr.bf16.mxu0 %v1925
        %1981 = vmatpush1.bf16.msra.mxu0 %v1924
        %1982 = vmatprep.subr.bf16.mxu0 %v1929
        %1983 = vmatpush1.bf16.msra.mxu0 %v1928
        %1984 = vmatprep.subr.bf16.mxu0 %v1933
        %1985 = vmatpush1.bf16.msra.mxu0 %v1932
        %1986 = vmatprep.subr.bf16.mxu0 %v1937
        %1987 = vmatpush1.bf16.msra.mxu0 %v1936
        %1988 = vmatprep.subr.bf16.mxu0 0
        %1989 = vmatpush1.bf16.msra.mxu0 0
        %1990 = vmatprep.subr.bf16.mxu0 0
        %1991 = vmatpush1.bf16.msra.mxu0 0
        %1992 = vmatprep.subr.bf16.mxu0 0
        %1993 = vmatpush1.bf16.msra.mxu0 0
        %1994 = vmatprep.subr.bf16.mxu0 0
        %1995 = vmatpush1.bf16.msra.mxu0 0
        %1996 = vmatprep.subr.bf16.mxu0 0
        %1997 = vmatpush1.bf16.msra.mxu0 0
        %1998 = vmatprep.subr.bf16.mxu0 0
        %1999 = vmatpush1.bf16.msra.mxu0 0
        %2000 = vmatprep.subr.bf16.mxu0 0
        %2001 = vmatpush1.bf16.msra.mxu0 0
        %2002 = vmatprep.subr.bf16.mxu0 0
        %2003 = vmatpush1.bf16.msra.mxu0 0
        %2004 = vmatprep.mubr.bf16.mxu0 0
        %2005 = vmatmul.mubr.bf16.gmra.mrb[0].mxu0 %v1766
        %v2006 = vpop.f32.mrb[0].mxu0
        %v2007 = vadd.f32 0.0, %v2006
        %v2008 = vpop.f32.mrb[0].mxu0
        %v2009 = vadd.f32 0.0, %v2008
        %v2010 = vpop.f32.mrb[0].mxu0
        %v2011 = vadd.f32 0.0, %v2010
        %v2012 = vpop.f32.mrb[0].mxu0
        %v2013 = vadd.f32 0.0, %v2012
        %2014 = vdwg.mxu0
        %2015 = vmatprep.subr.bf16.mxu0 %v1911
        %2016 = vmatpush1.bf16.msra.mxu0 %v1910
        %2017 = vmatprep.subr.bf16.mxu0 %v1915
        %2018 = vmatpush1.bf16.msra.mxu0 %v1914
        %2019 = vmatprep.subr.bf16.mxu0 %v1919
        %2020 = vmatpush1.bf16.msra.mxu0 %v1918
        %2021 = vmatprep.subr.bf16.mxu0 %v1923
        %2022 = vmatpush1.bf16.msra.mxu0 %v1922
        %2023 = vmatprep.subr.bf16.mxu0 %v1927
        %2024 = vmatpush1.bf16.msra.mxu0 %v1926
        %2025 = vmatprep.subr.bf16.mxu0 %v1931
        %2026 = vmatpush1.bf16.msra.mxu0 %v1930
        %2027 = vmatprep.subr.bf16.mxu0 %v1935
        %2028 = vmatpush1.bf16.msra.mxu0 %v1934
        %2029 = vmatprep.subr.bf16.mxu0 %v1939
        %2030 = vmatpush1.bf16.msra.mxu0 %v1938
        %2031 = vmatprep.subr.bf16.mxu0 0
        %2032 = vmatpush1.bf16.msra.mxu0 0
        %2033 = vmatprep.subr.bf16.mxu0 0
        %2034 = vmatpush1.bf16.msra.mxu0 0
        %2035 = vmatprep.subr.bf16.mxu0 0
        %2036 = vmatpush1.bf16.msra.mxu0 0
        %2037 = vmatprep.subr.bf16.mxu0 0
        %2038 = vmatpush1.bf16.msra.mxu0 0
        %2039 = vmatprep.subr.bf16.mxu0 0
        %2040 = vmatpush1.bf16.msra.mxu0 0
        %2041 = vmatprep.subr.bf16.mxu0 0
        %2042 = vmatpush1.bf16.msra.mxu0 0
        %2043 = vmatprep.subr.bf16.mxu0 0
        %2044 = vmatpush1.bf16.msra.mxu0 0
        %2045 = vmatprep.subr.bf16.mxu0 0
        %2046 = vmatpush1.bf16.msra.mxu0 0
        %2047 = vmatprep.mubr.bf16.mxu0 0
        %2048 = vmatmul.mubr.bf16.gmra.mrb[0].mxu0 %v1766
        %v2049 = vpop.f32.mrb[0].mxu0
        %v2050 = vadd.f32 0.0, %v2049
        %v2051 = vpop.f32.mrb[0].mxu0
        %v2052 = vadd.f32 0.0, %v2051
        %v2053 = vpop.f32.mrb[0].mxu0
        %v2054 = vadd.f32 0.0, %v2053
        %v2055 = vpop.f32.mrb[0].mxu0
        %v2056 = vadd.f32 0.0, %v2055
        %2057 = vdwg.mxu0
        %v2058 = vadd.f32 %v1772, %v2007
        %v2059 = vadd.f32 %v1773, %v2009
        %v2060 = vadd.f32 %v1774, %v2050
        %v2061 = vadd.f32 %v1775, %v2052
        %v2062 = vadd.f32 %v1776, %v2011
        %v2063 = vadd.f32 %v1777, %v2013
        %v2064 = vadd.f32 %v1778, %v2054
        %v2065 = vadd.f32 %v1779, %v2056
        %v2066 = vmul.f32 %v2058, 0.5
        %v2067 = vmul.f32 %v2062, 0.5
        %v2068 = vtanh.pop %v2066
        %v2069 = vtanh.pop %v2067
        %v2070 = vmul.f32 %v2068, 0.5
        %v2071 = vmul.f32 %v2069, 0.5
        %v2072 = vadd.f32 %v2070, 0.5
        %v2073 = vadd.f32 %v2071, 0.5
        %v2074 = vmul.f32 %v2059, 0.5
        %v2075 = vmul.f32 %v2063, 0.5
        %v2076 = vtanh.pop %v2074
        %v2077 = vtanh.pop %v2075
        %v2078 = vmul.f32 %v2076, 0.5
        %v2079 = vmul.f32 %v2077, 0.5
        %v2080 = vadd.f32 %v2078, 0.5
        %v2081 = vadd.f32 %v2079, 0.5
        %v2082 = vtanh.pop %v2060
        %v2083 = vtanh.pop %v2064
        %v2084 = vmul.f32 %v2061, 0.5
        %v2085 = vmul.f32 %v2065, 0.5
        %v2086 = vtanh.pop %v2084
        %v2087 = vtanh.pop %v2085
        %v2088 = vmul.f32 %v2086, 0.5
        %v2089 = vmul.f32 %v2087, 0.5
        %v2090 = vadd.f32 %v2088, 0.5
        %v2091 = vadd.f32 %v2089, 0.5
        %v2092 = vmul.f32 %v2080, %v1760
        %v2093 = vmul.f32 %v2081, %v1761
        %v2094 = vmul.f32 %v2072, %v2082
        %v2095 = vmul.f32 %v2073, %v2083
        %v2096 = vadd.f32 %v2092, %v2094
        %v2097 = vadd.f32 %v2093, %v2095
        %v2098 = vtanh.pop %v2096
        %v2099 = vtanh.pop %v2097
        %v2100 = vmul.f32 %v2090, %v2098
        %v2101 = vmul.f32 %v2091, %v2099
        %v2102 = vpack.c.bf16 %v2101, %v2100
        %s2103 = scalar_lea.vmem [#allocation2], 24
        %2104 = vst [vmem:[%s2103] sm:$0xff] %v2102
        %2105 = vst [vmem:[#allocation11] sm:$0xff] %v2100
        %2106 = vst [vmem:[#allocation11 + $0x8] sm:$0xff] %v2101
        %2107 = vst [vmem:[#allocation12] sm:$0xff] %v2096
        %2108 = vst [vmem:[#allocation12 + $0x8] sm:$0xff] %v2097
        %v2109 = vld [vmem:[%s8] sm:$0xf]
        %v2110 = vld [vmem:[#allocation2] sm:$0xff]
        %v2111 = vld [vmem:[#allocation2 + $0x8] sm:$0xff]
        %v2112 = vld [vmem:[#allocation2 + $0x10] sm:$0xff]
        %v2113 = vld [vmem:[#allocation2 + $0x18] sm:$0xff]
        %v2114 = vld [vmem:[#allocation8] sm:$0xff]
        %v2115 = vld [vmem:[#allocation8 + $0x8] sm:$0xff]
        %v2116 = vld [vmem:[#allocation8 + $0x10] sm:$0xff]
        %v2117 = vld [vmem:[#allocation8 + $0x18] sm:$0xff]
        %v2118 = vld [vmem:[#allocation8 + $0x20] sm:$0xff]
        %v2119 = vld [vmem:[#allocation8 + $0x28] sm:$0xff]
        %v2120 = vld [vmem:[#allocation8 + $0x30] sm:$0xff]
        %v2121 = vld [vmem:[#allocation8 + $0x38] sm:$0xff]
        %v2122 = vld [vmem:[#allocation8 + $0x40] sm:$0xff]
        %v2123 = vld [vmem:[#allocation8 + $0x48] sm:$0xff]
        %v2124 = vld [vmem:[#allocation8 + $0x50] sm:$0xff]
        %v2125 = vld [vmem:[#allocation8 + $0x58] sm:$0xff]
        %v2126 = vld [vmem:[#allocation8 + $0x60] sm:$0xff]
        %v2127 = vld [vmem:[#allocation8 + $0x68] sm:$0xff]
        %v2128 = vld [vmem:[#allocation8 + $0x70] sm:$0xff]
        %v2129 = vld [vmem:[#allocation8 + $0x78] sm:$0xff]
        %v2130 = vld [vmem:[#allocation8 + $0x80] sm:$0xff]
        %v2131 = vld [vmem:[#allocation8 + $0x88] sm:$0xff]
        %v2132 = vld [vmem:[#allocation8 + $0x90] sm:$0xff]
        %v2133 = vld [vmem:[#allocation8 + $0x98] sm:$0xff]
        %v2134 = vld [vmem:[#allocation8 + $0xa0] sm:$0xff]
        %v2135 = vld [vmem:[#allocation8 + $0xa8] sm:$0xff]
        %v2136 = vld [vmem:[#allocation8 + $0xb0] sm:$0xff]
        %v2137 = vld [vmem:[#allocation8 + $0xb8] sm:$0xff]
        %v2138 = vld [vmem:[#allocation8 + $0xc0] sm:$0xff]
        %v2139 = vld [vmem:[#allocation8 + $0xc8] sm:$0xff]
        %v2140 = vld [vmem:[#allocation8 + $0xd0] sm:$0xff]
        %v2141 = vld [vmem:[#allocation8 + $0xd8] sm:$0xff]
        %v2142 = vld [vmem:[#allocation8 + $0xe0] sm:$0xff]
        %v2143 = vld [vmem:[#allocation8 + $0xe8] sm:$0xff]
        %v2144 = vld [vmem:[#allocation8 + $0xf0] sm:$0xff]
        %v2145 = vld [vmem:[#allocation8 + $0xf8] sm:$0xff]
        %v2147 = vlaneseq
        %v2148 = vshrl.u32 %v2147, 7
        %v2149 = vsub.s32 0, %v2148
        %v2150 = vrot.slane %v2109, %v2149
        %v2151 = vlaneseq
        %v2152 = vshrl.u32 %v2151, 7
        %v2153 = vsub.s32 1, %v2152
        %v2154 = vrot.slane %v2109, %v2153
        %v2155 = vlaneseq
        %v2156 = vshrl.u32 %v2155, 7
        %v2157 = vsub.s32 2, %v2156
        %v2158 = vrot.slane %v2109, %v2157
        %v2159 = vlaneseq
        %v2160 = vshrl.u32 %v2159, 7
        %v2161 = vsub.s32 3, %v2160
        %v2162 = vrot.slane %v2109, %v2161
        %v2199 = vunpack.c.l.b16 %v2114
        %v2200 = vunpack.c.h.b16 %v2114
        %v2201 = vunpack.c.l.b16 %v2115
        %v2202 = vunpack.c.h.b16 %v2115
        %v2203 = vunpack.c.l.b16 %v2116
        %v2204 = vunpack.c.h.b16 %v2116
        %v2205 = vunpack.c.l.b16 %v2117
        %v2206 = vunpack.c.h.b16 %v2117
        %v2207 = vunpack.c.l.b16 %v2118
        %v2208 = vunpack.c.h.b16 %v2118
        %v2209 = vunpack.c.l.b16 %v2119
        %v2210 = vunpack.c.h.b16 %v2119
        %v2211 = vunpack.c.l.b16 %v2120
        %v2212 = vunpack.c.h.b16 %v2120
        %v2213 = vunpack.c.l.b16 %v2121
        %v2214 = vunpack.c.h.b16 %v2121
        %v2215 = vunpack.c.l.b16 %v2122
        %v2216 = vunpack.c.h.b16 %v2122
        %v2217 = vunpack.c.l.b16 %v2123
        %v2218 = vunpack.c.h.b16 %v2123
        %v2219 = vunpack.c.l.b16 %v2124
        %v2220 = vunpack.c.h.b16 %v2124
        %v2221 = vunpack.c.l.b16 %v2125
        %v2222 = vunpack.c.h.b16 %v2125
        %v2223 = vunpack.c.l.b16 %v2126
        %v2224 = vunpack.c.h.b16 %v2126
        %v2225 = vunpack.c.l.b16 %v2127
        %v2226 = vunpack.c.h.b16 %v2127
        %v2227 = vunpack.c.l.b16 %v2128
        %v2228 = vunpack.c.h.b16 %v2128
        %v2229 = vunpack.c.l.b16 %v2129
        %v2230 = vunpack.c.h.b16 %v2129
        %v2231 = vunpack.c.l.b16 %v2130
        %v2232 = vunpack.c.h.b16 %v2130
        %v2233 = vunpack.c.l.b16 %v2131
        %v2234 = vunpack.c.h.b16 %v2131
        %v2235 = vunpack.c.l.b16 %v2132
        %v2236 = vunpack.c.h.b16 %v2132
        %v2237 = vunpack.c.l.b16 %v2133
        %v2238 = vunpack.c.h.b16 %v2133
        %v2239 = vunpack.c.l.b16 %v2134
        %v2240 = vunpack.c.h.b16 %v2134
        %v2241 = vunpack.c.l.b16 %v2135
        %v2242 = vunpack.c.h.b16 %v2135
        %v2243 = vunpack.c.l.b16 %v2136
        %v2244 = vunpack.c.h.b16 %v2136
        %v2245 = vunpack.c.l.b16 %v2137
        %v2246 = vunpack.c.h.b16 %v2137
        %v2247 = vunpack.c.l.b16 %v2138
        %v2248 = vunpack.c.h.b16 %v2138
        %v2249 = vunpack.c.l.b16 %v2139
        %v2250 = vunpack.c.h.b16 %v2139
        %v2251 = vunpack.c.l.b16 %v2140
        %v2252 = vunpack.c.h.b16 %v2140
        %v2253 = vunpack.c.l.b16 %v2141
        %v2254 = vunpack.c.h.b16 %v2141
        %v2255 = vunpack.c.l.b16 %v2142
        %v2256 = vunpack.c.h.b16 %v2142
        %v2257 = vunpack.c.l.b16 %v2143
        %v2258 = vunpack.c.h.b16 %v2143
        %v2259 = vunpack.c.l.b16 %v2144
        %v2260 = vunpack.c.h.b16 %v2144
        %v2261 = vunpack.c.l.b16 %v2145
        %v2262 = vunpack.c.h.b16 %v2145
        %v2263 = vpack.c.b16 %v2203, %v2199
        %v2264 = vpack.c.b16 %v2204, %v2200
        %v2265 = vpack.c.b16 %v2205, %v2201
        %v2266 = vpack.c.b16 %v2206, %v2202
        %v2267 = vpack.c.b16 %v2211, %v2207
        %v2268 = vpack.c.b16 %v2212, %v2208
        %v2269 = vpack.c.b16 %v2213, %v2209
        %v2270 = vpack.c.b16 %v2214, %v2210
        %v2271 = vpack.c.b16 %v2219, %v2215
        %v2272 = vpack.c.b16 %v2220, %v2216
        %v2273 = vpack.c.b16 %v2221, %v2217
        %v2274 = vpack.c.b16 %v2222, %v2218
        %v2275 = vpack.c.b16 %v2227, %v2223
        %v2276 = vpack.c.b16 %v2228, %v2224
        %v2277 = vpack.c.b16 %v2229, %v2225
        %v2278 = vpack.c.b16 %v2230, %v2226
        %v2279 = vpack.c.b16 %v2235, %v2231
        %v2280 = vpack.c.b16 %v2236, %v2232
        %v2281 = vpack.c.b16 %v2237, %v2233
        %v2282 = vpack.c.b16 %v2238, %v2234
        %v2283 = vpack.c.b16 %v2243, %v2239
        %v2284 = vpack.c.b16 %v2244, %v2240
        %v2285 = vpack.c.b16 %v2245, %v2241
        %v2286 = vpack.c.b16 %v2246, %v2242
        %v2287 = vpack.c.b16 %v2251, %v2247
        %v2288 = vpack.c.b16 %v2252, %v2248
        %v2289 = vpack.c.b16 %v2253, %v2249
        %v2290 = vpack.c.b16 %v2254, %v2250
        %v2291 = vpack.c.b16 %v2259, %v2255
        %v2292 = vpack.c.b16 %v2260, %v2256
        %v2293 = vpack.c.b16 %v2261, %v2257
        %v2294 = vpack.c.b16 %v2262, %v2258
        %2327 = vmatprep.subr.bf16.mxu0 %v2264
        %2328 = vmatpush1.bf16.msra.mxu0 %v2263
        %2329 = vmatprep.subr.bf16.mxu0 %v2268
        %2330 = vmatpush1.bf16.msra.mxu0 %v2267
        %2331 = vmatprep.subr.bf16.mxu0 %v2272
        %2332 = vmatpush1.bf16.msra.mxu0 %v2271
        %2333 = vmatprep.subr.bf16.mxu0 %v2276
        %2334 = vmatpush1.bf16.msra.mxu0 %v2275
        %2335 = vmatprep.subr.bf16.mxu0 %v2280
        %2336 = vmatpush1.bf16.msra.mxu0 %v2279
        %2337 = vmatprep.subr.bf16.mxu0 %v2284
        %2338 = vmatpush1.bf16.msra.mxu0 %v2283
        %2339 = vmatprep.subr.bf16.mxu0 %v2288
        %2340 = vmatpush1.bf16.msra.mxu0 %v2287
        %2341 = vmatprep.subr.bf16.mxu0 %v2292
        %2342 = vmatpush1.bf16.msra.mxu0 %v2291
        %2343 = vmatprep.subr.bf16.mxu0 0
        %2344 = vmatpush1.bf16.msra.mxu0 0
        %2345 = vmatprep.subr.bf16.mxu0 0
        %2346 = vmatpush1.bf16.msra.mxu0 0
        %2347 = vmatprep.subr.bf16.mxu0 0
        %2348 = vmatpush1.bf16.msra.mxu0 0
        %2349 = vmatprep.subr.bf16.mxu0 0
        %2350 = vmatpush1.bf16.msra.mxu0 0
        %2351 = vmatprep.subr.bf16.mxu0 0
        %2352 = vmatpush1.bf16.msra.mxu0 0
        %2353 = vmatprep.subr.bf16.mxu0 0
        %2354 = vmatpush1.bf16.msra.mxu0 0
        %2355 = vmatprep.subr.bf16.mxu0 0
        %2356 = vmatpush1.bf16.msra.mxu0 0
        %2357 = vmatprep.subr.bf16.mxu0 0
        %2358 = vmatpush1.bf16.msra.mxu0 0
        %2359 = vmatprep.mubr.bf16.mxu0 0
        %2360 = vmatmul.mubr.bf16.gmra.mrb[0].mxu0 %v2110
        %v2361 = vpop.f32.mrb[0].mxu0
        %v2362 = vadd.f32 %v2150, %v2361
        %v2363 = vpop.f32.mrb[0].mxu0
        %v2364 = vadd.f32 %v2154, %v2363
        %v2365 = vpop.f32.mrb[0].mxu0
        %v2366 = vadd.f32 %v2150, %v2365
        %v2367 = vpop.f32.mrb[0].mxu0
        %v2368 = vadd.f32 %v2154, %v2367
        %2369 = vmatprep.mubr.bf16.mxu0 0
        %2370 = vmatmul.mubr.bf16.gmra.mrb[0].mxu0 %v2111
        %v2371 = vpop.f32.mrb[0].mxu0
        %v2372 = vadd.f32 %v2150, %v2371
        %v2373 = vpop.f32.mrb[0].mxu0
        %v2374 = vadd.f32 %v2154, %v2373
        %v2375 = vpop.f32.mrb[0].mxu0
        %v2376 = vadd.f32 %v2150, %v2375
        %v2377 = vpop.f32.mrb[0].mxu0
        %v2378 = vadd.f32 %v2154, %v2377
        %2379 = vmatprep.mubr.bf16.mxu0 0
        %2380 = vmatmul.mubr.bf16.gmra.mrb[0].mxu0 %v2112
        %v2381 = vpop.f32.mrb[0].mxu0
        %v2382 = vadd.f32 %v2150, %v2381
        %v2383 = vpop.f32.mrb[0].mxu0
        %v2384 = vadd.f32 %v2154, %v2383
        %v2385 = vpop.f32.mrb[0].mxu0
        %v2386 = vadd.f32 %v2150, %v2385
        %v2387 = vpop.f32.mrb[0].mxu0
        %v2388 = vadd.f32 %v2154, %v2387
        %2389 = vmatprep.mubr.bf16.mxu0 0
        %2390 = vmatmul.mubr.bf16.gmra.mrb[0].mxu0 %v2113
        %v2391 = vpop.f32.mrb[0].mxu0
        %v2392 = vadd.f32 %v2150, %v2391
        %v2393 = vpop.f32.mrb[0].mxu0
        %v2394 = vadd.f32 %v2154, %v2393
        %v2395 = vpop.f32.mrb[0].mxu0
        %v2396 = vadd.f32 %v2150, %v2395
        %v2397 = vpop.f32.mrb[0].mxu0
        %v2398 = vadd.f32 %v2154, %v2397
        %2399 = vdwg.mxu0
        %2400 = vmatprep.subr.bf16.mxu0 %v2266
        %2401 = vmatpush1.bf16.msra.mxu0 %v2265
        %2402 = vmatprep.subr.bf16.mxu0 %v2270
        %2403 = vmatpush1.bf16.msra.mxu0 %v2269
        %2404 = vmatprep.subr.bf16.mxu0 %v2274
        %2405 = vmatpush1.bf16.msra.mxu0 %v2273
        %2406 = vmatprep.subr.bf16.mxu0 %v2278
        %2407 = vmatpush1.bf16.msra.mxu0 %v2277
        %2408 = vmatprep.subr.bf16.mxu0 %v2282
        %2409 = vmatpush1.bf16.msra.mxu0 %v2281
        %2410 = vmatprep.subr.bf16.mxu0 %v2286
        %2411 = vmatpush1.bf16.msra.mxu0 %v2285
        %2412 = vmatprep.subr.bf16.mxu0 %v2290
        %2413 = vmatpush1.bf16.msra.mxu0 %v2289
        %2414 = vmatprep.subr.bf16.mxu0 %v2294
        %2415 = vmatpush1.bf16.msra.mxu0 %v2293
        %2416 = vmatprep.subr.bf16.mxu0 0
        %2417 = vmatpush1.bf16.msra.mxu0 0
        %2418 = vmatprep.subr.bf16.mxu0 0
        %2419 = vmatpush1.bf16.msra.mxu0 0
        %2420 = vmatprep.subr.bf16.mxu0 0
        %2421 = vmatpush1.bf16.msra.mxu0 0
        %2422 = vmatprep.subr.bf16.mxu0 0
        %2423 = vmatpush1.bf16.msra.mxu0 0
        %2424 = vmatprep.subr.bf16.mxu0 0
        %2425 = vmatpush1.bf16.msra.mxu0 0
        %2426 = vmatprep.subr.bf16.mxu0 0
        %2427 = vmatpush1.bf16.msra.mxu0 0
        %2428 = vmatprep.subr.bf16.mxu0 0
        %2429 = vmatpush1.bf16.msra.mxu0 0
        %2430 = vmatprep.subr.bf16.mxu0 0
        %2431 = vmatpush1.bf16.msra.mxu0 0
        %2432 = vmatprep.mubr.bf16.mxu0 0
        %2433 = vmatmul.mubr.bf16.gmra.mrb[0].mxu0 %v2110
        %v2434 = vpop.f32.mrb[0].mxu0
        %v2435 = vadd.f32 %v2158, %v2434
        %v2436 = vpop.f32.mrb[0].mxu0
        %v2437 = vadd.f32 %v2162, %v2436
        %v2438 = vpop.f32.mrb[0].mxu0
        %v2439 = vadd.f32 %v2158, %v2438
        %v2440 = vpop.f32.mrb[0].mxu0
        %v2441 = vadd.f32 %v2162, %v2440
        %2442 = vmatprep.mubr.bf16.mxu0 0
        %2443 = vmatmul.mubr.bf16.gmra.mrb[0].mxu0 %v2111
        %v2444 = vpop.f32.mrb[0].mxu0
        %v2445 = vadd.f32 %v2158, %v2444
        %v2446 = vpop.f32.mrb[0].mxu0
        %v2447 = vadd.f32 %v2162, %v2446
        %v2448 = vpop.f32.mrb[0].mxu0
        %v2449 = vadd.f32 %v2158, %v2448
        %v2450 = vpop.f32.mrb[0].mxu0
        %v2451 = vadd.f32 %v2162, %v2450
        %2452 = vmatprep.mubr.bf16.mxu0 0
        %2453 = vmatmul.mubr.bf16.gmra.mrb[0].mxu0 %v2112
        %v2454 = vpop.f32.mrb[0].mxu0
        %v2455 = vadd.f32 %v2158, %v2454
        %v2456 = vpop.f32.mrb[0].mxu0
        %v2457 = vadd.f32 %v2162, %v2456
        %v2458 = vpop.f32.mrb[0].mxu0
        %v2459 = vadd.f32 %v2158, %v2458
        %v2460 = vpop.f32.mrb[0].mxu0
        %v2461 = vadd.f32 %v2162, %v2460
        %2462 = vmatprep.mubr.bf16.mxu0 0
        %2463 = vmatmul.mubr.bf16.gmra.mrb[0].mxu0 %v2113
        %v2464 = vpop.f32.mrb[0].mxu0
        %v2465 = vadd.f32 %v2158, %v2464
        %v2466 = vpop.f32.mrb[0].mxu0
        %v2467 = vadd.f32 %v2162, %v2466
        %v2468 = vpop.f32.mrb[0].mxu0
        %v2469 = vadd.f32 %v2158, %v2468
        %v2470 = vpop.f32.mrb[0].mxu0
        %v2471 = vadd.f32 %v2162, %v2470
        %2472 = vdwg.mxu0
        %2473 = vst [vmem:[#allocation3] sm:$0xff] %v2362
        %2474 = vst [vmem:[#allocation3 + $0x8] sm:$0xff] %v2364
        %2475 = vst [vmem:[#allocation3 + $0x10] sm:$0xff] %v2435
        %2476 = vst [vmem:[#allocation3 + $0x18] sm:$0xff] %v2437
        %2477 = vst [vmem:[#allocation3 + $0x20] sm:$0xff] %v2366
        %2478 = vst [vmem:[#allocation3 + $0x28] sm:$0xff] %v2368
        %2479 = vst [vmem:[#allocation3 + $0x30] sm:$0xff] %v2439
        %2480 = vst [vmem:[#allocation3 + $0x38] sm:$0xff] %v2441
        %2481 = vst [vmem:[#allocation3 + $0x40] sm:$0xff] %v2372
        %2482 = vst [vmem:[#allocation3 + $0x48] sm:$0xff] %v2374
        %2483 = vst [vmem:[#allocation3 + $0x50] sm:$0xff] %v2445
        %2484 = vst [vmem:[#allocation3 + $0x58] sm:$0xff] %v2447
        %2485 = vst [vmem:[#allocation3 + $0x60] sm:$0xff] %v2376
        %2486 = vst [vmem:[#allocation3 + $0x68] sm:$0xff] %v2378
        %2487 = vst [vmem:[#allocation3 + $0x70] sm:$0xff] %v2449
        %2488 = vst [vmem:[#allocation3 + $0x78] sm:$0xff] %v2451
        %2489 = vst [vmem:[#allocation3 + $0x80] sm:$0xff] %v2382
        %2490 = vst [vmem:[#allocation3 + $0x88] sm:$0xff] %v2384
        %2491 = vst [vmem:[#allocation3 + $0x90] sm:$0xff] %v2455
        %2492 = vst [vmem:[#allocation3 + $0x98] sm:$0xff] %v2457
        %2493 = vst [vmem:[#allocation3 + $0xa0] sm:$0xff] %v2386
        %2494 = vst [vmem:[#allocation3 + $0xa8] sm:$0xff] %v2388
        %2495 = vst [vmem:[#allocation3 + $0xb0] sm:$0xff] %v2459
        %2496 = vst [vmem:[#allocation3 + $0xb8] sm:$0xff] %v2461
        %2497 = vst [vmem:[#allocation3 + $0xc0] sm:$0xff] %v2392
        %2498 = vst [vmem:[#allocation3 + $0xc8] sm:$0xff] %v2394
        %2499 = vst [vmem:[#allocation3 + $0xd0] sm:$0xff] %v2465
        %2500 = vst [vmem:[#allocation3 + $0xd8] sm:$0xff] %v2467
        %2501 = vst [vmem:[#allocation3 + $0xe0] sm:$0xff] %v2396
        %2502 = vst [vmem:[#allocation3 + $0xe8] sm:$0xff] %v2398
        %2503 = vst [vmem:[#allocation3 + $0xf0] sm:$0xff] %v2469
        %2504 = vst [vmem:[#allocation3 + $0xf8] sm:$0xff] %v2471
        %s2505 = scalar_lea.vmem [#allocation11], 16
        %v2506 = vld [vmem:[%s2505] sm:$0xff]
        %v2507 = vld [vmem:[%s2505 + $0x8] sm:$0xff]
        %s2508 = scalar_lea.vmem [#allocation12], 16
        %v2509 = vld [vmem:[%s2508] sm:$0xff]
        %v2510 = vld [vmem:[%s2508 + $0x8] sm:$0xff]
        %v2511 = vld [vmem:[%s763] sm:$0xff]
        %v2512 = vld [vmem:[%s763 + $0x8] sm:$0xff]
        %v2513 = vld [vmem:[%s763 + $0x10] sm:$0xff]
        %v2514 = vld [vmem:[%s763 + $0x18] sm:$0xff]
        %v2515 = vld [vmem:[%s763 + $0x20] sm:$0xff]
        %v2516 = vld [vmem:[%s763 + $0x28] sm:$0xff]
        %v2517 = vld [vmem:[%s763 + $0x30] sm:$0xff]
        %v2518 = vld [vmem:[%s763 + $0x38] sm:$0xff]
        %v2519 = vpack.c.bf16 %v2507, %v2506
        %v2520 = vld [vmem:[#allocation10] sm:$0xff]
        %v2521 = vld [vmem:[#allocation10 + $0x8] sm:$0xff]
        %v2522 = vld [vmem:[#allocation10 + $0x10] sm:$0xff]
        %v2523 = vld [vmem:[#allocation10 + $0x18] sm:$0xff]
        %v2524 = vld [vmem:[#allocation10 + $0x20] sm:$0xff]
        %v2525 = vld [vmem:[#allocation10 + $0x28] sm:$0xff]
        %v2526 = vld [vmem:[#allocation10 + $0x30] sm:$0xff]
        %v2527 = vld [vmem:[#allocation10 + $0x38] sm:$0xff]
        %v2528 = vld [vmem:[#allocation10 + $0x40] sm:$0xff]
        %v2529 = vld [vmem:[#allocation10 + $0x48] sm:$0xff]
        %v2530 = vld [vmem:[#allocation10 + $0x50] sm:$0xff]
        %v2531 = vld [vmem:[#allocation10 + $0x58] sm:$0xff]
        %v2532 = vld [vmem:[#allocation10 + $0x60] sm:$0xff]
        %v2533 = vld [vmem:[#allocation10 + $0x68] sm:$0xff]
        %v2534 = vld [vmem:[#allocation10 + $0x70] sm:$0xff]
        %v2535 = vld [vmem:[#allocation10 + $0x78] sm:$0xff]
        %v2536 = vld [vmem:[#allocation10 + $0x80] sm:$0xff]
        %v2537 = vld [vmem:[#allocation10 + $0x88] sm:$0xff]
        %v2538 = vld [vmem:[#allocation10 + $0x90] sm:$0xff]
        %v2539 = vld [vmem:[#allocation10 + $0x98] sm:$0xff]
        %v2540 = vld [vmem:[#allocation10 + $0xa0] sm:$0xff]
        %v2541 = vld [vmem:[#allocation10 + $0xa8] sm:$0xff]
        %v2542 = vld [vmem:[#allocation10 + $0xb0] sm:$0xff]
        %v2543 = vld [vmem:[#allocation10 + $0xb8] sm:$0xff]
        %v2544 = vld [vmem:[#allocation10 + $0xc0] sm:$0xff]
        %v2545 = vld [vmem:[#allocation10 + $0xc8] sm:$0xff]
        %v2546 = vld [vmem:[#allocation10 + $0xd0] sm:$0xff]
        %v2547 = vld [vmem:[#allocation10 + $0xd8] sm:$0xff]
        %v2548 = vld [vmem:[#allocation10 + $0xe0] sm:$0xff]
        %v2549 = vld [vmem:[#allocation10 + $0xe8] sm:$0xff]
        %v2550 = vld [vmem:[#allocation10 + $0xf0] sm:$0xff]
        %v2551 = vld [vmem:[#allocation10 + $0xf8] sm:$0xff]
        %v2584 = vunpack.c.l.b16 %v2520
        %v2585 = vunpack.c.h.b16 %v2520
        %v2586 = vunpack.c.l.b16 %v2521
        %v2587 = vunpack.c.h.b16 %v2521
        %v2588 = vunpack.c.l.b16 %v2522
        %v2589 = vunpack.c.h.b16 %v2522
        %v2590 = vunpack.c.l.b16 %v2523
        %v2591 = vunpack.c.h.b16 %v2523
        %v2592 = vunpack.c.l.b16 %v2524
        %v2593 = vunpack.c.h.b16 %v2524
        %v2594 = vunpack.c.l.b16 %v2525
        %v2595 = vunpack.c.h.b16 %v2525
        %v2596 = vunpack.c.l.b16 %v2526
        %v2597 = vunpack.c.h.b16 %v2526
        %v2598 = vunpack.c.l.b16 %v2527
        %v2599 = vunpack.c.h.b16 %v2527
        %v2600 = vunpack.c.l.b16 %v2528
        %v2601 = vunpack.c.h.b16 %v2528
        %v2602 = vunpack.c.l.b16 %v2529
        %v2603 = vunpack.c.h.b16 %v2529
        %v2604 = vunpack.c.l.b16 %v2530
        %v2605 = vunpack.c.h.b16 %v2530
        %v2606 = vunpack.c.l.b16 %v2531
        %v2607 = vunpack.c.h.b16 %v2531
        %v2608 = vunpack.c.l.b16 %v2532
        %v2609 = vunpack.c.h.b16 %v2532
        %v2610 = vunpack.c.l.b16 %v2533
        %v2611 = vunpack.c.h.b16 %v2533
        %v2612 = vunpack.c.l.b16 %v2534
        %v2613 = vunpack.c.h.b16 %v2534
        %v2614 = vunpack.c.l.b16 %v2535
        %v2615 = vunpack.c.h.b16 %v2535
        %v2616 = vunpack.c.l.b16 %v2536
        %v2617 = vunpack.c.h.b16 %v2536
        %v2618 = vunpack.c.l.b16 %v2537
        %v2619 = vunpack.c.h.b16 %v2537
        %v2620 = vunpack.c.l.b16 %v2538
        %v2621 = vunpack.c.h.b16 %v2538
        %v2622 = vunpack.c.l.b16 %v2539
        %v2623 = vunpack.c.h.b16 %v2539
        %v2624 = vunpack.c.l.b16 %v2540
        %v2625 = vunpack.c.h.b16 %v2540
        %v2626 = vunpack.c.l.b16 %v2541
        %v2627 = vunpack.c.h.b16 %v2541
        %v2628 = vunpack.c.l.b16 %v2542
        %v2629 = vunpack.c.h.b16 %v2542
        %v2630 = vunpack.c.l.b16 %v2543
        %v2631 = vunpack.c.h.b16 %v2543
        %v2632 = vunpack.c.l.b16 %v2544
        %v2633 = vunpack.c.h.b16 %v2544
        %v2634 = vunpack.c.l.b16 %v2545
        %v2635 = vunpack.c.h.b16 %v2545
        %v2636 = vunpack.c.l.b16 %v2546
        %v2637 = vunpack.c.h.b16 %v2546
        %v2638 = vunpack.c.l.b16 %v2547
        %v2639 = vunpack.c.h.b16 %v2547
        %v2640 = vunpack.c.l.b16 %v2548
        %v2641 = vunpack.c.h.b16 %v2548
        %v2642 = vunpack.c.l.b16 %v2549
        %v2643 = vunpack.c.h.b16 %v2549
        %v2644 = vunpack.c.l.b16 %v2550
        %v2645 = vunpack.c.h.b16 %v2550
        %v2646 = vunpack.c.l.b16 %v2551
        %v2647 = vunpack.c.h.b16 %v2551
        %v2648 = vpack.c.b16 %v2588, %v2584
        %v2649 = vpack.c.b16 %v2589, %v2585
        %v2650 = vpack.c.b16 %v2590, %v2586
        %v2651 = vpack.c.b16 %v2591, %v2587
        %v2652 = vpack.c.b16 %v2596, %v2592
        %v2653 = vpack.c.b16 %v2597, %v2593
        %v2654 = vpack.c.b16 %v2598, %v2594
        %v2655 = vpack.c.b16 %v2599, %v2595
        %v2656 = vpack.c.b16 %v2604, %v2600
        %v2657 = vpack.c.b16 %v2605, %v2601
        %v2658 = vpack.c.b16 %v2606, %v2602
        %v2659 = vpack.c.b16 %v2607, %v2603
        %v2660 = vpack.c.b16 %v2612, %v2608
        %v2661 = vpack.c.b16 %v2613, %v2609
        %v2662 = vpack.c.b16 %v2614, %v2610
        %v2663 = vpack.c.b16 %v2615, %v2611
        %v2664 = vpack.c.b16 %v2620, %v2616
        %v2665 = vpack.c.b16 %v2621, %v2617
        %v2666 = vpack.c.b16 %v2622, %v2618
        %v2667 = vpack.c.b16 %v2623, %v2619
        %v2668 = vpack.c.b16 %v2628, %v2624
        %v2669 = vpack.c.b16 %v2629, %v2625
        %v2670 = vpack.c.b16 %v2630, %v2626
        %v2671 = vpack.c.b16 %v2631, %v2627
        %v2672 = vpack.c.b16 %v2636, %v2632
        %v2673 = vpack.c.b16 %v2637, %v2633
        %v2674 = vpack.c.b16 %v2638, %v2634
        %v2675 = vpack.c.b16 %v2639, %v2635
        %v2676 = vpack.c.b16 %v2644, %v2640
        %v2677 = vpack.c.b16 %v2645, %v2641
        %v2678 = vpack.c.b16 %v2646, %v2642
        %v2679 = vpack.c.b16 %v2647, %v2643
        %2712 = vmatprep.subr.bf16.mxu0 %v2649
        %2713 = vmatpush1.bf16.msra.mxu0 %v2648
        %2714 = vmatprep.subr.bf16.mxu0 %v2653
        %2715 = vmatpush1.bf16.msra.mxu0 %v2652
        %2716 = vmatprep.subr.bf16.mxu0 %v2657
        %2717 = vmatpush1.bf16.msra.mxu0 %v2656
        %2718 = vmatprep.subr.bf16.mxu0 %v2661
        %2719 = vmatpush1.bf16.msra.mxu0 %v2660
        %2720 = vmatprep.subr.bf16.mxu0 %v2665
        %2721 = vmatpush1.bf16.msra.mxu0 %v2664
        %2722 = vmatprep.subr.bf16.mxu0 %v2669
        %2723 = vmatpush1.bf16.msra.mxu0 %v2668
        %2724 = vmatprep.subr.bf16.mxu0 %v2673
        %2725 = vmatpush1.bf16.msra.mxu0 %v2672
        %2726 = vmatprep.subr.bf16.mxu0 %v2677
        %2727 = vmatpush1.bf16.msra.mxu0 %v2676
        %2728 = vmatprep.subr.bf16.mxu0 0
        %2729 = vmatpush1.bf16.msra.mxu0 0
        %2730 = vmatprep.subr.bf16.mxu0 0
        %2731 = vmatpush1.bf16.msra.mxu0 0
        %2732 = vmatprep.subr.bf16.mxu0 0
        %2733 = vmatpush1.bf16.msra.mxu0 0
        %2734 = vmatprep.subr.bf16.mxu0 0
        %2735 = vmatpush1.bf16.msra.mxu0 0
        %2736 = vmatprep.subr.bf16.mxu0 0
        %2737 = vmatpush1.bf16.msra.mxu0 0
        %2738 = vmatprep.subr.bf16.mxu0 0
        %2739 = vmatpush1.bf16.msra.mxu0 0
        %2740 = vmatprep.subr.bf16.mxu0 0
        %2741 = vmatpush1.bf16.msra.mxu0 0
        %2742 = vmatprep.subr.bf16.mxu0 0
        %2743 = vmatpush1.bf16.msra.mxu0 0
        %2744 = vmatprep.mubr.bf16.mxu0 0
        %2745 = vmatmul.mubr.bf16.gmra.mrb[0].mxu0 %v2519
        %v2746 = vpop.f32.mrb[0].mxu0
        %v2747 = vadd.f32 0.0, %v2746
        %v2748 = vpop.f32.mrb[0].mxu0
        %v2749 = vadd.f32 0.0, %v2748
        %v2750 = vpop.f32.mrb[0].mxu0
        %v2751 = vadd.f32 0.0, %v2750
        %v2752 = vpop.f32.mrb[0].mxu0
        %v2753 = vadd.f32 0.0, %v2752
        %2754 = vdwg.mxu0
        %2755 = vmatprep.subr.bf16.mxu0 %v2651
        %2756 = vmatpush1.bf16.msra.mxu0 %v2650
        %2757 = vmatprep.subr.bf16.mxu0 %v2655
        %2758 = vmatpush1.bf16.msra.mxu0 %v2654
        %2759 = vmatprep.subr.bf16.mxu0 %v2659
        %2760 = vmatpush1.bf16.msra.mxu0 %v2658
        %2761 = vmatprep.subr.bf16.mxu0 %v2663
        %2762 = vmatpush1.bf16.msra.mxu0 %v2662
        %2763 = vmatprep.subr.bf16.mxu0 %v2667
        %2764 = vmatpush1.bf16.msra.mxu0 %v2666
        %2765 = vmatprep.subr.bf16.mxu0 %v2671
        %2766 = vmatpush1.bf16.msra.mxu0 %v2670
        %2767 = vmatprep.subr.bf16.mxu0 %v2675
        %2768 = vmatpush1.bf16.msra.mxu0 %v2674
        %2769 = vmatprep.subr.bf16.mxu0 %v2679
        %2770 = vmatpush1.bf16.msra.mxu0 %v2678
        %2771 = vmatprep.subr.bf16.mxu0 0
        %2772 = vmatpush1.bf16.msra.mxu0 0
        %2773 = vmatprep.subr.bf16.mxu0 0
        %2774 = vmatpush1.bf16.msra.mxu0 0
        %2775 = vmatprep.subr.bf16.mxu0 0
        %2776 = vmatpush1.bf16.msra.mxu0 0
        %2777 = vmatprep.subr.bf16.mxu0 0
        %2778 = vmatpush1.bf16.msra.mxu0 0
        %2779 = vmatprep.subr.bf16.mxu0 0
        %2780 = vmatpush1.bf16.msra.mxu0 0
        %2781 = vmatprep.subr.bf16.mxu0 0
        %2782 = vmatpush1.bf16.msra.mxu0 0
        %2783 = vmatprep.subr.bf16.mxu0 0
        %2784 = vmatpush1.bf16.msra.mxu0 0
        %2785 = vmatprep.subr.bf16.mxu0 0
        %2786 = vmatpush1.bf16.msra.mxu0 0
        %2787 = vmatprep.mubr.bf16.mxu0 0
        %2788 = vmatmul.mubr.bf16.gmra.mrb[0].mxu0 %v2519
        %v2789 = vpop.f32.mrb[0].mxu0
        %v2790 = vadd.f32 0.0, %v2789
        %v2791 = vpop.f32.mrb[0].mxu0
        %v2792 = vadd.f32 0.0, %v2791
        %v2793 = vpop.f32.mrb[0].mxu0
        %v2794 = vadd.f32 0.0, %v2793
        %v2795 = vpop.f32.mrb[0].mxu0
        %v2796 = vadd.f32 0.0, %v2795
        %2797 = vdwg.mxu0
        %v2798 = vadd.f32 %v2511, %v2747
        %v2799 = vadd.f32 %v2512, %v2749
        %v2800 = vadd.f32 %v2513, %v2790
        %v2801 = vadd.f32 %v2514, %v2792
        %v2802 = vadd.f32 %v2515, %v2751
        %v2803 = vadd.f32 %v2516, %v2753
        %v2804 = vadd.f32 %v2517, %v2794
        %v2805 = vadd.f32 %v2518, %v2796
        %v2806 = vmul.f32 %v2798, 0.5
        %v2807 = vmul.f32 %v2802, 0.5
        %v2808 = vtanh.pop %v2806
        %v2809 = vtanh.pop %v2807
        %v2810 = vmul.f32 %v2808, 0.5
        %v2811 = vmul.f32 %v2809, 0.5
        %v2812 = vadd.f32 %v2810, 0.5
        %v2813 = vadd.f32 %v2811, 0.5
        %v2814 = vmul.f32 %v2799, 0.5
        %v2815 = vmul.f32 %v2803, 0.5
        %v2816 = vtanh.pop %v2814
        %v2817 = vtanh.pop %v2815
        %v2818 = vmul.f32 %v2816, 0.5
        %v2819 = vmul.f32 %v2817, 0.5
        %v2820 = vadd.f32 %v2818, 0.5
        %v2821 = vadd.f32 %v2819, 0.5
        %v2822 = vtanh.pop %v2800
        %v2823 = vtanh.pop %v2804
        %v2824 = vmul.f32 %v2801, 0.5
        %v2825 = vmul.f32 %v2805, 0.5
        %v2826 = vtanh.pop %v2824
        %v2827 = vtanh.pop %v2825
        %v2828 = vmul.f32 %v2826, 0.5
        %v2829 = vmul.f32 %v2827, 0.5
        %v2830 = vadd.f32 %v2828, 0.5
        %v2831 = vadd.f32 %v2829, 0.5
        %v2832 = vmul.f32 %v2820, %v2509
        %v2833 = vmul.f32 %v2821, %v2510
        %v2834 = vmul.f32 %v2812, %v2822
        %v2835 = vmul.f32 %v2813, %v2823
        %v2836 = vadd.f32 %v2832, %v2834
        %v2837 = vadd.f32 %v2833, %v2835
        %v2838 = vtanh.pop %v2836
        %v2839 = vtanh.pop %v2837
        %v2840 = vmul.f32 %v2830, %v2838
        %v2841 = vmul.f32 %v2831, %v2839
        %v2842 = vld [vmem:[%s1099] sm:$0xff]
        %v2843 = vld [vmem:[%s1099 + $0x8] sm:$0xff]
        %v2844 = vld [vmem:[%s1099 + $0x10] sm:$0xff]
        %v2845 = vld [vmem:[%s1099 + $0x18] sm:$0xff]
        %v2846 = vld [vmem:[%s1099 + $0x20] sm:$0xff]
        %v2847 = vld [vmem:[%s1099 + $0x28] sm:$0xff]
        %v2848 = vld [vmem:[%s1099 + $0x30] sm:$0xff]
        %v2849 = vld [vmem:[%s1099 + $0x38] sm:$0xff]
        %v2850 = vpack.c.bf16 %v2841, %v2840
        %2851 = vmatprep.subr.bf16.mxu0 %v2649
        %2852 = vmatpush1.bf16.msra.mxu0 %v2648
        %2853 = vmatprep.subr.bf16.mxu0 %v2653
        %2854 = vmatpush1.bf16.msra.mxu0 %v2652
        %2855 = vmatprep.subr.bf16.mxu0 %v2657
        %2856 = vmatpush1.bf16.msra.mxu0 %v2656
        %2857 = vmatprep.subr.bf16.mxu0 %v2661
        %2858 = vmatpush1.bf16.msra.mxu0 %v2660
        %2859 = vmatprep.subr.bf16.mxu0 %v2665
        %2860 = vmatpush1.bf16.msra.mxu0 %v2664
        %2861 = vmatprep.subr.bf16.mxu0 %v2669
        %2862 = vmatpush1.bf16.msra.mxu0 %v2668
        %2863 = vmatprep.subr.bf16.mxu0 %v2673
        %2864 = vmatpush1.bf16.msra.mxu0 %v2672
        %2865 = vmatprep.subr.bf16.mxu0 %v2677
        %2866 = vmatpush1.bf16.msra.mxu0 %v2676
        %2867 = vmatprep.subr.bf16.mxu0 0
        %2868 = vmatpush1.bf16.msra.mxu0 0
        %2869 = vmatprep.subr.bf16.mxu0 0
        %2870 = vmatpush1.bf16.msra.mxu0 0
        %2871 = vmatprep.subr.bf16.mxu0 0
        %2872 = vmatpush1.bf16.msra.mxu0 0
        %2873 = vmatprep.subr.bf16.mxu0 0
        %2874 = vmatpush1.bf16.msra.mxu0 0
        %2875 = vmatprep.subr.bf16.mxu0 0
        %2876 = vmatpush1.bf16.msra.mxu0 0
        %2877 = vmatprep.subr.bf16.mxu0 0
        %2878 = vmatpush1.bf16.msra.mxu0 0
        %2879 = vmatprep.subr.bf16.mxu0 0
        %2880 = vmatpush1.bf16.msra.mxu0 0
        %2881 = vmatprep.subr.bf16.mxu0 0
        %2882 = vmatpush1.bf16.msra.mxu0 0
        %2883 = vmatprep.mubr.bf16.mxu0 0
        %2884 = vmatmul.mubr.bf16.gmra.mrb[0].mxu0 %v2850
        %v2885 = vpop.f32.mrb[0].mxu0
        %v2886 = vadd.f32 0.0, %v2885
        %v2887 = vpop.f32.mrb[0].mxu0
        %v2888 = vadd.f32 0.0, %v2887
        %v2889 = vpop.f32.mrb[0].mxu0
        %v2890 = vadd.f32 0.0, %v2889
        %v2891 = vpop.f32.mrb[0].mxu0
        %v2892 = vadd.f32 0.0, %v2891
        %2893 = vdwg.mxu0
        %2894 = vmatprep.subr.bf16.mxu0 %v2651
        %2895 = vmatpush1.bf16.msra.mxu0 %v2650
        %2896 = vmatprep.subr.bf16.mxu0 %v2655
        %2897 = vmatpush1.bf16.msra.mxu0 %v2654
        %2898 = vmatprep.subr.bf16.mxu0 %v2659
        %2899 = vmatpush1.bf16.msra.mxu0 %v2658
        %2900 = vmatprep.subr.bf16.mxu0 %v2663
        %2901 = vmatpush1.bf16.msra.mxu0 %v2662
        %2902 = vmatprep.subr.bf16.mxu0 %v2667
        %2903 = vmatpush1.bf16.msra.mxu0 %v2666
        %2904 = vmatprep.subr.bf16.mxu0 %v2671
        %2905 = vmatpush1.bf16.msra.mxu0 %v2670
        %2906 = vmatprep.subr.bf16.mxu0 %v2675
        %2907 = vmatpush1.bf16.msra.mxu0 %v2674
        %2908 = vmatprep.subr.bf16.mxu0 %v2679
        %2909 = vmatpush1.bf16.msra.mxu0 %v2678
        %2910 = vmatprep.subr.bf16.mxu0 0
        %2911 = vmatpush1.bf16.msra.mxu0 0
        %2912 = vmatprep.subr.bf16.mxu0 0
        %2913 = vmatpush1.bf16.msra.mxu0 0
        %2914 = vmatprep.subr.bf16.mxu0 0
        %2915 = vmatpush1.bf16.msra.mxu0 0
        %2916 = vmatprep.subr.bf16.mxu0 0
        %2917 = vmatpush1.bf16.msra.mxu0 0
        %2918 = vmatprep.subr.bf16.mxu0 0
        %2919 = vmatpush1.bf16.msra.mxu0 0
        %2920 = vmatprep.subr.bf16.mxu0 0
        %2921 = vmatpush1.bf16.msra.mxu0 0
        %2922 = vmatprep.subr.bf16.mxu0 0
        %2923 = vmatpush1.bf16.msra.mxu0 0
        %2924 = vmatprep.subr.bf16.mxu0 0
        %2925 = vmatpush1.bf16.msra.mxu0 0
        %2926 = vmatprep.mubr.bf16.mxu0 0
        %2927 = vmatmul.mubr.bf16.gmra.mrb[0].mxu0 %v2850
        %v2928 = vpop.f32.mrb[0].mxu0
        %v2929 = vadd.f32 0.0, %v2928
        %v2930 = vpop.f32.mrb[0].mxu0
        %v2931 = vadd.f32 0.0, %v2930
        %v2932 = vpop.f32.mrb[0].mxu0
        %v2933 = vadd.f32 0.0, %v2932
        %v2934 = vpop.f32.mrb[0].mxu0
        %v2935 = vadd.f32 0.0, %v2934
        %2936 = vdwg.mxu0
        %v2937 = vadd.f32 %v2842, %v2886
        %v2938 = vadd.f32 %v2843, %v2888
        %v2939 = vadd.f32 %v2844, %v2929
        %v2940 = vadd.f32 %v2845, %v2931
        %v2941 = vadd.f32 %v2846, %v2890
        %v2942 = vadd.f32 %v2847, %v2892
        %v2943 = vadd.f32 %v2848, %v2933
        %v2944 = vadd.f32 %v2849, %v2935
        %v2945 = vmul.f32 %v2937, 0.5
        %v2946 = vmul.f32 %v2941, 0.5
        %v2947 = vtanh.pop %v2945
        %v2948 = vtanh.pop %v2946
        %v2949 = vmul.f32 %v2947, 0.5
        %v2950 = vmul.f32 %v2948, 0.5
        %v2951 = vadd.f32 %v2949, 0.5
        %v2952 = vadd.f32 %v2950, 0.5
        %v2953 = vmul.f32 %v2938, 0.5
        %v2954 = vmul.f32 %v2942, 0.5
        %v2955 = vtanh.pop %v2953
        %v2956 = vtanh.pop %v2954
        %v2957 = vmul.f32 %v2955, 0.5
        %v2958 = vmul.f32 %v2956, 0.5
        %v2959 = vadd.f32 %v2957, 0.5
        %v2960 = vadd.f32 %v2958, 0.5
        %v2961 = vtanh.pop %v2939
        %v2962 = vtanh.pop %v2943
        %v2963 = vmul.f32 %v2940, 0.5
        %v2964 = vmul.f32 %v2944, 0.5
        %v2965 = vtanh.pop %v2963
        %v2966 = vtanh.pop %v2964
        %v2967 = vmul.f32 %v2965, 0.5
        %v2968 = vmul.f32 %v2966, 0.5
        %v2969 = vadd.f32 %v2967, 0.5
        %v2970 = vadd.f32 %v2968, 0.5
        %v2971 = vmul.f32 %v2959, %v2836
        %v2972 = vmul.f32 %v2960, %v2837
        %v2973 = vmul.f32 %v2951, %v2961
        %v2974 = vmul.f32 %v2952, %v2962
        %v2975 = vadd.f32 %v2971, %v2973
        %v2976 = vadd.f32 %v2972, %v2974
        %v2977 = vtanh.pop %v2975
        %v2978 = vtanh.pop %v2976
        %v2979 = vmul.f32 %v2969, %v2977
        %v2980 = vmul.f32 %v2970, %v2978
        %v2981 = vld [vmem:[%s1435] sm:$0xff]
        %v2982 = vld [vmem:[%s1435 + $0x8] sm:$0xff]
        %v2983 = vld [vmem:[%s1435 + $0x10] sm:$0xff]
        %v2984 = vld [vmem:[%s1435 + $0x18] sm:$0xff]
        %v2985 = vld [vmem:[%s1435 + $0x20] sm:$0xff]
        %v2986 = vld [vmem:[%s1435 + $0x28] sm:$0xff]
        %v2987 = vld [vmem:[%s1435 + $0x30] sm:$0xff]
        %v2988 = vld [vmem:[%s1435 + $0x38] sm:$0xff]
        %v2989 = vpack.c.bf16 %v2980, %v2979
        %2990 = vmatprep.subr.bf16.mxu0 %v2649
        %2991 = vmatpush1.bf16.msra.mxu0 %v2648
        %2992 = vmatprep.subr.bf16.mxu0 %v2653
        %2993 = vmatpush1.bf16.msra.mxu0 %v2652
        %2994 = vmatprep.subr.bf16.mxu0 %v2657
        %2995 = vmatpush1.bf16.msra.mxu0 %v2656
        %2996 = vmatprep.subr.bf16.mxu0 %v2661
        %2997 = vmatpush1.bf16.msra.mxu0 %v2660
        %2998 = vmatprep.subr.bf16.mxu0 %v2665
        %2999 = vmatpush1.bf16.msra.mxu0 %v2664
        %3000 = vmatprep.subr.bf16.mxu0 %v2669
        %3001 = vmatpush1.bf16.msra.mxu0 %v2668
        %3002 = vmatprep.subr.bf16.mxu0 %v2673
        %3003 = vmatpush1.bf16.msra.mxu0 %v2672
        %3004 = vmatprep.subr.bf16.mxu0 %v2677
        %3005 = vmatpush1.bf16.msra.mxu0 %v2676
        %3006 = vmatprep.subr.bf16.mxu0 0
        %3007 = vmatpush1.bf16.msra.mxu0 0
        %3008 = vmatprep.subr.bf16.mxu0 0
        %3009 = vmatpush1.bf16.msra.mxu0 0
        %3010 = vmatprep.subr.bf16.mxu0 0
        %3011 = vmatpush1.bf16.msra.mxu0 0
        %3012 = vmatprep.subr.bf16.mxu0 0
        %3013 = vmatpush1.bf16.msra.mxu0 0
        %3014 = vmatprep.subr.bf16.mxu0 0
        %3015 = vmatpush1.bf16.msra.mxu0 0
        %3016 = vmatprep.subr.bf16.mxu0 0
        %3017 = vmatpush1.bf16.msra.mxu0 0
        %3018 = vmatprep.subr.bf16.mxu0 0
        %3019 = vmatpush1.bf16.msra.mxu0 0
        %3020 = vmatprep.subr.bf16.mxu0 0
        %3021 = vmatpush1.bf16.msra.mxu0 0
        %3022 = vmatprep.mubr.bf16.mxu0 0
        %3023 = vmatmul.mubr.bf16.gmra.mrb[0].mxu0 %v2989
        %v3024 = vpop.f32.mrb[0].mxu0
        %v3025 = vadd.f32 0.0, %v3024
        %v3026 = vpop.f32.mrb[0].mxu0
        %v3027 = vadd.f32 0.0, %v3026
        %v3028 = vpop.f32.mrb[0].mxu0
        %v3029 = vadd.f32 0.0, %v3028
        %v3030 = vpop.f32.mrb[0].mxu0
        %v3031 = vadd.f32 0.0, %v3030
        %3032 = vdwg.mxu0
        %3033 = vmatprep.subr.bf16.mxu0 %v2651
        %3034 = vmatpush1.bf16.msra.mxu0 %v2650
        %3035 = vmatprep.subr.bf16.mxu0 %v2655
        %3036 = vmatpush1.bf16.msra.mxu0 %v2654
        %3037 = vmatprep.subr.bf16.mxu0 %v2659
        %3038 = vmatpush1.bf16.msra.mxu0 %v2658
        %3039 = vmatprep.subr.bf16.mxu0 %v2663
        %3040 = vmatpush1.bf16.msra.mxu0 %v2662
        %3041 = vmatprep.subr.bf16.mxu0 %v2667
        %3042 = vmatpush1.bf16.msra.mxu0 %v2666
        %3043 = vmatprep.subr.bf16.mxu0 %v2671
        %3044 = vmatpush1.bf16.msra.mxu0 %v2670
        %3045 = vmatprep.subr.bf16.mxu0 %v2675
        %3046 = vmatpush1.bf16.msra.mxu0 %v2674
        %3047 = vmatprep.subr.bf16.mxu0 %v2679
        %3048 = vmatpush1.bf16.msra.mxu0 %v2678
        %3049 = vmatprep.subr.bf16.mxu0 0
        %3050 = vmatpush1.bf16.msra.mxu0 0
        %3051 = vmatprep.subr.bf16.mxu0 0
        %3052 = vmatpush1.bf16.msra.mxu0 0
        %3053 = vmatprep.subr.bf16.mxu0 0
        %3054 = vmatpush1.bf16.msra.mxu0 0
        %3055 = vmatprep.subr.bf16.mxu0 0
        %3056 = vmatpush1.bf16.msra.mxu0 0
        %3057 = vmatprep.subr.bf16.mxu0 0
        %3058 = vmatpush1.bf16.msra.mxu0 0
        %3059 = vmatprep.subr.bf16.mxu0 0
        %3060 = vmatpush1.bf16.msra.mxu0 0
        %3061 = vmatprep.subr.bf16.mxu0 0
        %3062 = vmatpush1.bf16.msra.mxu0 0
        %3063 = vmatprep.subr.bf16.mxu0 0
        %3064 = vmatpush1.bf16.msra.mxu0 0
        %3065 = vmatprep.mubr.bf16.mxu0 0
        %3066 = vmatmul.mubr.bf16.gmra.mrb[0].mxu0 %v2989
        %v3067 = vpop.f32.mrb[0].mxu0
        %v3068 = vadd.f32 0.0, %v3067
        %v3069 = vpop.f32.mrb[0].mxu0
        %v3070 = vadd.f32 0.0, %v3069
        %v3071 = vpop.f32.mrb[0].mxu0
        %v3072 = vadd.f32 0.0, %v3071
        %v3073 = vpop.f32.mrb[0].mxu0
        %v3074 = vadd.f32 0.0, %v3073
        %3075 = vdwg.mxu0
        %v3076 = vadd.f32 %v2981, %v3025
        %v3077 = vadd.f32 %v2982, %v3027
        %v3078 = vadd.f32 %v2983, %v3068
        %v3079 = vadd.f32 %v2984, %v3070
        %v3080 = vadd.f32 %v2985, %v3029
        %v3081 = vadd.f32 %v2986, %v3031
        %v3082 = vadd.f32 %v2987, %v3072
        %v3083 = vadd.f32 %v2988, %v3074
        %v3084 = vmul.f32 %v3076, 0.5
        %v3085 = vmul.f32 %v3080, 0.5
        %v3086 = vtanh.pop %v3084
        %v3087 = vtanh.pop %v3085
        %v3088 = vmul.f32 %v3086, 0.5
        %v3089 = vmul.f32 %v3087, 0.5
        %v3090 = vadd.f32 %v3088, 0.5
        %v3091 = vadd.f32 %v3089, 0.5
        %v3092 = vmul.f32 %v3077, 0.5
        %v3093 = vmul.f32 %v3081, 0.5
        %v3094 = vtanh.pop %v3092
        %v3095 = vtanh.pop %v3093
        %v3096 = vmul.f32 %v3094, 0.5
        %v3097 = vmul.f32 %v3095, 0.5
        %v3098 = vadd.f32 %v3096, 0.5
        %v3099 = vadd.f32 %v3097, 0.5
        %v3100 = vtanh.pop %v3078
        %v3101 = vtanh.pop %v3082
        %v3102 = vmul.f32 %v3079, 0.5
        %v3103 = vmul.f32 %v3083, 0.5
        %v3104 = vtanh.pop %v3102
        %v3105 = vtanh.pop %v3103
        %v3106 = vmul.f32 %v3104, 0.5
        %v3107 = vmul.f32 %v3105, 0.5
        %v3108 = vadd.f32 %v3106, 0.5
        %v3109 = vadd.f32 %v3107, 0.5
        %v3110 = vmul.f32 %v3098, %v2975
        %v3111 = vmul.f32 %v3099, %v2976
        %v3112 = vmul.f32 %v3090, %v3100
        %v3113 = vmul.f32 %v3091, %v3101
        %v3114 = vadd.f32 %v3110, %v3112
        %v3115 = vadd.f32 %v3111, %v3113
        %v3116 = vtanh.pop %v3114
        %v3117 = vtanh.pop %v3115
        %v3118 = vmul.f32 %v3108, %v3116
        %v3119 = vmul.f32 %v3109, %v3117
        %v3120 = vld [vmem:[%s1771] sm:$0xff]
        %v3121 = vld [vmem:[%s1771 + $0x8] sm:$0xff]
        %v3122 = vld [vmem:[%s1771 + $0x10] sm:$0xff]
        %v3123 = vld [vmem:[%s1771 + $0x18] sm:$0xff]
        %v3124 = vld [vmem:[%s1771 + $0x20] sm:$0xff]
        %v3125 = vld [vmem:[%s1771 + $0x28] sm:$0xff]
        %v3126 = vld [vmem:[%s1771 + $0x30] sm:$0xff]
        %v3127 = vld [vmem:[%s1771 + $0x38] sm:$0xff]
        %v3128 = vpack.c.bf16 %v3119, %v3118
        %3129 = vmatprep.subr.bf16.mxu0 %v2649
        %3130 = vmatpush1.bf16.msra.mxu0 %v2648
        %3131 = vmatprep.subr.bf16.mxu0 %v2653
        %3132 = vmatpush1.bf16.msra.mxu0 %v2652
        %3133 = vmatprep.subr.bf16.mxu0 %v2657
        %3134 = vmatpush1.bf16.msra.mxu0 %v2656
        %3135 = vmatprep.subr.bf16.mxu0 %v2661
        %3136 = vmatpush1.bf16.msra.mxu0 %v2660
        %3137 = vmatprep.subr.bf16.mxu0 %v2665
        %3138 = vmatpush1.bf16.msra.mxu0 %v2664
        %3139 = vmatprep.subr.bf16.mxu0 %v2669
        %3140 = vmatpush1.bf16.msra.mxu0 %v2668
        %3141 = vmatprep.subr.bf16.mxu0 %v2673
        %3142 = vmatpush1.bf16.msra.mxu0 %v2672
        %3143 = vmatprep.subr.bf16.mxu0 %v2677
        %3144 = vmatpush1.bf16.msra.mxu0 %v2676
        %3145 = vmatprep.subr.bf16.mxu0 0
        %3146 = vmatpush1.bf16.msra.mxu0 0
        %3147 = vmatprep.subr.bf16.mxu0 0
        %3148 = vmatpush1.bf16.msra.mxu0 0
        %3149 = vmatprep.subr.bf16.mxu0 0
        %3150 = vmatpush1.bf16.msra.mxu0 0
        %3151 = vmatprep.subr.bf16.mxu0 0
        %3152 = vmatpush1.bf16.msra.mxu0 0
        %3153 = vmatprep.subr.bf16.mxu0 0
        %3154 = vmatpush1.bf16.msra.mxu0 0
        %3155 = vmatprep.subr.bf16.mxu0 0
        %3156 = vmatpush1.bf16.msra.mxu0 0
        %3157 = vmatprep.subr.bf16.mxu0 0
        %3158 = vmatpush1.bf16.msra.mxu0 0
        %3159 = vmatprep.subr.bf16.mxu0 0
        %3160 = vmatpush1.bf16.msra.mxu0 0
        %3161 = vmatprep.mubr.bf16.mxu0 0
        %3162 = vmatmul.mubr.bf16.gmra.mrb[0].mxu0 %v3128
        %v3163 = vpop.f32.mrb[0].mxu0
        %v3164 = vadd.f32 0.0, %v3163
        %v3165 = vpop.f32.mrb[0].mxu0
        %v3166 = vadd.f32 0.0, %v3165
        %v3167 = vpop.f32.mrb[0].mxu0
        %v3168 = vadd.f32 0.0, %v3167
        %v3169 = vpop.f32.mrb[0].mxu0
        %v3170 = vadd.f32 0.0, %v3169
        %3171 = vdwg.mxu0
        %3172 = vmatprep.subr.bf16.mxu0 %v2651
        %3173 = vmatpush1.bf16.msra.mxu0 %v2650
        %3174 = vmatprep.subr.bf16.mxu0 %v2655
        %3175 = vmatpush1.bf16.msra.mxu0 %v2654
        %3176 = vmatprep.subr.bf16.mxu0 %v2659
        %3177 = vmatpush1.bf16.msra.mxu0 %v2658
        %3178 = vmatprep.subr.bf16.mxu0 %v2663
        %3179 = vmatpush1.bf16.msra.mxu0 %v2662
        %3180 = vmatprep.subr.bf16.mxu0 %v2667
        %3181 = vmatpush1.bf16.msra.mxu0 %v2666
        %3182 = vmatprep.subr.bf16.mxu0 %v2671
        %3183 = vmatpush1.bf16.msra.mxu0 %v2670
        %3184 = vmatprep.subr.bf16.mxu0 %v2675
        %3185 = vmatpush1.bf16.msra.mxu0 %v2674
        %3186 = vmatprep.subr.bf16.mxu0 %v2679
        %3187 = vmatpush1.bf16.msra.mxu0 %v2678
        %3188 = vmatprep.subr.bf16.mxu0 0
        %3189 = vmatpush1.bf16.msra.mxu0 0
        %3190 = vmatprep.subr.bf16.mxu0 0
        %3191 = vmatpush1.bf16.msra.mxu0 0
        %3192 = vmatprep.subr.bf16.mxu0 0
        %3193 = vmatpush1.bf16.msra.mxu0 0
        %3194 = vmatprep.subr.bf16.mxu0 0
        %3195 = vmatpush1.bf16.msra.mxu0 0
        %3196 = vmatprep.subr.bf16.mxu0 0
        %3197 = vmatpush1.bf16.msra.mxu0 0
        %3198 = vmatprep.subr.bf16.mxu0 0
        %3199 = vmatpush1.bf16.msra.mxu0 0
        %3200 = vmatprep.subr.bf16.mxu0 0
        %3201 = vmatpush1.bf16.msra.mxu0 0
        %3202 = vmatprep.subr.bf16.mxu0 0
        %3203 = vmatpush1.bf16.msra.mxu0 0
        %3204 = vmatprep.mubr.bf16.mxu0 0
        %3205 = vmatmul.mubr.bf16.gmra.mrb[0].mxu0 %v3128
        %v3206 = vpop.f32.mrb[0].mxu0
        %v3207 = vadd.f32 0.0, %v3206
        %v3208 = vpop.f32.mrb[0].mxu0
        %v3209 = vadd.f32 0.0, %v3208
        %v3210 = vpop.f32.mrb[0].mxu0
        %v3211 = vadd.f32 0.0, %v3210
        %v3212 = vpop.f32.mrb[0].mxu0
        %v3213 = vadd.f32 0.0, %v3212
        %3214 = vdwg.mxu0
        %v3215 = vadd.f32 %v3120, %v3164
        %v3216 = vadd.f32 %v3121, %v3166
        %v3217 = vadd.f32 %v3122, %v3207
        %v3218 = vadd.f32 %v3123, %v3209
        %v3219 = vadd.f32 %v3124, %v3168
        %v3220 = vadd.f32 %v3125, %v3170
        %v3221 = vadd.f32 %v3126, %v3211
        %v3222 = vadd.f32 %v3127, %v3213
        %v3223 = vmul.f32 %v3215, 0.5
        %v3224 = vmul.f32 %v3219, 0.5
        %v3225 = vtanh.pop %v3223
        %v3226 = vtanh.pop %v3224
        %v3227 = vmul.f32 %v3225, 0.5
        %v3228 = vmul.f32 %v3226, 0.5
        %v3229 = vadd.f32 %v3227, 0.5
        %v3230 = vadd.f32 %v3228, 0.5
        %v3231 = vmul.f32 %v3216, 0.5
        %v3232 = vmul.f32 %v3220, 0.5
        %v3233 = vtanh.pop %v3231
        %v3234 = vtanh.pop %v3232
        %v3235 = vmul.f32 %v3233, 0.5
        %v3236 = vmul.f32 %v3234, 0.5
        %v3237 = vadd.f32 %v3235, 0.5
        %v3238 = vadd.f32 %v3236, 0.5
        %v3239 = vtanh.pop %v3217
        %v3240 = vtanh.pop %v3221
        %v3241 = vmul.f32 %v3218, 0.5
        %v3242 = vmul.f32 %v3222, 0.5
        %v3243 = vtanh.pop %v3241
        %v3244 = vtanh.pop %v3242
        %v3245 = vmul.f32 %v3243, 0.5
        %v3246 = vmul.f32 %v3244, 0.5
        %v3247 = vadd.f32 %v3245, 0.5
        %v3248 = vadd.f32 %v3246, 0.5
        %v3249 = vmul.f32 %v3237, %v3114
        %v3250 = vmul.f32 %v3238, %v3115
        %v3251 = vmul.f32 %v3229, %v3239
        %v3252 = vmul.f32 %v3230, %v3240
        %v3253 = vadd.f32 %v3249, %v3251
        %v3254 = vadd.f32 %v3250, %v3252
        %v3255 = vtanh.pop %v3253
        %v3256 = vtanh.pop %v3254
        %v3257 = vmul.f32 %v3247, %v3255
        %v3258 = vmul.f32 %v3248, %v3256
        %3259 = vst [vmem:[%s2505] sm:$0xff] %v3257
        %3260 = vst [vmem:[%s2505 + $0x8] sm:$0xff] %v3258
        %3261 = vst [vmem:[%s2508] sm:$0xff] %v3253
        %3262 = vst [vmem:[%s2508 + $0x8] sm:$0xff] %v3254
        %p3263 = scmp.eq.s32.totalorder %s31, 1
        // Predicated region
        $region81: #{tpu_custom_call.1} parent=63 // pred_check
          %p3264 = pneg %p3263
        $region82: #{tpu_custom_call.1} parent=63 // pred_check_branch
          %3266 = sbr.rel (%p3264) target = $region84
        $region83: #{tpu_custom_call.1} parent=63 // pred_region
          %v3267 = vld [vmem:[%s9] sm:$0xff]
          %v3268 = vld [vmem:[%s9 + $0x8] sm:$0xff]
          %v3269 = vld [vmem:[%s9 + $0x10] sm:$0xff]
          %v3270 = vld [vmem:[%s9 + $0x18] sm:$0xff]
          %v3271 = vld [vmem:[%s9 + $0x20] sm:$0xff]
          %v3272 = vld [vmem:[%s9 + $0x28] sm:$0xff]
          %v3273 = vld [vmem:[%s9 + $0x30] sm:$0xff]
          %v3274 = vld [vmem:[%s9 + $0x38] sm:$0xff]
          %v3275 = vld [vmem:[%s9 + $0x40] sm:$0xff]
          %v3276 = vld [vmem:[%s9 + $0x48] sm:$0xff]
          %v3277 = vld [vmem:[%s9 + $0x50] sm:$0xff]
          %v3278 = vld [vmem:[%s9 + $0x58] sm:$0xff]
          %v3279 = vld [vmem:[%s9 + $0x60] sm:$0xff]
          %v3280 = vld [vmem:[%s9 + $0x68] sm:$0xff]
          %v3281 = vld [vmem:[%s9 + $0x70] sm:$0xff]
          %v3282 = vld [vmem:[%s9 + $0x78] sm:$0xff]
          %v3283 = vld [vmem:[#allocation4] sm:$0x1]
          %v3285 = vlaneseq
          %v3286 = vshrl.u32 %v3285, 7
          %v3287 = vsub.s32 0, %v3286
          %v3288 = vrot.slane %v3283, %v3287
          %3290 = vmatprep.subr.mxu0 0.0
          %3291 = vmatpush1.msra.mxu0 %v3267
          %3292 = vmatprep.subr.mxu0 0.0
          %3293 = vmatpush1.msra.mxu0 %v3268
          %3294 = vmatprep.subr.mxu0 0.0
          %3295 = vmatpush1.msra.mxu0 %v3269
          %3296 = vmatprep.subr.mxu0 0.0
          %3297 = vmatpush1.msra.mxu0 %v3270
          %3298 = vmatprep.subr.mxu0 0.0
          %3299 = vmatpush1.msra.mxu0 %v3271
          %3300 = vmatprep.subr.mxu0 0.0
          %3301 = vmatpush1.msra.mxu0 %v3272
          %3302 = vmatprep.subr.mxu0 0.0
          %3303 = vmatpush1.msra.mxu0 %v3273
          %3304 = vmatprep.subr.mxu0 0.0
          %3305 = vmatpush1.msra.mxu0 %v3274
          %3306 = vmatprep.subr.mxu0 0.0
          %3307 = vmatpush1.msra.mxu0 %v3275
          %3308 = vmatprep.subr.mxu0 0.0
          %3309 = vmatpush1.msra.mxu0 %v3276
          %3310 = vmatprep.subr.mxu0 0.0
          %3311 = vmatpush1.msra.mxu0 %v3277
          %3312 = vmatprep.subr.mxu0 0.0
          %3313 = vmatpush1.msra.mxu0 %v3278
          %3314 = vmatprep.subr.mxu0 0.0
          %3315 = vmatpush1.msra.mxu0 %v3279
          %3316 = vmatprep.subr.mxu0 0.0
          %3317 = vmatpush1.msra.mxu0 %v3280
          %3318 = vmatprep.subr.mxu0 0.0
          %3319 = vmatpush1.msra.mxu0 %v3281
          %3320 = vmatprep.subr.mxu0 0.0
          %3321 = vmatpush1.msra.mxu0 %v3282
          %3322 = vmatprep.subr.mxu0 0.0
          %3323 = vmatpush1.msra.mxu0 0.0
          %3324 = vmatprep.subr.mxu0 0.0
          %3325 = vmatpush1.msra.mxu0 0.0
          %3326 = vmatprep.subr.mxu0 0.0
          %3327 = vmatpush1.msra.mxu0 0.0
          %3328 = vmatprep.subr.mxu0 0.0
          %3329 = vmatpush1.msra.mxu0 0.0
          %3330 = vmatprep.subr.mxu0 0.0
          %3331 = vmatpush1.msra.mxu0 0.0
          %3332 = vmatprep.subr.mxu0 0.0
          %3333 = vmatpush1.msra.mxu0 0.0
          %3334 = vmatprep.subr.mxu0 0.0
          %3335 = vmatpush1.msra.mxu0 0.0
          %3336 = vmatprep.subr.mxu0 0.0
          %3337 = vmatpush1.msra.mxu0 0.0
          %3338 = vmatprep.subr.mxu0 0.0
          %3339 = vmatpush1.msra.mxu0 0.0
          %3340 = vmatprep.subr.mxu0 0.0
          %3341 = vmatpush1.msra.mxu0 0.0
          %3342 = vmatprep.subr.mxu0 0.0
          %3343 = vmatpush1.msra.mxu0 0.0
          %3344 = vmatprep.subr.mxu0 0.0
          %3345 = vmatpush1.msra.mxu0 0.0
          %3346 = vmatprep.subr.mxu0 0.0
          %3347 = vmatpush1.msra.mxu0 0.0
          %3348 = vmatprep.subr.mxu0 0.0
          %3349 = vmatpush1.msra.mxu0 0.0
          %3350 = vmatprep.subr.mxu0 0.0
          %3351 = vmatpush1.msra.mxu0 0.0
          %3352 = vmatprep.subr.mxu0 0.0
          %3353 = vmatpush1.msra.mxu0 0.0
          %3354 = vmatprep.mubr.f32.mxu0 0.0
          %3355 = vmatmul.mubr.f32.gmra.mrb[0].mxu0 %v3257
          %v3356 = vpop.f32.mrb[0].mxu0
          %v3357 = vadd.f32 %v3288, %v3356
          %v3358 = vpop.f32.mrb[0].mxu0
          %3359 = vmatprep.mubr.f32.mxu0 0.0
          %3360 = vmatmul.mubr.f32.gmra.mrb[0].mxu0 %v3258
          %v3361 = vpop.f32.mrb[0].mxu0
          %v3362 = vadd.f32 %v3288, %v3361
          %v3363 = vpop.f32.mrb[0].mxu0
          %3364 = vdwg.mxu0
          %v3365 = vxor.u32 %v3357, 2147483648
          %v3366 = vxor.u32 %v3362, 2147483648
          %v3367 = vmul.f32 %v3365, 1.442695
          %v3368 = vpow.pop %v3367
          %v3369 = vmul.f32 %v3366, 1.442695
          %v3370 = vpow.pop %v3369
          %v3371 = vadd.f32 %v3368, 1.0
          %v3372 = vadd.f32 %v3370, 1.0
          %v3373 = vrcp.pop %v3371
          %v3374 = vmul.f32 1.0, %v3373
          %v3375 = vrcp.pop %v3372
          %v3376 = vmul.f32 1.0, %v3375
          %vm3377 = vcmask 7168
          %3378 = vst.msk [vmem:[%s11] sm:$0xff] %vm3377, %v3374
          %3379 = vst.msk [vmem:[%s11 + $0x8] sm:$0xff] %vm3377, %v3376
        $region84: #{tpu_custom_call.1} parent=63 // pred_fallthru
          _
        // Predicated region
        $region85: #{tpu_custom_call.1} parent=63 // pred_check
          %p3380 = pneg %p280
        $region86: #{tpu_custom_call.1} parent=63 // pred_check_branch
          %3382 = sbr.rel (%p3380) target = $region88
        $region87: #{tpu_custom_call.1} parent=63 // pred_region
          _
        $region88: #{tpu_custom_call.1} parent=63 // pred_fallthru
          _
        // Predicated region
        $region89: #{tpu_custom_call.1} parent=63 // pred_check
          %p3383 = pneg %p301
        $region90: #{tpu_custom_call.1} parent=63 // pred_check_branch
          %3385 = sbr.rel (%p3383) target = $region92
        $region91: #{tpu_custom_call.1} parent=63 // pred_region
          %s3387 = ssub.s32 512, 512
          %3388 = vsyncadd [#allocation7], %s3387
          %s3389 = sshll.u32 [#allocation11], 4
          %s3390 = int_to_ptr.vmem [resolvable:$true] %s3389
          %3395 = dma.vmem_to_hbm [thread:$0]  %s3390, 512, %s12, [#allocation7], 128, 128, 8
        $region92: #{tpu_custom_call.1} parent=63 // pred_fallthru
          _
        // Predicated region
        $region93: #{tpu_custom_call.1} parent=63 // pred_check
          %p3396 = pneg %p322
        $region94: #{tpu_custom_call.1} parent=63 // pred_check_branch
          %3398 = sbr.rel (%p3396) target = $region96
        $region95: #{tpu_custom_call.1} parent=63 // pred_region
          %s3400 = ssub.s32 512, 512
          %3401 = vsyncadd [#allocation13], %s3400
          %s3402 = sshll.u32 [#allocation12], 4
          %s3403 = int_to_ptr.vmem [resolvable:$true] %s3402
          %3408 = dma.vmem_to_hbm [thread:$0]  %s3403, 512, %s13, [#allocation13], 128, 128, 8
        $region96: #{tpu_custom_call.1} parent=63 // pred_fallthru
          _
        // Predicated region
        $region97: #{tpu_custom_call.1} parent=63 // pred_check
          %p3409 = pneg %p280
        $region98: #{tpu_custom_call.1} parent=63 // pred_check_branch
          %3411 = sbr.rel (%p3409) target = $region100
        $region99: #{tpu_custom_call.1} parent=63 // pred_region
          _
        $region100: #{tpu_custom_call.1} parent=63 // pred_fallthru
          _
        // Predicated region
        $region101: #{tpu_custom_call.1} parent=63 // pred_check
          %p3412 = pneg %p301
        $region102: #{tpu_custom_call.1} parent=63 // pred_check_branch
          %3414 = sbr.rel (%p3412) target = $region104
        $region103: #{tpu_custom_call.1} parent=63 // pred_region
          %3415 = dma.done [#allocation7], 512
        $region104: #{tpu_custom_call.1} parent=63 // pred_fallthru
          _
        // Predicated region
        $region105: #{tpu_custom_call.1} parent=63 // pred_check
          %p3416 = pneg %p322
        $region106: #{tpu_custom_call.1} parent=63 // pred_check_branch
          %3418 = sbr.rel (%p3416) target = $region108
        $region107: #{tpu_custom_call.1} parent=63 // pred_region
          %3419 = dma.done [#allocation13], 512
        $region108: #{tpu_custom_call.1} parent=63 // pred_fallthru
          _
      $region64: #{tpu_custom_call.1} parent=5 // pred_fallthru
        _
      %p3420 = scmp.le.s32.totalorder 2, %s26
      // Predicated region
      $region109: #{tpu_custom_call.1} parent=5 // pred_check
        %p3421 = pneg %p3420
      $region110: #{tpu_custom_call.1} parent=5 // pred_check_branch
        %3423 = sbr.rel (%p3421) target = $region112
      $region111: #{tpu_custom_call.1} parent=5 // pred_region
        %s3424 = ssub.s32 %s26, 2
      $region112: #{tpu_custom_call.1} parent=5 // pred_fallthru
        _
    $region6: #{tpu_custom_call.1} parent=1 // loop_footer
      %s30 = sadd.s32 1, %s26
    $region7: #{tpu_custom_call.1} parent=1 // loop_footer_branch
      %25 = sbr.rel target = $region3
    $region8: #{tpu_custom_call.1} parent=1 // loop_exit
      _
    %3425 = vsyncpa [#allocation6], 1
    %s3426 = scalar_lea.sflag [#allocation6], 1
    %3427 = vsyncpa %s3426, 1
    %3428 = vsyncpa [#allocation9], 1
    %3429 = vsyncpa [#allocation7], 1
    %s3430 = scalar_lea.sflag [#allocation7], 1
    %3431 = vsyncpa %s3430, 1
    %3432 = vsyncpa [#allocation13], 1

</llo_original>
